<compile_context>
chip_gen: v5e
topology: v5e:2x2
jax: 0.10.0
libtpu: 0.0.40
codegen_flags: <defaults>
</compile_context>

<pallas_src>
import functools

import jax
import jax.numpy as jnp
from jax.experimental import pallas as pl
from jax.experimental.pallas import tpu as pltpu

BN_EPS = 1e-5
FC_HIDDEN = 256
NC_PAD = 128          # fc2 output padded to one full 128-lane block


def _pad_rows(L):
    # L data rows + left/right halo, rounded up to a multiple of 8 so the
    # (bb, P, C) <-> (bb*P, C) reshapes never cross sublane tiles.
    return ((L + 2 + 7) // 8) * 8


# ---------------------------------------------------------------------------
# Fused kernel: conv1+bn1+relu -> conv2+bn2+relu -> conv3+bn3+relu
#               -> fc1+relu -> fc2   (all intermediates stay in VMEM)
# ---------------------------------------------------------------------------
def fused_tdcnn_kernel(x_ref, w1_ref, s1_ref, t1_ref, w2_ref, s2_ref, t2_ref,
                       w3_ref, s3_ref, t3_ref, fc1w_ref, fc1b_ref,
                       fc2w_ref, fc2b_ref, o_ref,
                       pad0_ref, pad1_ref, pad2_ref, *, seq_len):
    L = seq_len
    P = _pad_rows(L)

    def conv_bn_relu(h, pad_ref, w_ref, s_ref, t_ref):
        # h: (bb, L, Cin) f32.
        # w_ref: (Cin, 3*Cout) bf16 = [W_k0 | W_k1 | W_k2]  (taps fused -> one dot)
        # s_ref / t_ref: (1, Cout) f32 folded BatchNorm affine (+ conv bias).
        bb, _, cin = h.shape
        cout = s_ref.shape[-1]

        # Zero-pad (padding=1): only the halo rows / alignment tail are
        # written with zeros, the interior is fully overwritten by h.
        pad_ref[:, 0:1, :] = jnp.zeros((bb, 1, cin), jnp.float32)
        pad_ref[:, L + 1:P, :] = jnp.zeros((bb, P - L - 1, cin), jnp.float32)
        pad_ref[:, pl.ds(1, L), :] = h

        # ONE bf16 matmul per layer over the whole padded slab.
        xp = pad_ref[...].reshape(bb * P, cin).astype(jnp.bfloat16)
        z = jnp.dot(xp, w_ref[...], preferred_element_type=jnp.float32)
        z = z.reshape(bb, P, 3 * cout)

        # Recombine the three tap contributions (row-shifted f32 slices).
        y = (z[:, 0:L, 0:cout]                      # tap 0: x[l-1] (left pad)
             + z[:, 1:L + 1, cout:2 * cout]         # tap 1: x[l]
             + z[:, 2:L + 2, 2 * cout:3 * cout])    # tap 2: x[l+1] (right pad)
        y = y * s_ref[...] + t_ref[...]             # folded BN, f32
        return jnp.maximum(y, 0.0)                  # (bb, L, Cout) f32

    x = x_ref[0]                                                 # (bb, L, Cin)
    h1 = conv_bn_relu(x, pad0_ref, w1_ref, s1_ref, t1_ref)       # (bb, L, 32)
    h2 = conv_bn_relu(h1, pad1_ref, w2_ref, s2_ref, t2_ref)      # (bb, L, 64)
    h3 = conv_bn_relu(h2, pad2_ref, w3_ref, s3_ref, t3_ref)      # (bb, L, 128)

    # fc1: per-position accumulation, no flattened slab.  fc1_w was permuted
    # at init to (L, 128, 256) matching PyTorch's channel-major flatten.
    bb = h3.shape[0]
    h3b = h3.astype(jnp.bfloat16)
    acc = jnp.zeros((bb, FC_HIDDEN), jnp.float32)
    for l in range(L):                                           # static unroll
        acc = acc + jnp.dot(h3b[:, l, :], fc1w_ref[l],
                            preferred_element_type=jnp.float32)
    h = jnp.maximum(acc + fc1b_ref[...], 0.0)                    # (bb, 256) f32

    out = jnp.dot(h.astype(jnp.bfloat16), fc2w_ref[...],
                  preferred_element_type=jnp.float32) + fc2b_ref[...]
    o_ref[0] = out                                               # (bb, NC_PAD)


# ---------------------------------------------------------------------------
# Forward wrapper (mirrors TimeDomainCNN.forward)
# ---------------------------------------------------------------------------
@functools.partial(jax.jit, static_argnames=("num_classes", "batch_block"))
def time_domain_cnn_forward(params, x, *, num_classes, batch_block=None):
    # x: (B, max_len, input_channels) — what the PyTorch module receives
    # before its permute(0, 2, 1).  We keep (B, L, C) natively (channels=lanes).
    B, L, Cin = x.shape
    if num_classes > NC_PAD:
        raise ValueError(f"num_classes={num_classes} must be <= {NC_PAD}")
    if L % 8 != 0:
        raise ValueError(f"max_len={L} must be a multiple of 8 (pad the input)")

    if batch_block is None:
        # grid=1 on single-TC chips / small problems; 2-way split (v7x dual-TC)
        # only when each step still has >= 256 MXU rows.
        bb = B // 2 if (B % 2 == 0 and (B // 2) * L >= 256) else B
    else:
        bb = batch_block
    if B % bb != 0:
        raise ValueError(f"batch {B} must be divisible by batch_block {bb}")
    nb = B // bb
    P = _pad_rows(L)
    xb = x.reshape(nb, bb, L, Cin)

    # Advisory cost estimate + explicit VMEM budget (re-derived for v7x 64MiB).
    param_bytes = sum(int(p.size) * p.dtype.itemsize
                      for p in jax.tree_util.tree_leaves(params))
    flops = 2 * B * (P * Cin * 3 * 32 + P * 32 * 3 * 64 + P * 64 * 3 * 128
                     + L * 128 * FC_HIDDEN + FC_HIDDEN * NC_PAD)
    bytes_accessed = int(x.size) * 4 + param_bytes + B * NC_PAD * 4
    cost = pl.CostEstimate(flops=int(flops), transcendentals=0,
                           bytes_accessed=int(bytes_accessed))
    scratch_bytes = bb * P * (Cin + 32 + 64) * 4
    block_bytes = bb * L * Cin * 4 + bb * NC_PAD * 4 + param_bytes
    vmem_limit = int(min(max(2 * (block_bytes + scratch_bytes) + (8 << 20),
                             32 << 20), 56 << 20))

    out = pl.pallas_call(
        functools.partial(fused_tdcnn_kernel, seq_len=L),
        out_shape=jax.ShapeDtypeStruct((nb, bb, NC_PAD), jnp.float32),
        grid=(nb,),
        in_specs=[
            pl.BlockSpec((1, bb, L, Cin), lambda b: (b, 0, 0, 0)),
            pl.BlockSpec((Cin, 3 * 32), lambda b: (0, 0)),
            pl.BlockSpec((1, 32), lambda b: (0, 0)),
            pl.BlockSpec((1, 32), lambda b: (0, 0)),
            pl.BlockSpec((32, 3 * 64), lambda b: (0, 0)),
            pl.BlockSpec((1, 64), lambda b: (0, 0)),
            pl.BlockSpec((1, 64), lambda b: (0, 0)),
            pl.BlockSpec((64, 3 * 128), lambda b: (0, 0)),
            pl.BlockSpec((1, 128), lambda b: (0, 0)),
            pl.BlockSpec((1, 128), lambda b: (0, 0)),
            pl.BlockSpec((L, 128, FC_HIDDEN), lambda b: (0, 0, 0)),
            pl.BlockSpec((1, FC_HIDDEN), lambda b: (0, 0)),
            pl.BlockSpec((FC_HIDDEN, NC_PAD), lambda b: (0, 0)),
            pl.BlockSpec((1, NC_PAD), lambda b: (0, 0)),
        ],
        out_specs=pl.BlockSpec((1, bb, NC_PAD), lambda b: (b, 0, 0)),
        scratch_shapes=[
            pltpu.VMEM((bb, P, Cin), jnp.float32),   # padded input
            pltpu.VMEM((bb, P, 32), jnp.float32),    # padded conv1 out
            pltpu.VMEM((bb, P, 64), jnp.float32),    # padded conv2 out
        ],
        compiler_params=pltpu.CompilerParams(
            dimension_semantics=("parallel",),
            vmem_limit_bytes=vmem_limit),
        cost_estimate=cost,
    )(xb,
      params["c1"]["w"], params["c1"]["scale"], params["c1"]["shift"],
      params["c2"]["w"], params["c2"]["scale"], params["c2"]["shift"],
      params["c3"]["w"], params["c3"]["scale"], params["c3"]["shift"],
      params["fc1_w"], params["fc1_b"], params["fc2_w"], params["fc2_b"])

    return out.reshape(B, NC_PAD)[:, :num_classes]


# ---------------------------------------------------------------------------
# Parameters (deterministic, synthetic — shapes follow the PyTorch __init__)
# ---------------------------------------------------------------------------
def _conv_block_params(key, cin, cout):
    kw, kb, kg, kbe, km, kv = jax.random.split(key, 6)
    # PyTorch Conv1d weight layout: (Cout, Cin, K)
    w_pt = 0.05 * jax.random.normal(kw, (cout, cin, 3), jnp.float32)
    b_conv = 0.05 * jax.random.normal(kb, (cout,), jnp.float32)
    gamma = 1.0 + 0.1 * jax.random.normal(kg, (cout,), jnp.float32)
    beta = 0.1 * jax.random.normal(kbe, (cout,), jnp.float32)
    mean = 0.1 * jax.random.normal(km, (cout,), jnp.float32)
    var = jnp.abs(jax.random.normal(kv, (cout,), jnp.float32)) + 0.5
    scale = gamma / jnp.sqrt(var + BN_EPS)
    shift = (b_conv - mean) * scale + beta
    # Fuse the 3 taps into one weight slab: (Cout, Cin, K) -> (Cin, K*Cout),
    # column index = k*Cout + co  =>  lanes = [W_0 | W_1 | W_2].  Stored bf16.
    w_cat = jnp.transpose(w_pt, (1, 2, 0)).reshape(cin, 3 * cout)
    return {
        "w": w_cat.astype(jnp.bfloat16),
        "scale": scale.reshape(1, cout),
        "shift": shift.reshape(1, cout),
    }


def init_params(key, input_channels, num_classes, max_len):
    k1, k2, k3, k4, k5 = jax.random.split(key, 5)
    params = {
        "c1": _conv_block_params(k1, input_channels, 32),
        "c2": _conv_block_params(k2, 32, 64),
        "c3": _conv_block_params(k3, 64, 128),
    }
    kw1, kb1 = jax.random.split(k4)
    kw2, kb2 = jax.random.split(k5)

    # PyTorch fc1.weight: (256, 128*max_len), input index = c*max_len + l
    # (channel-major flatten of the NCL tensor).  Permute once to (L, 128, 256)
    # so the kernel accumulates dot(h3[:, l, :], fc1_w[l]) with no transpose.
    fc1_w_pt = 0.02 * jax.random.normal(kw1, (FC_HIDDEN, 128 * max_len),
                                        jnp.float32)
    w1 = fc1_w_pt.T.reshape(128, max_len, FC_HIDDEN)          # [c, l, o]
    w1 = jnp.transpose(w1, (1, 0, 2))                          # (L, 128, 256)
    params["fc1_w"] = w1.astype(jnp.bfloat16)
    params["fc1_b"] = (0.02 * jax.random.normal(kb1, (FC_HIDDEN,), jnp.float32)
                       ).reshape(1, FC_HIDDEN)

    # fc2, zero-padded to 128 output lanes (unmasked in-kernel stores), bf16.
    fc2_w_pt = 0.02 * jax.random.normal(kw2, (num_classes, FC_HIDDEN),
                                        jnp.float32)
    fc2_b = 0.02 * jax.random.normal(kb2, (num_classes,), jnp.float32)
    params["fc2_w"] = (jnp.zeros((FC_HIDDEN, NC_PAD), jnp.float32)
                       .at[:, :num_classes].set(fc2_w_pt.T)
                       ).astype(jnp.bfloat16)
    params["fc2_b"] = (jnp.zeros((1, NC_PAD), jnp.float32)
                       .at[0, :num_classes].set(fc2_b))
    return params


if __name__ == "__main__":
    BATCH = 2
    INPUT_CHANNELS = 20
    MAX_LEN = 16
    NUM_CLASSES = 5

    root = jax.random.PRNGKey(0)
    kx, kp = jax.random.split(root)
    x = jax.random.normal(kx, (BATCH, MAX_LEN, INPUT_CHANNELS), jnp.float32)
    params = init_params(kp, INPUT_CHANNELS, NUM_CLASSES, MAX_LEN)

    out = time_domain_cnn_forward(params, x, num_classes=NUM_CLASSES)
    out = jax.block_until_ready(out)
    assert out.shape == (BATCH, NUM_CLASSES), out.shape
    assert jnp.all(jnp.isfinite(out))
    print("KERNEL_OK")
</pallas_src>

<mosaic_0001>
module attributes {stable_mosaic.version = 11 : i64} {
  func.func @fused_tdcnn_kernel(%arg0: i32, %arg1: memref<1x2x16x20xf32, #tpu.memory_space<vmem>>, %arg2: memref<20x96xbf16, #tpu.memory_space<vmem>>, %arg3: memref<1x32xf32, #tpu.memory_space<vmem>>, %arg4: memref<1x32xf32, #tpu.memory_space<vmem>>, %arg5: memref<32x192xbf16, #tpu.memory_space<vmem>>, %arg6: memref<1x64xf32, #tpu.memory_space<vmem>>, %arg7: memref<1x64xf32, #tpu.memory_space<vmem>>, %arg8: memref<64x384xbf16, #tpu.memory_space<vmem>>, %arg9: memref<1x128xf32, #tpu.memory_space<vmem>>, %arg10: memref<1x128xf32, #tpu.memory_space<vmem>>, %arg11: memref<16x128x256xbf16, #tpu.memory_space<vmem>>, %arg12: memref<1x256xf32, #tpu.memory_space<vmem>>, %arg13: memref<256x128xbf16, #tpu.memory_space<vmem>>, %arg14: memref<1x128xf32, #tpu.memory_space<vmem>>, %arg15: memref<1x2x128xf32, #tpu.memory_space<vmem>>, %arg16: memref<2x24x20xf32, #tpu.memory_space<vmem>>, %arg17: memref<2x24x32xf32, #tpu.memory_space<vmem>>, %arg18: memref<2x24x64xf32, #tpu.memory_space<vmem>>) attributes {dimension_semantics = [#tpu.dimension_semantics<parallel>], iteration_bounds = array<i64: 1>, scalar_prefetch = 0 : i64, scratch_operands = 3 : i64, tpu.core_type = #tpu.core_type<tc>, window_params = [{transform_indices = @transform_0, window_bounds = array<i64: 1, 2, 16, 20>}, {pipeline_mode = #tpu.pipeline_mode<synchronous>, transform_indices = @transform_1, window_bounds = array<i64: 20, 96>}, {pipeline_mode = #tpu.pipeline_mode<synchronous>, transform_indices = @transform_2, window_bounds = array<i64: 1, 32>}, {pipeline_mode = #tpu.pipeline_mode<synchronous>, transform_indices = @transform_3, window_bounds = array<i64: 1, 32>}, {pipeline_mode = #tpu.pipeline_mode<synchronous>, transform_indices = @transform_4, window_bounds = array<i64: 32, 192>}, {pipeline_mode = #tpu.pipeline_mode<synchronous>, transform_indices = @transform_5, window_bounds = array<i64: 1, 64>}, {pipeline_mode = #tpu.pipeline_mode<synchronous>, transform_indices = @transform_6, window_bounds = array<i64: 1, 64>}, {pipeline_mode = #tpu.pipeline_mode<synchronous>, transform_indices = @transform_7, window_bounds = array<i64: 64, 384>}, {pipeline_mode = #tpu.pipeline_mode<synchronous>, transform_indices = @transform_8, window_bounds = array<i64: 1, 128>}, {pipeline_mode = #tpu.pipeline_mode<synchronous>, transform_indices = @transform_9, window_bounds = array<i64: 1, 128>}, {pipeline_mode = #tpu.pipeline_mode<synchronous>, transform_indices = @transform_10, window_bounds = array<i64: 16, 128, 256>}, {pipeline_mode = #tpu.pipeline_mode<synchronous>, transform_indices = @transform_11, window_bounds = array<i64: 1, 256>}, {pipeline_mode = #tpu.pipeline_mode<synchronous>, transform_indices = @transform_12, window_bounds = array<i64: 256, 128>}, {pipeline_mode = #tpu.pipeline_mode<synchronous>, transform_indices = @transform_13, window_bounds = array<i64: 1, 128>}, {transform_indices = @transform_14, window_bounds = array<i64: 1, 2, 128>}]} {
    %c0 = arith.constant 0 : index
    %c0_0 = arith.constant 0 : index
    %c0_1 = arith.constant 0 : index
    %c0_2 = arith.constant 0 : index
    %0 = vector.load %arg1[%c0, %c0_0, %c0_1, %c0_2] : memref<1x2x16x20xf32, #tpu.memory_space<vmem>>, vector<1x2x16x20xf32>
    %1 = vector.shape_cast %0 : vector<1x2x16x20xf32> to vector<2x16x20xf32>
    %cst = arith.constant 0.000000e+00 : f32
    %2 = vector.broadcast %cst : f32 to vector<2x1x20xf32>
    %c0_3 = arith.constant 0 : index
    %c0_4 = arith.constant 0 : index
    %c0_5 = arith.constant 0 : index
    %3 = vector.load %arg16[%c0_3, %c0_4, %c0_5] : memref<2x24x20xf32, #tpu.memory_space<vmem>>, vector<2x1x20xf32>
    tpu.vector_store %arg16[%c0_3, %c0_4, %c0_5], %2 {strides = array<i32>} : memref<2x24x20xf32, #tpu.memory_space<vmem>>, vector<2x1x20xf32>,
    %cst_6 = arith.constant 0.000000e+00 : f32
    %4 = vector.broadcast %cst_6 : f32 to vector<2x7x20xf32>
    %c0_7 = arith.constant 0 : index
    %c17 = arith.constant 17 : index
    %c0_8 = arith.constant 0 : index
    %5 = vector.load %arg16[%c0_7, %c17, %c0_8] : memref<2x24x20xf32, #tpu.memory_space<vmem>>, vector<2x7x20xf32>
    tpu.vector_store %arg16[%c0_7, %c17, %c0_8], %4 {strides = array<i32>} : memref<2x24x20xf32, #tpu.memory_space<vmem>>, vector<2x7x20xf32>,
    %c0_9 = arith.constant 0 : index
    %c1 = arith.constant 1 : index
    %c0_10 = arith.constant 0 : index
    %6 = vector.load %arg16[%c0_9, %c1, %c0_10] : memref<2x24x20xf32, #tpu.memory_space<vmem>>, vector<2x16x20xf32>
    tpu.vector_store %arg16[%c0_9, %c1, %c0_10], %1 {strides = array<i32>} : memref<2x24x20xf32, #tpu.memory_space<vmem>>, vector<2x16x20xf32>,
    %c0_11 = arith.constant 0 : index
    %c0_12 = arith.constant 0 : index
    %c0_13 = arith.constant 0 : index
    %7 = vector.load %arg16[%c0_11, %c0_12, %c0_13] : memref<2x24x20xf32, #tpu.memory_space<vmem>>, vector<2x24x20xf32>
    %8 = vector.shape_cast %7 : vector<2x24x20xf32> to vector<48x20xf32>
    %9 = arith.truncf %8 : vector<48x20xf32> to vector<48x20xbf16>
    %c0_14 = arith.constant 0 : index
    %c0_15 = arith.constant 0 : index
    %10 = vector.load %arg2[%c0_14, %c0_15] : memref<20x96xbf16, #tpu.memory_space<vmem>>, vector<20x96xbf16>
    %cst_16 = arith.constant dense<0.000000e+00> : vector<48x96xf32>
    %11 = tpu.matmul %9, %10, %cst_16 {dimension_numbers = #tpu.dot_dimension_numbers<[1], [0], [0], [1], [0, 0, 1, 1], [], []>} : vector<48x20xbf16>, vector<20x96xbf16>, vector<48x96xf32> -> vector<48x96xf32>
    %12 = vector.shape_cast %11 : vector<48x96xf32> to vector<2x24x96xf32>
    %13 = vector.extract_strided_slice %12 {offsets = [0, 0, 0], sizes = [2, 16, 32], strides = [1, 1, 1]} : vector<2x24x96xf32> to vector<2x16x32xf32>
    %14 = vector.extract_strided_slice %12 {offsets = [0, 1, 32], sizes = [2, 16, 32], strides = [1, 1, 1]} : vector<2x24x96xf32> to vector<2x16x32xf32>
    %15 = arith.addf %13, %14 : vector<2x16x32xf32>
    %16 = vector.extract_strided_slice %12 {offsets = [0, 2, 64], sizes = [2, 16, 32], strides = [1, 1, 1]} : vector<2x24x96xf32> to vector<2x16x32xf32>
    %17 = arith.addf %15, %16 : vector<2x16x32xf32>
    %c0_17 = arith.constant 0 : index
    %c0_18 = arith.constant 0 : index
    %18 = vector.load %arg3[%c0_17, %c0_18] : memref<1x32xf32, #tpu.memory_space<vmem>>, vector<1x32xf32>
    %19 = vector.shape_cast %18 : vector<1x32xf32> to vector<1x1x32xf32>
    %20 = vector.broadcast %19 : vector<1x1x32xf32> to vector<2x16x32xf32>
    %21 = arith.mulf %17, %20 : vector<2x16x32xf32>
    %c0_19 = arith.constant 0 : index
    %c0_20 = arith.constant 0 : index
    %22 = vector.load %arg4[%c0_19, %c0_20] : memref<1x32xf32, #tpu.memory_space<vmem>>, vector<1x32xf32>
    %23 = vector.shape_cast %22 : vector<1x32xf32> to vector<1x1x32xf32>
    %24 = vector.broadcast %23 : vector<1x1x32xf32> to vector<2x16x32xf32>
    %25 = arith.addf %21, %24 : vector<2x16x32xf32>
    %cst_21 = arith.constant 0.000000e+00 : f32
    %26 = vector.broadcast %cst_21 : f32 to vector<2x16x32xf32>
    %27 = arith.maximumf %25, %26 : vector<2x16x32xf32>
    %cst_22 = arith.constant 0.000000e+00 : f32
    %28 = vector.broadcast %cst_22 : f32 to vector<2x1x32xf32>
    %c0_23 = arith.constant 0 : index
    %c0_24 = arith.constant 0 : index
    %c0_25 = arith.constant 0 : index
    %29 = vector.load %arg17[%c0_23, %c0_24, %c0_25] : memref<2x24x32xf32, #tpu.memory_space<vmem>>, vector<2x1x32xf32>
    tpu.vector_store %arg17[%c0_23, %c0_24, %c0_25], %28 {strides = array<i32>} : memref<2x24x32xf32, #tpu.memory_space<vmem>>, vector<2x1x32xf32>,
    %cst_26 = arith.constant 0.000000e+00 : f32
    %30 = vector.broadcast %cst_26 : f32 to vector<2x7x32xf32>
    %c0_27 = arith.constant 0 : index
    %c17_28 = arith.constant 17 : index
    %c0_29 = arith.constant 0 : index
    %31 = vector.load %arg17[%c0_27, %c17_28, %c0_29] : memref<2x24x32xf32, #tpu.memory_space<vmem>>, vector<2x7x32xf32>
    tpu.vector_store %arg17[%c0_27, %c17_28, %c0_29], %30 {strides = array<i32>} : memref<2x24x32xf32, #tpu.memory_space<vmem>>, vector<2x7x32xf32>,
    %c0_30 = arith.constant 0 : index
    %c1_31 = arith.constant 1 : index
    %c0_32 = arith.constant 0 : index
    %32 = vector.load %arg17[%c0_30, %c1_31, %c0_32] : memref<2x24x32xf32, #tpu.memory_space<vmem>>, vector<2x16x32xf32>
    tpu.vector_store %arg17[%c0_30, %c1_31, %c0_32], %27 {strides = array<i32>} : memref<2x24x32xf32, #tpu.memory_space<vmem>>, vector<2x16x32xf32>,
    %c0_33 = arith.constant 0 : index
    %c0_34 = arith.constant 0 : index
    %c0_35 = arith.constant 0 : index
    %33 = vector.load %arg17[%c0_33, %c0_34, %c0_35] : memref<2x24x32xf32, #tpu.memory_space<vmem>>, vector<2x24x32xf32>
    %34 = vector.shape_cast %33 : vector<2x24x32xf32> to vector<48x32xf32>
    %35 = arith.truncf %34 : vector<48x32xf32> to vector<48x32xbf16>
    %c0_36 = arith.constant 0 : index
    %c0_37 = arith.constant 0 : index
    %36 = vector.load %arg5[%c0_36, %c0_37] : memref<32x192xbf16, #tpu.memory_space<vmem>>, vector<32x192xbf16>
    %cst_38 = arith.constant dense<0.000000e+00> : vector<48x192xf32>
    %37 = tpu.matmul %35, %36, %cst_38 {dimension_numbers = #tpu.dot_dimension_numbers<[1], [0], [0], [1], [0, 0, 1, 1], [], []>} : vector<48x32xbf16>, vector<32x192xbf16>, vector<48x192xf32> -> vector<48x192xf32>
    %38 = vector.shape_cast %37 : vector<48x192xf32> to vector<2x24x192xf32>
    %39 = vector.extract_strided_slice %38 {offsets = [0, 0, 0], sizes = [2, 16, 64], strides = [1, 1, 1]} : vector<2x24x192xf32> to vector<2x16x64xf32>
    %40 = vector.extract_strided_slice %38 {offsets = [0, 1, 64], sizes = [2, 16, 64], strides = [1, 1, 1]} : vector<2x24x192xf32> to vector<2x16x64xf32>
    %41 = arith.addf %39, %40 : vector<2x16x64xf32>
    %42 = vector.extract_strided_slice %38 {offsets = [0, 2, 128], sizes = [2, 16, 64], strides = [1, 1, 1]} : vector<2x24x192xf32> to vector<2x16x64xf32>
    %43 = arith.addf %41, %42 : vector<2x16x64xf32>
    %c0_39 = arith.constant 0 : index
    %c0_40 = arith.constant 0 : index
    %44 = vector.load %arg6[%c0_39, %c0_40] : memref<1x64xf32, #tpu.memory_space<vmem>>, vector<1x64xf32>
    %45 = vector.shape_cast %44 : vector<1x64xf32> to vector<1x1x64xf32>
    %46 = vector.broadcast %45 : vector<1x1x64xf32> to vector<2x16x64xf32>
    %47 = arith.mulf %43, %46 : vector<2x16x64xf32>
    %c0_41 = arith.constant 0 : index
    %c0_42 = arith.constant 0 : index
    %48 = vector.load %arg7[%c0_41, %c0_42] : memref<1x64xf32, #tpu.memory_space<vmem>>, vector<1x64xf32>
    %49 = vector.shape_cast %48 : vector<1x64xf32> to vector<1x1x64xf32>
    %50 = vector.broadcast %49 : vector<1x1x64xf32> to vector<2x16x64xf32>
    %51 = arith.addf %47, %50 : vector<2x16x64xf32>
    %cst_43 = arith.constant 0.000000e+00 : f32
    %52 = vector.broadcast %cst_43 : f32 to vector<2x16x64xf32>
    %53 = arith.maximumf %51, %52 : vector<2x16x64xf32>
    %cst_44 = arith.constant 0.000000e+00 : f32
    %54 = vector.broadcast %cst_44 : f32 to vector<2x1x64xf32>
    %c0_45 = arith.constant 0 : index
    %c0_46 = arith.constant 0 : index
    %c0_47 = arith.constant 0 : index
    %55 = vector.load %arg18[%c0_45, %c0_46, %c0_47] : memref<2x24x64xf32, #tpu.memory_space<vmem>>, vector<2x1x64xf32>
    tpu.vector_store %arg18[%c0_45, %c0_46, %c0_47], %54 {strides = array<i32>} : memref<2x24x64xf32, #tpu.memory_space<vmem>>, vector<2x1x64xf32>,
    %cst_48 = arith.constant 0.000000e+00 : f32
    %56 = vector.broadcast %cst_48 : f32 to vector<2x7x64xf32>
    %c0_49 = arith.constant 0 : index
    %c17_50 = arith.constant 17 : index
    %c0_51 = arith.constant 0 : index
    %57 = vector.load %arg18[%c0_49, %c17_50, %c0_51] : memref<2x24x64xf32, #tpu.memory_space<vmem>>, vector<2x7x64xf32>
    tpu.vector_store %arg18[%c0_49, %c17_50, %c0_51], %56 {strides = array<i32>} : memref<2x24x64xf32, #tpu.memory_space<vmem>>, vector<2x7x64xf32>,
    %c0_52 = arith.constant 0 : index
    %c1_53 = arith.constant 1 : index
    %c0_54 = arith.constant 0 : index
    %58 = vector.load %arg18[%c0_52, %c1_53, %c0_54] : memref<2x24x64xf32, #tpu.memory_space<vmem>>, vector<2x16x64xf32>
    tpu.vector_store %arg18[%c0_52, %c1_53, %c0_54], %53 {strides = array<i32>} : memref<2x24x64xf32, #tpu.memory_space<vmem>>, vector<2x16x64xf32>,
    %c0_55 = arith.constant 0 : index
    %c0_56 = arith.constant 0 : index
    %c0_57 = arith.constant 0 : index
    %59 = vector.load %arg18[%c0_55, %c0_56, %c0_57] : memref<2x24x64xf32, #tpu.memory_space<vmem>>, vector<2x24x64xf32>
    %60 = vector.shape_cast %59 : vector<2x24x64xf32> to vector<48x64xf32>
    %61 = arith.truncf %60 : vector<48x64xf32> to vector<48x64xbf16>
    %c0_58 = arith.constant 0 : index
    %c0_59 = arith.constant 0 : index
    %62 = vector.load %arg8[%c0_58, %c0_59] : memref<64x384xbf16, #tpu.memory_space<vmem>>, vector<64x384xbf16>
    %cst_60 = arith.constant dense<0.000000e+00> : vector<48x384xf32>
    %63 = tpu.matmul %61, %62, %cst_60 {dimension_numbers = #tpu.dot_dimension_numbers<[1], [0], [0], [1], [0, 0, 1, 1], [], []>} : vector<48x64xbf16>, vector<64x384xbf16>, vector<48x384xf32> -> vector<48x384xf32>
    %64 = vector.shape_cast %63 : vector<48x384xf32> to vector<2x24x384xf32>
    %65 = vector.extract_strided_slice %64 {offsets = [0, 0, 0], sizes = [2, 16, 128], strides = [1, 1, 1]} : vector<2x24x384xf32> to vector<2x16x128xf32>
    %66 = vector.extract_strided_slice %64 {offsets = [0, 1, 128], sizes = [2, 16, 128], strides = [1, 1, 1]} : vector<2x24x384xf32> to vector<2x16x128xf32>
    %67 = arith.addf %65, %66 : vector<2x16x128xf32>
    %68 = vector.extract_strided_slice %64 {offsets = [0, 2, 256], sizes = [2, 16, 128], strides = [1, 1, 1]} : vector<2x24x384xf32> to vector<2x16x128xf32>
    %69 = arith.addf %67, %68 : vector<2x16x128xf32>
    %c0_61 = arith.constant 0 : index
    %c0_62 = arith.constant 0 : index
    %70 = vector.load %arg9[%c0_61, %c0_62] : memref<1x128xf32, #tpu.memory_space<vmem>>, vector<1x128xf32>
    %71 = vector.shape_cast %70 : vector<1x128xf32> to vector<1x1x128xf32>
    %72 = vector.broadcast %71 : vector<1x1x128xf32> to vector<2x16x128xf32>
    %73 = arith.mulf %69, %72 : vector<2x16x128xf32>
    %c0_63 = arith.constant 0 : index
    %c0_64 = arith.constant 0 : index
    %74 = vector.load %arg10[%c0_63, %c0_64] : memref<1x128xf32, #tpu.memory_space<vmem>>, vector<1x128xf32>
    %75 = vector.shape_cast %74 : vector<1x128xf32> to vector<1x1x128xf32>
    %76 = vector.broadcast %75 : vector<1x1x128xf32> to vector<2x16x128xf32>
    %77 = arith.addf %73, %76 : vector<2x16x128xf32>
    %cst_65 = arith.constant 0.000000e+00 : f32
    %78 = vector.broadcast %cst_65 : f32 to vector<2x16x128xf32>
    %79 = arith.maximumf %77, %78 : vector<2x16x128xf32>
    %80 = arith.truncf %79 : vector<2x16x128xf32> to vector<2x16x128xbf16>
    %cst_66 = arith.constant 0.000000e+00 : f32
    %81 = vector.broadcast %cst_66 : f32 to vector<2x256xf32>
    %82 = vector.extract_strided_slice %80 {offsets = [0, 0, 0], sizes = [2, 1, 128], strides = [1, 1, 1]} : vector<2x16x128xbf16> to vector<2x1x128xbf16>
    %83 = vector.shape_cast %82 : vector<2x1x128xbf16> to vector<2x128xbf16>
    %c0_67 = arith.constant 0 : index
    %c0_68 = arith.constant 0 : index
    %c0_69 = arith.constant 0 : index
    %84 = vector.load %arg11[%c0_67, %c0_68, %c0_69] : memref<16x128x256xbf16, #tpu.memory_space<vmem>>, vector<1x128x256xbf16>
    %85 = vector.shape_cast %84 : vector<1x128x256xbf16> to vector<128x256xbf16>
    %cst_70 = arith.constant dense<0.000000e+00> : vector<2x256xf32>
    %86 = tpu.matmul %83, %85, %cst_70 {dimension_numbers = #tpu.dot_dimension_numbers<[1], [0], [0], [1], [0, 0, 1, 1], [], []>} : vector<2x128xbf16>, vector<128x256xbf16>, vector<2x256xf32> -> vector<2x256xf32>
    %87 = arith.addf %81, %86 : vector<2x256xf32>
    %88 = vector.extract_strided_slice %80 {offsets = [0, 1, 0], sizes = [2, 1, 128], strides = [1, 1, 1]} : vector<2x16x128xbf16> to vector<2x1x128xbf16>
    %89 = vector.shape_cast %88 : vector<2x1x128xbf16> to vector<2x128xbf16>
    %c1_71 = arith.constant 1 : index
    %c0_72 = arith.constant 0 : index
    %c0_73 = arith.constant 0 : index
    %90 = vector.load %arg11[%c1_71, %c0_72, %c0_73] : memref<16x128x256xbf16, #tpu.memory_space<vmem>>, vector<1x128x256xbf16>
    %91 = vector.shape_cast %90 : vector<1x128x256xbf16> to vector<128x256xbf16>
    %cst_74 = arith.constant dense<0.000000e+00> : vector<2x256xf32>
    %92 = tpu.matmul %89, %91, %cst_74 {dimension_numbers = #tpu.dot_dimension_numbers<[1], [0], [0], [1], [0, 0, 1, 1], [], []>} : vector<2x128xbf16>, vector<128x256xbf16>, vector<2x256xf32> -> vector<2x256xf32>
    %93 = arith.addf %87, %92 : vector<2x256xf32>
    %94 = vector.extract_strided_slice %80 {offsets = [0, 2, 0], sizes = [2, 1, 128], strides = [1, 1, 1]} : vector<2x16x128xbf16> to vector<2x1x128xbf16>
    %95 = vector.shape_cast %94 : vector<2x1x128xbf16> to vector<2x128xbf16>
    %c2 = arith.constant 2 : index
    %c0_75 = arith.constant 0 : index
    %c0_76 = arith.constant 0 : index
    %96 = vector.load %arg11[%c2, %c0_75, %c0_76] : memref<16x128x256xbf16, #tpu.memory_space<vmem>>, vector<1x128x256xbf16>
    %97 = vector.shape_cast %96 : vector<1x128x256xbf16> to vector<128x256xbf16>
    %cst_77 = arith.constant dense<0.000000e+00> : vector<2x256xf32>
    %98 = tpu.matmul %95, %97, %cst_77 {dimension_numbers = #tpu.dot_dimension_numbers<[1], [0], [0], [1], [0, 0, 1, 1], [], []>} : vector<2x128xbf16>, vector<128x256xbf16>, vector<2x256xf32> -> vector<2x256xf32>
    %99 = arith.addf %93, %98 : vector<2x256xf32>
    %100 = vector.extract_strided_slice %80 {offsets = [0, 3, 0], sizes = [2, 1, 128], strides = [1, 1, 1]} : vector<2x16x128xbf16> to vector<2x1x128xbf16>
    %101 = vector.shape_cast %100 : vector<2x1x128xbf16> to vector<2x128xbf16>
    %c3 = arith.constant 3 : index
    %c0_78 = arith.constant 0 : index
    %c0_79 = arith.constant 0 : index
    %102 = vector.load %arg11[%c3, %c0_78, %c0_79] : memref<16x128x256xbf16, #tpu.memory_space<vmem>>, vector<1x128x256xbf16>
    %103 = vector.shape_cast %102 : vector<1x128x256xbf16> to vector<128x256xbf16>
    %cst_80 = arith.constant dense<0.000000e+00> : vector<2x256xf32>
    %104 = tpu.matmul %101, %103, %cst_80 {dimension_numbers = #tpu.dot_dimension_numbers<[1], [0], [0], [1], [0, 0, 1, 1], [], []>} : vector<2x128xbf16>, vector<128x256xbf16>, vector<2x256xf32> -> vector<2x256xf32>
    %105 = arith.addf %99, %104 : vector<2x256xf32>
    %106 = vector.extract_strided_slice %80 {offsets = [0, 4, 0], sizes = [2, 1, 128], strides = [1, 1, 1]} : vector<2x16x128xbf16> to vector<2x1x128xbf16>
    %107 = vector.shape_cast %106 : vector<2x1x128xbf16> to vector<2x128xbf16>
    %c4 = arith.constant 4 : index
    %c0_81 = arith.constant 0 : index
    %c0_82 = arith.constant 0 : index
    %108 = vector.load %arg11[%c4, %c0_81, %c0_82] : memref<16x128x256xbf16, #tpu.memory_space<vmem>>, vector<1x128x256xbf16>
    %109 = vector.shape_cast %108 : vector<1x128x256xbf16> to vector<128x256xbf16>
    %cst_83 = arith.constant dense<0.000000e+00> : vector<2x256xf32>
    %110 = tpu.matmul %107, %109, %cst_83 {dimension_numbers = #tpu.dot_dimension_numbers<[1], [0], [0], [1], [0, 0, 1, 1], [], []>} : vector<2x128xbf16>, vector<128x256xbf16>, vector<2x256xf32> -> vector<2x256xf32>
    %111 = arith.addf %105, %110 : vector<2x256xf32>
    %112 = vector.extract_strided_slice %80 {offsets = [0, 5, 0], sizes = [2, 1, 128], strides = [1, 1, 1]} : vector<2x16x128xbf16> to vector<2x1x128xbf16>
    %113 = vector.shape_cast %112 : vector<2x1x128xbf16> to vector<2x128xbf16>
    %c5 = arith.constant 5 : index
    %c0_84 = arith.constant 0 : index
    %c0_85 = arith.constant 0 : index
    %114 = vector.load %arg11[%c5, %c0_84, %c0_85] : memref<16x128x256xbf16, #tpu.memory_space<vmem>>, vector<1x128x256xbf16>
    %115 = vector.shape_cast %114 : vector<1x128x256xbf16> to vector<128x256xbf16>
    %cst_86 = arith.constant dense<0.000000e+00> : vector<2x256xf32>
    %116 = tpu.matmul %113, %115, %cst_86 {dimension_numbers = #tpu.dot_dimension_numbers<[1], [0], [0], [1], [0, 0, 1, 1], [], []>} : vector<2x128xbf16>, vector<128x256xbf16>, vector<2x256xf32> -> vector<2x256xf32>
    %117 = arith.addf %111, %116 : vector<2x256xf32>
    %118 = vector.extract_strided_slice %80 {offsets = [0, 6, 0], sizes = [2, 1, 128], strides = [1, 1, 1]} : vector<2x16x128xbf16> to vector<2x1x128xbf16>
    %119 = vector.shape_cast %118 : vector<2x1x128xbf16> to vector<2x128xbf16>
    %c6 = arith.constant 6 : index
    %c0_87 = arith.constant 0 : index
    %c0_88 = arith.constant 0 : index
    %120 = vector.load %arg11[%c6, %c0_87, %c0_88] : memref<16x128x256xbf16, #tpu.memory_space<vmem>>, vector<1x128x256xbf16>
    %121 = vector.shape_cast %120 : vector<1x128x256xbf16> to vector<128x256xbf16>
    %cst_89 = arith.constant dense<0.000000e+00> : vector<2x256xf32>
    %122 = tpu.matmul %119, %121, %cst_89 {dimension_numbers = #tpu.dot_dimension_numbers<[1], [0], [0], [1], [0, 0, 1, 1], [], []>} : vector<2x128xbf16>, vector<128x256xbf16>, vector<2x256xf32> -> vector<2x256xf32>
    %123 = arith.addf %117, %122 : vector<2x256xf32>
    %124 = vector.extract_strided_slice %80 {offsets = [0, 7, 0], sizes = [2, 1, 128], strides = [1, 1, 1]} : vector<2x16x128xbf16> to vector<2x1x128xbf16>
    %125 = vector.shape_cast %124 : vector<2x1x128xbf16> to vector<2x128xbf16>
    %c7 = arith.constant 7 : index
    %c0_90 = arith.constant 0 : index
    %c0_91 = arith.constant 0 : index
    %126 = vector.load %arg11[%c7, %c0_90, %c0_91] : memref<16x128x256xbf16, #tpu.memory_space<vmem>>, vector<1x128x256xbf16>
    %127 = vector.shape_cast %126 : vector<1x128x256xbf16> to vector<128x256xbf16>
    %cst_92 = arith.constant dense<0.000000e+00> : vector<2x256xf32>
    %128 = tpu.matmul %125, %127, %cst_92 {dimension_numbers = #tpu.dot_dimension_numbers<[1], [0], [0], [1], [0, 0, 1, 1], [], []>} : vector<2x128xbf16>, vector<128x256xbf16>, vector<2x256xf32> -> vector<2x256xf32>
    %129 = arith.addf %123, %128 : vector<2x256xf32>
    %130 = vector.extract_strided_slice %80 {offsets = [0, 8, 0], sizes = [2, 1, 128], strides = [1, 1, 1]} : vector<2x16x128xbf16> to vector<2x1x128xbf16>
    %131 = vector.shape_cast %130 : vector<2x1x128xbf16> to vector<2x128xbf16>
    %c8 = arith.constant 8 : index
    %c0_93 = arith.constant 0 : index
    %c0_94 = arith.constant 0 : index
    %132 = vector.load %arg11[%c8, %c0_93, %c0_94] : memref<16x128x256xbf16, #tpu.memory_space<vmem>>, vector<1x128x256xbf16>
    %133 = vector.shape_cast %132 : vector<1x128x256xbf16> to vector<128x256xbf16>
    %cst_95 = arith.constant dense<0.000000e+00> : vector<2x256xf32>
    %134 = tpu.matmul %131, %133, %cst_95 {dimension_numbers = #tpu.dot_dimension_numbers<[1], [0], [0], [1], [0, 0, 1, 1], [], []>} : vector<2x128xbf16>, vector<128x256xbf16>, vector<2x256xf32> -> vector<2x256xf32>
    %135 = arith.addf %129, %134 : vector<2x256xf32>
    %136 = vector.extract_strided_slice %80 {offsets = [0, 9, 0], sizes = [2, 1, 128], strides = [1, 1, 1]} : vector<2x16x128xbf16> to vector<2x1x128xbf16>
    %137 = vector.shape_cast %136 : vector<2x1x128xbf16> to vector<2x128xbf16>
    %c9 = arith.constant 9 : index
    %c0_96 = arith.constant 0 : index
    %c0_97 = arith.constant 0 : index
    %138 = vector.load %arg11[%c9, %c0_96, %c0_97] : memref<16x128x256xbf16, #tpu.memory_space<vmem>>, vector<1x128x256xbf16>
    %139 = vector.shape_cast %138 : vector<1x128x256xbf16> to vector<128x256xbf16>
    %cst_98 = arith.constant dense<0.000000e+00> : vector<2x256xf32>
    %140 = tpu.matmul %137, %139, %cst_98 {dimension_numbers = #tpu.dot_dimension_numbers<[1], [0], [0], [1], [0, 0, 1, 1], [], []>} : vector<2x128xbf16>, vector<128x256xbf16>, vector<2x256xf32> -> vector<2x256xf32>
    %141 = arith.addf %135, %140 : vector<2x256xf32>
    %142 = vector.extract_strided_slice %80 {offsets = [0, 10, 0], sizes = [2, 1, 128], strides = [1, 1, 1]} : vector<2x16x128xbf16> to vector<2x1x128xbf16>
    %143 = vector.shape_cast %142 : vector<2x1x128xbf16> to vector<2x128xbf16>
    %c10 = arith.constant 10 : index
    %c0_99 = arith.constant 0 : index
    %c0_100 = arith.constant 0 : index
    %144 = vector.load %arg11[%c10, %c0_99, %c0_100] : memref<16x128x256xbf16, #tpu.memory_space<vmem>>, vector<1x128x256xbf16>
    %145 = vector.shape_cast %144 : vector<1x128x256xbf16> to vector<128x256xbf16>
    %cst_101 = arith.constant dense<0.000000e+00> : vector<2x256xf32>
    %146 = tpu.matmul %143, %145, %cst_101 {dimension_numbers = #tpu.dot_dimension_numbers<[1], [0], [0], [1], [0, 0, 1, 1], [], []>} : vector<2x128xbf16>, vector<128x256xbf16>, vector<2x256xf32> -> vector<2x256xf32>
    %147 = arith.addf %141, %146 : vector<2x256xf32>
    %148 = vector.extract_strided_slice %80 {offsets = [0, 11, 0], sizes = [2, 1, 128], strides = [1, 1, 1]} : vector<2x16x128xbf16> to vector<2x1x128xbf16>
    %149 = vector.shape_cast %148 : vector<2x1x128xbf16> to vector<2x128xbf16>
    %c11 = arith.constant 11 : index
    %c0_102 = arith.constant 0 : index
    %c0_103 = arith.constant 0 : index
    %150 = vector.load %arg11[%c11, %c0_102, %c0_103] : memref<16x128x256xbf16, #tpu.memory_space<vmem>>, vector<1x128x256xbf16>
    %151 = vector.shape_cast %150 : vector<1x128x256xbf16> to vector<128x256xbf16>
    %cst_104 = arith.constant dense<0.000000e+00> : vector<2x256xf32>
    %152 = tpu.matmul %149, %151, %cst_104 {dimension_numbers = #tpu.dot_dimension_numbers<[1], [0], [0], [1], [0, 0, 1, 1], [], []>} : vector<2x128xbf16>, vector<128x256xbf16>, vector<2x256xf32> -> vector<2x256xf32>
    %153 = arith.addf %147, %152 : vector<2x256xf32>
    %154 = vector.extract_strided_slice %80 {offsets = [0, 12, 0], sizes = [2, 1, 128], strides = [1, 1, 1]} : vector<2x16x128xbf16> to vector<2x1x128xbf16>
    %155 = vector.shape_cast %154 : vector<2x1x128xbf16> to vector<2x128xbf16>
    %c12 = arith.constant 12 : index
    %c0_105 = arith.constant 0 : index
    %c0_106 = arith.constant 0 : index
    %156 = vector.load %arg11[%c12, %c0_105, %c0_106] : memref<16x128x256xbf16, #tpu.memory_space<vmem>>, vector<1x128x256xbf16>
    %157 = vector.shape_cast %156 : vector<1x128x256xbf16> to vector<128x256xbf16>
    %cst_107 = arith.constant dense<0.000000e+00> : vector<2x256xf32>
    %158 = tpu.matmul %155, %157, %cst_107 {dimension_numbers = #tpu.dot_dimension_numbers<[1], [0], [0], [1], [0, 0, 1, 1], [], []>} : vector<2x128xbf16>, vector<128x256xbf16>, vector<2x256xf32> -> vector<2x256xf32>
    %159 = arith.addf %153, %158 : vector<2x256xf32>
    %160 = vector.extract_strided_slice %80 {offsets = [0, 13, 0], sizes = [2, 1, 128], strides = [1, 1, 1]} : vector<2x16x128xbf16> to vector<2x1x128xbf16>
    %161 = vector.shape_cast %160 : vector<2x1x128xbf16> to vector<2x128xbf16>
    %c13 = arith.constant 13 : index
    %c0_108 = arith.constant 0 : index
    %c0_109 = arith.constant 0 : index
    %162 = vector.load %arg11[%c13, %c0_108, %c0_109] : memref<16x128x256xbf16, #tpu.memory_space<vmem>>, vector<1x128x256xbf16>
    %163 = vector.shape_cast %162 : vector<1x128x256xbf16> to vector<128x256xbf16>
    %cst_110 = arith.constant dense<0.000000e+00> : vector<2x256xf32>
    %164 = tpu.matmul %161, %163, %cst_110 {dimension_numbers = #tpu.dot_dimension_numbers<[1], [0], [0], [1], [0, 0, 1, 1], [], []>} : vector<2x128xbf16>, vector<128x256xbf16>, vector<2x256xf32> -> vector<2x256xf32>
    %165 = arith.addf %159, %164 : vector<2x256xf32>
    %166 = vector.extract_strided_slice %80 {offsets = [0, 14, 0], sizes = [2, 1, 128], strides = [1, 1, 1]} : vector<2x16x128xbf16> to vector<2x1x128xbf16>
    %167 = vector.shape_cast %166 : vector<2x1x128xbf16> to vector<2x128xbf16>
    %c14 = arith.constant 14 : index
    %c0_111 = arith.constant 0 : index
    %c0_112 = arith.constant 0 : index
    %168 = vector.load %arg11[%c14, %c0_111, %c0_112] : memref<16x128x256xbf16, #tpu.memory_space<vmem>>, vector<1x128x256xbf16>
    %169 = vector.shape_cast %168 : vector<1x128x256xbf16> to vector<128x256xbf16>
    %cst_113 = arith.constant dense<0.000000e+00> : vector<2x256xf32>
    %170 = tpu.matmul %167, %169, %cst_113 {dimension_numbers = #tpu.dot_dimension_numbers<[1], [0], [0], [1], [0, 0, 1, 1], [], []>} : vector<2x128xbf16>, vector<128x256xbf16>, vector<2x256xf32> -> vector<2x256xf32>
    %171 = arith.addf %165, %170 : vector<2x256xf32>
    %172 = vector.extract_strided_slice %80 {offsets = [0, 15, 0], sizes = [2, 1, 128], strides = [1, 1, 1]} : vector<2x16x128xbf16> to vector<2x1x128xbf16>
    %173 = vector.shape_cast %172 : vector<2x1x128xbf16> to vector<2x128xbf16>
    %c15 = arith.constant 15 : index
    %c0_114 = arith.constant 0 : index
    %c0_115 = arith.constant 0 : index
    %174 = vector.load %arg11[%c15, %c0_114, %c0_115] : memref<16x128x256xbf16, #tpu.memory_space<vmem>>, vector<1x128x256xbf16>
    %175 = vector.shape_cast %174 : vector<1x128x256xbf16> to vector<128x256xbf16>
    %cst_116 = arith.constant dense<0.000000e+00> : vector<2x256xf32>
    %176 = tpu.matmul %173, %175, %cst_116 {dimension_numbers = #tpu.dot_dimension_numbers<[1], [0], [0], [1], [0, 0, 1, 1], [], []>} : vector<2x128xbf16>, vector<128x256xbf16>, vector<2x256xf32> -> vector<2x256xf32>
    %177 = arith.addf %171, %176 : vector<2x256xf32>
    %c0_117 = arith.constant 0 : index
    %c0_118 = arith.constant 0 : index
    %178 = vector.load %arg12[%c0_117, %c0_118] : memref<1x256xf32, #tpu.memory_space<vmem>>, vector<1x256xf32>
    %179 = vector.broadcast %178 : vector<1x256xf32> to vector<2x256xf32>
    %180 = arith.addf %177, %179 : vector<2x256xf32>
    %cst_119 = arith.constant 0.000000e+00 : f32
    %181 = vector.broadcast %cst_119 : f32 to vector<2x256xf32>
    %182 = arith.maximumf %180, %181 : vector<2x256xf32>
    %183 = arith.truncf %182 : vector<2x256xf32> to vector<2x256xbf16>
    %c0_120 = arith.constant 0 : index
    %c0_121 = arith.constant 0 : index
    %184 = vector.load %arg13[%c0_120, %c0_121] : memref<256x128xbf16, #tpu.memory_space<vmem>>, vector<256x128xbf16>
    %cst_122 = arith.constant dense<0.000000e+00> : vector<2x128xf32>
    %185 = tpu.matmul %183, %184, %cst_122 {dimension_numbers = #tpu.dot_dimension_numbers<[1], [0], [0], [1], [0, 0, 1, 1], [], []>} : vector<2x256xbf16>, vector<256x128xbf16>, vector<2x128xf32> -> vector<2x128xf32>
    %c0_123 = arith.constant 0 : index
    %c0_124 = arith.constant 0 : index
    %186 = vector.load %arg14[%c0_123, %c0_124] : memref<1x128xf32, #tpu.memory_space<vmem>>, vector<1x128xf32>
    %187 = vector.broadcast %186 : vector<1x128xf32> to vector<2x128xf32>
    %188 = arith.addf %185, %187 : vector<2x128xf32>
    %c0_125 = arith.constant 0 : index
    %c0_126 = arith.constant 0 : index
    %c0_127 = arith.constant 0 : index
    %189 = vector.load %arg15[%c0_125, %c0_126, %c0_127] : memref<1x2x128xf32, #tpu.memory_space<vmem>>, vector<1x2x128xf32>
    %190 = vector.shape_cast %189 : vector<1x2x128xf32> to vector<2x128xf32>
    %191 = vector.shape_cast %188 : vector<2x128xf32> to vector<1x2x128xf32>
    tpu.vector_store %arg15[%c0_125, %c0_126, %c0_127], %191 {strides = array<i32>} : memref<1x2x128xf32, #tpu.memory_space<vmem>>, vector<1x2x128xf32>,
    return
  }
  func.func @transform_0(%arg0: i32) -> (i32, i32, i32, i32) {
    %c0_i32 = arith.constant 0 : i32
    %c0_i32_0 = arith.constant 0 : i32
    %c0_i32_1 = arith.constant 0 : i32
    %c0_i32_2 = arith.constant 0 : i32
    return %arg0, %c0_i32, %c0_i32_0, %c0_i32_1 : i32, i32, i32, i32
  }
  func.func @transform_1(%arg0: i32) -> (i32, i32) {
    %c0_i32 = arith.constant 0 : i32
    %c0_i32_0 = arith.constant 0 : i32
    %c0_i32_1 = arith.constant 0 : i32
    return %c0_i32, %c0_i32_0 : i32, i32
  }
  func.func @transform_2(%arg0: i32) -> (i32, i32) {
    %c0_i32 = arith.constant 0 : i32
    %c0_i32_0 = arith.constant 0 : i32
    %c0_i32_1 = arith.constant 0 : i32
    return %c0_i32, %c0_i32_0 : i32, i32
  }
  func.func @transform_3(%arg0: i32) -> (i32, i32) {
    %c0_i32 = arith.constant 0 : i32
    %c0_i32_0 = arith.constant 0 : i32
    %c0_i32_1 = arith.constant 0 : i32
    return %c0_i32, %c0_i32_0 : i32, i32
  }
  func.func @transform_4(%arg0: i32) -> (i32, i32) {
    %c0_i32 = arith.constant 0 : i32
    %c0_i32_0 = arith.constant 0 : i32
    %c0_i32_1 = arith.constant 0 : i32
    return %c0_i32, %c0_i32_0 : i32, i32
  }
  func.func @transform_5(%arg0: i32) -> (i32, i32) {
    %c0_i32 = arith.constant 0 : i32
    %c0_i32_0 = arith.constant 0 : i32
    %c0_i32_1 = arith.constant 0 : i32
    return %c0_i32, %c0_i32_0 : i32, i32
  }
  func.func @transform_6(%arg0: i32) -> (i32, i32) {
    %c0_i32 = arith.constant 0 : i32
    %c0_i32_0 = arith.constant 0 : i32
    %c0_i32_1 = arith.constant 0 : i32
    return %c0_i32, %c0_i32_0 : i32, i32
  }
  func.func @transform_7(%arg0: i32) -> (i32, i32) {
    %c0_i32 = arith.constant 0 : i32
    %c0_i32_0 = arith.constant 0 : i32
    %c0_i32_1 = arith.constant 0 : i32
    return %c0_i32, %c0_i32_0 : i32, i32
  }
  func.func @transform_8(%arg0: i32) -> (i32, i32) {
    %c0_i32 = arith.constant 0 : i32
    %c0_i32_0 = arith.constant 0 : i32
    %c0_i32_1 = arith.constant 0 : i32
    return %c0_i32, %c0_i32_0 : i32, i32
  }
  func.func @transform_9(%arg0: i32) -> (i32, i32) {
    %c0_i32 = arith.constant 0 : i32
    %c0_i32_0 = arith.constant 0 : i32
    %c0_i32_1 = arith.constant 0 : i32
    return %c0_i32, %c0_i32_0 : i32, i32
  }
  func.func @transform_10(%arg0: i32) -> (i32, i32, i32) {
    %c0_i32 = arith.constant 0 : i32
    %c0_i32_0 = arith.constant 0 : i32
    %c0_i32_1 = arith.constant 0 : i32
    %c0_i32_2 = arith.constant 0 : i32
    return %c0_i32, %c0_i32_0, %c0_i32_1 : i32, i32, i32
  }
  func.func @transform_11(%arg0: i32) -> (i32, i32) {
    %c0_i32 = arith.constant 0 : i32
    %c0_i32_0 = arith.constant 0 : i32
    %c0_i32_1 = arith.constant 0 : i32
    return %c0_i32, %c0_i32_0 : i32, i32
  }
  func.func @transform_12(%arg0: i32) -> (i32, i32) {
    %c0_i32 = arith.constant 0 : i32
    %c0_i32_0 = arith.constant 0 : i32
    %c0_i32_1 = arith.constant 0 : i32
    return %c0_i32, %c0_i32_0 : i32, i32
  }
  func.func @transform_13(%arg0: i32) -> (i32, i32) {
    %c0_i32 = arith.constant 0 : i32
    %c0_i32_0 = arith.constant 0 : i32
    %c0_i32_1 = arith.constant 0 : i32
    return %c0_i32, %c0_i32_0 : i32, i32
  }
  func.func @transform_14(%arg0: i32) -> (i32, i32, i32) {
    %c0_i32 = arith.constant 0 : i32
    %c0_i32_0 = arith.constant 0 : i32
    %c0_i32_1 = arith.constant 0 : i32
    return %arg0, %c0_i32, %c0_i32_0 : i32, i32, i32
  }
}

</mosaic_0001>

<llo_original>
// kernel: time_domain_cnn_forward.1
$region0: #{time_domain_cnn_forward.1}
  #allocation0 [shape = 'u32[]', space=smem, size = 0x4, offset = 0x4, fixed_abs, tag = 'smem constant byte address 0x4 - core index']
  #allocation1 [shape = 'u32[72,128]{1,0:T(1,128)}', space=vmem, size = 0x9000, scoped, tag = 'internal scratch']
  #allocation2 [shape = 'f32[2,24,20]{2,1,0:T(8,128)}', space=vmem, size = 0x6000, scoped, tag = 'scratch operand']
  #allocation3 [shape = 'f32[2,24,32]{2,1,0:T(8,128)}', space=vmem, size = 0x6000, scoped, tag = 'scratch operand']
  #allocation4 [shape = 'f32[2,24,64]{2,1,0:T(8,128)}', space=vmem, size = 0x6000, scoped, tag = 'scratch operand']
  %s0 = inlined_call_operand.hbm [shape: f32[1,2,16,20], index: 0, kind: input, shape index: {}]
  %s1 = inlined_call_operand.hbm [shape: bf16[20,96], index: 1, kind: input, shape index: {}]
  %s2 = inlined_call_operand.hbm [shape: f32[1,32], index: 2, kind: input, shape index: {}]
  %s3 = inlined_call_operand.vmem [shape: f32[1,32], index: 3, kind: input, shape index: {}]
  %s4 = inlined_call_operand.hbm [shape: bf16[32,192], index: 4, kind: input, shape index: {}]
  %s5 = inlined_call_operand.hbm [shape: f32[1,64], index: 5, kind: input, shape index: {}]
  %s6 = inlined_call_operand.vmem [shape: f32[1,64], index: 6, kind: input, shape index: {}]
  %s7 = inlined_call_operand.hbm [shape: bf16[64,384], index: 7, kind: input, shape index: {}]
  %s8 = inlined_call_operand.vmem [shape: f32[1,128], index: 8, kind: input, shape index: {}]
  %s9 = inlined_call_operand.vmem [shape: f32[1,128], index: 9, kind: input, shape index: {}]
  %s10 = inlined_call_operand.hbm [shape: bf16[16,128,256], index: 10, kind: input, shape index: {}]
  %s11 = inlined_call_operand.vmem [shape: f32[1,256], index: 11, kind: input, shape index: {}]
  %s12 = inlined_call_operand.hbm [shape: bf16[256,128], index: 12, kind: input, shape index: {}]
  %s13 = inlined_call_operand.vmem [shape: f32[1,128], index: 13, kind: input, shape index: {}]
  %s14 = inlined_call_operand.hbm [shape: f32[1,2,128], index: 14, kind: output, shape index: {}]
  %s15 = sld [smem:[#allocation0]]
  $region98: #{time_domain_cnn_forward.1} parent=0
    _
  %s17 = ssub.s32 1, %s15
  %s18 = scalar_select 0, %s17, %s15
  $region1: #{time_domain_cnn_forward.1} parent=0
    #allocation5 [shape = 'u8[16384]{0}', space=vmem, size = 0x4000, scoped, tag = 'input window, operand 0, single buffered']
    #allocation6 [shape = 's32[1]{0}', space=sflag, size = 0x4, scoped, tag = 'scoped memory for time_domain_cnn_forward.1']
    #allocation7 [shape = 's32[1]{0}', space=sflag, size = 0x4, scoped, tag = 'scoped memory for time_domain_cnn_forward.1']
    #allocation8 [shape = 'u8[6144]{0}', space=vmem, size = 0x1800, scoped, tag = 'input window, operand 1, single buffered']
    #allocation9 [shape = 's32[1]{0}', space=sflag, size = 0x4, scoped, tag = 'scoped memory for time_domain_cnn_forward.1']
    #allocation10 [shape = 'u8[512]{0}', space=vmem, size = 0x400, scoped, tag = 'input window, operand 2, single buffered']
    #allocation11 [shape = 'u8[16384]{0}', space=vmem, size = 0x4000, scoped, tag = 'input window, operand 4, single buffered']
    #allocation12 [shape = 's32[1]{0}', space=sflag, size = 0x4, scoped, tag = 'scoped memory for time_domain_cnn_forward.1']
    #allocation13 [shape = 'u8[512]{0}', space=vmem, size = 0x400, scoped, tag = 'input window, operand 5, single buffered']
    #allocation14 [shape = 'u8[49152]{0}', space=vmem, size = 0xc000, scoped, tag = 'input window, operand 7, single buffered']
    #allocation15 [shape = 's32[1]{0}', space=sflag, size = 0x4, scoped, tag = 'scoped memory for time_domain_cnn_forward.1']
    #allocation16 [shape = 'u8[1048576]{0}', space=vmem, size = 0x100000, scoped, tag = 'input window, operand 10, single buffered']
    #allocation17 [shape = 'u8[65536]{0}', space=vmem, size = 0x10000, scoped, tag = 'input window, operand 12, single buffered']
    #allocation18 [shape = 's32[1]{0}', space=sflag, size = 0x4, scoped, tag = 'scoped memory for time_domain_cnn_forward.1']
    #allocation19 [shape = 'u8[1024]{0}', space=vmem, size = 0x400, scoped, tag = 'output window, operand 0, single buffered']
    %19 = vsyncpa [#allocation6], 0
    %20 = vsyncpa [#allocation9], 0
    %21 = vsyncpa [#allocation12], 0
    %22 = vsyncpa [#allocation15], 0
    %23 = vsyncpa [#allocation18], 0
    %24 = vsyncpa [#allocation7], 0
    // Predicated region
    $region2: #{time_domain_cnn_forward.1} parent=1 // pred_check
      _
    $region3: #{time_domain_cnn_forward.1} parent=1 // pred_check_branch
      %26 = sbr.rel (0) target = $region5
    $region4: #{time_domain_cnn_forward.1} parent=1 // pred_region
      %28 = vsyncadd [#allocation6], 0
      %s29 = sshll.u32 %s0, 4
      %s30 = int_to_ptr.hbm [resolvable:$true] %s29
      %s31 = sshll.u32 [#allocation5], 4
      %s32 = int_to_ptr.vmem [resolvable:$true] %s31
      %37 = dma.hbm_to_vmem [thread:$0]  %s30, 512, %s32, [#allocation6], 128, 128, 8
    $region5: #{time_domain_cnn_forward.1} parent=1 // pred_fallthru
      _
    // Predicated region
    $region6: #{time_domain_cnn_forward.1} parent=1 // pred_check
      _
    $region7: #{time_domain_cnn_forward.1} parent=1 // pred_check_branch
      %39 = sbr.rel (0) target = $region9
    $region8: #{time_domain_cnn_forward.1} parent=1 // pred_region
      %41 = vsyncadd [#allocation9], 0
      %s42 = sshll.u32 %s1, 4
      %s43 = int_to_ptr.hbm [resolvable:$true] %s42
      %s44 = sshll.u32 [#allocation8], 4
      %s45 = int_to_ptr.vmem [resolvable:$true] %s44
      %50 = dma.hbm_to_vmem [thread:$0]  %s43, 192, %s45, [#allocation9], 64, 64, 4
    $region9: #{time_domain_cnn_forward.1} parent=1 // pred_fallthru
      _
    // Predicated region
    $region10: #{time_domain_cnn_forward.1} parent=1 // pred_check
      _
    $region11: #{time_domain_cnn_forward.1} parent=1 // pred_check_branch
      %52 = sbr.rel (0) target = $region13
    $region12: #{time_domain_cnn_forward.1} parent=1 // pred_region
      %54 = vsyncadd [#allocation9], 0
      %s56 = sshll.u32 %s2, 4
      %s57 = int_to_ptr.hbm [resolvable:$true] %s56
      %s58 = sshll.u32 [#allocation10], 4
      %s59 = int_to_ptr.vmem [resolvable:$true] %s58
      %61 = dma.hbm_to_vmem [thread:$0]  %s57, 16, %s59, [#allocation9]
    $region13: #{time_domain_cnn_forward.1} parent=1 // pred_fallthru
      _
    // Predicated region
    $region14: #{time_domain_cnn_forward.1} parent=1 // pred_check
      _
    $region15: #{time_domain_cnn_forward.1} parent=1 // pred_check_branch
      %63 = sbr.rel (0) target = $region17
    $region16: #{time_domain_cnn_forward.1} parent=1 // pred_region
      _
    $region17: #{time_domain_cnn_forward.1} parent=1 // pred_fallthru
      _
    // Predicated region
    $region18: #{time_domain_cnn_forward.1} parent=1 // pred_check
      _
    $region19: #{time_domain_cnn_forward.1} parent=1 // pred_check_branch
      %65 = sbr.rel (0) target = $region21
    $region20: #{time_domain_cnn_forward.1} parent=1 // pred_region
      %67 = vsyncadd [#allocation12], 0
      %s68 = sshll.u32 %s4, 4
      %s69 = int_to_ptr.hbm [resolvable:$true] %s68
      %s70 = sshll.u32 [#allocation11], 4
      %s71 = int_to_ptr.vmem [resolvable:$true] %s70
      %76 = dma.hbm_to_vmem [thread:$0]  %s69, 512, %s71, [#allocation12], 128, 128, 8
    $region21: #{time_domain_cnn_forward.1} parent=1 // pred_fallthru
      _
    // Predicated region
    $region22: #{time_domain_cnn_forward.1} parent=1 // pred_check
      _
    $region23: #{time_domain_cnn_forward.1} parent=1 // pred_check_branch
      %78 = sbr.rel (0) target = $region25
    $region24: #{time_domain_cnn_forward.1} parent=1 // pred_region
      %80 = vsyncadd [#allocation12], 0
      %s82 = sshll.u32 %s5, 4
      %s83 = int_to_ptr.hbm [resolvable:$true] %s82
      %s84 = sshll.u32 [#allocation13], 4
      %s85 = int_to_ptr.vmem [resolvable:$true] %s84
      %87 = dma.hbm_to_vmem [thread:$0]  %s83, 16, %s85, [#allocation12]
    $region25: #{time_domain_cnn_forward.1} parent=1 // pred_fallthru
      _
    // Predicated region
    $region26: #{time_domain_cnn_forward.1} parent=1 // pred_check
      _
    $region27: #{time_domain_cnn_forward.1} parent=1 // pred_check_branch
      %89 = sbr.rel (0) target = $region29
    $region28: #{time_domain_cnn_forward.1} parent=1 // pred_region
      _
    $region29: #{time_domain_cnn_forward.1} parent=1 // pred_fallthru
      _
    // Predicated region
    $region30: #{time_domain_cnn_forward.1} parent=1 // pred_check
      _
    $region31: #{time_domain_cnn_forward.1} parent=1 // pred_check_branch
      %91 = sbr.rel (0) target = $region33
    $region32: #{time_domain_cnn_forward.1} parent=1 // pred_region
      %93 = vsyncadd [#allocation15], 0
      %s94 = sshll.u32 %s7, 4
      %s95 = int_to_ptr.hbm [resolvable:$true] %s94
      %s96 = sshll.u32 [#allocation14], 4
      %s97 = int_to_ptr.vmem [resolvable:$true] %s96
      %102 = dma.hbm_to_vmem [thread:$0]  %s95, 1536, %s97, [#allocation15], 192, 192, 12
    $region33: #{time_domain_cnn_forward.1} parent=1 // pred_fallthru
      _
    // Predicated region
    $region34: #{time_domain_cnn_forward.1} parent=1 // pred_check
      _
    $region35: #{time_domain_cnn_forward.1} parent=1 // pred_check_branch
      %104 = sbr.rel (0) target = $region37
    $region36: #{time_domain_cnn_forward.1} parent=1 // pred_region
      _
    $region37: #{time_domain_cnn_forward.1} parent=1 // pred_fallthru
      _
    // Predicated region
    $region38: #{time_domain_cnn_forward.1} parent=1 // pred_check
      _
    $region39: #{time_domain_cnn_forward.1} parent=1 // pred_check_branch
      %106 = sbr.rel (0) target = $region41
    $region40: #{time_domain_cnn_forward.1} parent=1 // pred_region
      _
    $region41: #{time_domain_cnn_forward.1} parent=1 // pred_fallthru
      _
    // Predicated region
    $region42: #{time_domain_cnn_forward.1} parent=1 // pred_check
      _
    $region43: #{time_domain_cnn_forward.1} parent=1 // pred_check_branch
      %108 = sbr.rel (0) target = $region45
    $region44: #{time_domain_cnn_forward.1} parent=1 // pred_region
      %110 = vsyncadd [#allocation15], 0
      %s111 = sshll.u32 %s10, 4
      %s112 = int_to_ptr.hbm [resolvable:$true] %s111
      %s113 = sshll.u32 [#allocation16], 4
      %s114 = int_to_ptr.vmem [resolvable:$true] %s113
      %119 = dma.hbm_to_vmem [thread:$0]  %s112, 32768, %s114, [#allocation15], 128, 128, 8
    $region45: #{time_domain_cnn_forward.1} parent=1 // pred_fallthru
      _
    // Predicated region
    $region46: #{time_domain_cnn_forward.1} parent=1 // pred_check
      _
    $region47: #{time_domain_cnn_forward.1} parent=1 // pred_check_branch
      %121 = sbr.rel (0) target = $region49
    $region48: #{time_domain_cnn_forward.1} parent=1 // pred_region
      _
    $region49: #{time_domain_cnn_forward.1} parent=1 // pred_fallthru
      _
    // Predicated region
    $region50: #{time_domain_cnn_forward.1} parent=1 // pred_check
      _
    $region51: #{time_domain_cnn_forward.1} parent=1 // pred_check_branch
      %123 = sbr.rel (0) target = $region53
    $region52: #{time_domain_cnn_forward.1} parent=1 // pred_region
      %125 = vsyncadd [#allocation18], 0
      %s126 = sshll.u32 %s12, 4
      %s127 = int_to_ptr.hbm [resolvable:$true] %s126
      %s128 = sshll.u32 [#allocation17], 4
      %s129 = int_to_ptr.vmem [resolvable:$true] %s128
      %134 = dma.hbm_to_vmem [thread:$0]  %s127, 2048, %s129, [#allocation18], 64, 64, 4
    $region53: #{time_domain_cnn_forward.1} parent=1 // pred_fallthru
      _
    // Predicated region
    $region54: #{time_domain_cnn_forward.1} parent=1 // pred_check
      _
    $region55: #{time_domain_cnn_forward.1} parent=1 // pred_check_branch
      %136 = sbr.rel (0) target = $region57
    $region56: #{time_domain_cnn_forward.1} parent=1 // pred_region
      _
    $region57: #{time_domain_cnn_forward.1} parent=1 // pred_fallthru
      _
    // Predicated region
    $region58: #{time_domain_cnn_forward.1} parent=1 // pred_check
      _
    $region59: #{time_domain_cnn_forward.1} parent=1 // pred_check_branch
      %138 = sbr.rel (0) target = $region61
    $region60: #{time_domain_cnn_forward.1} parent=1 // pred_region
      %140 = dma.done [#allocation6], 512
    $region61: #{time_domain_cnn_forward.1} parent=1 // pred_fallthru
      _
    // Predicated region
    $region62: #{time_domain_cnn_forward.1} parent=1 // pred_check
      _
    $region63: #{time_domain_cnn_forward.1} parent=1 // pred_check_branch
      %142 = sbr.rel (0) target = $region65
    $region64: #{time_domain_cnn_forward.1} parent=1 // pred_region
      %144 = dma.done [#allocation9], 192
    $region65: #{time_domain_cnn_forward.1} parent=1 // pred_fallthru
      _
    // Predicated region
    $region66: #{time_domain_cnn_forward.1} parent=1 // pred_check
      _
    $region67: #{time_domain_cnn_forward.1} parent=1 // pred_check_branch
      %146 = sbr.rel (0) target = $region69
    $region68: #{time_domain_cnn_forward.1} parent=1 // pred_region
      %148 = dma.done [#allocation9], 16
    $region69: #{time_domain_cnn_forward.1} parent=1 // pred_fallthru
      _
    // Predicated region
    $region70: #{time_domain_cnn_forward.1} parent=1 // pred_check
      _
    $region71: #{time_domain_cnn_forward.1} parent=1 // pred_check_branch
      %150 = sbr.rel (0) target = $region73
    $region72: #{time_domain_cnn_forward.1} parent=1 // pred_region
      %152 = dma.done [#allocation12], 512
    $region73: #{time_domain_cnn_forward.1} parent=1 // pred_fallthru
      _
    // Predicated region
    $region74: #{time_domain_cnn_forward.1} parent=1 // pred_check
      _
    $region75: #{time_domain_cnn_forward.1} parent=1 // pred_check_branch
      %154 = sbr.rel (0) target = $region77
    $region76: #{time_domain_cnn_forward.1} parent=1 // pred_region
      %156 = dma.done [#allocation12], 16
    $region77: #{time_domain_cnn_forward.1} parent=1 // pred_fallthru
      _
    // Predicated region
    $region78: #{time_domain_cnn_forward.1} parent=1 // pred_check
      _
    $region79: #{time_domain_cnn_forward.1} parent=1 // pred_check_branch
      %158 = sbr.rel (0) target = $region81
    $region80: #{time_domain_cnn_forward.1} parent=1 // pred_region
      %160 = dma.done [#allocation15], 1536
    $region81: #{time_domain_cnn_forward.1} parent=1 // pred_fallthru
      _
    // Predicated region
    $region82: #{time_domain_cnn_forward.1} parent=1 // pred_check
      _
    $region83: #{time_domain_cnn_forward.1} parent=1 // pred_check_branch
      %162 = sbr.rel (0) target = $region85
    $region84: #{time_domain_cnn_forward.1} parent=1 // pred_region
      %164 = dma.done [#allocation15], 32768
    $region85: #{time_domain_cnn_forward.1} parent=1 // pred_fallthru
      _
    // Predicated region
    $region86: #{time_domain_cnn_forward.1} parent=1 // pred_check
      _
    $region87: #{time_domain_cnn_forward.1} parent=1 // pred_check_branch
      %166 = sbr.rel (0) target = $region89
    $region88: #{time_domain_cnn_forward.1} parent=1 // pred_region
      %168 = dma.done [#allocation18], 2048
    $region89: #{time_domain_cnn_forward.1} parent=1 // pred_fallthru
      _
    %v170 = vld [vmem:[#allocation5] sm:$0xff]
    %v171 = vld [vmem:[#allocation5 + $0x8] sm:$0xff]
    %v172 = vld [vmem:[#allocation5 + $0x10] sm:$0xff]
    %v173 = vld [vmem:[#allocation5 + $0x18] sm:$0xff]
    %vm174 = vcmask 155648
    %175 = vst.msk [vmem:[#allocation2] sm:$0x1] %vm174, 0.0
    %176 = vst.msk [vmem:[#allocation2 + $0x18] sm:$0x1] %vm174, 0.0
    %vm177 = vcmask 161792
    %178 = vst.msk [vmem:[#allocation2 + $0x11] sm:$0x7f] %vm177, 0.0
    %179 = vst.msk [vmem:[#allocation2 + $0x29] sm:$0x7f] %vm177, 0.0
    %vm180 = vcmask 162816
    %181 = vst.msk [vmem:[#allocation2 + $0x1] sm:$0xff] %vm180, %v170
    %182 = vst.msk [vmem:[#allocation2 + $0x9] sm:$0xff] %vm180, %v171
    %183 = vst.msk [vmem:[#allocation2 + $0x19] sm:$0xff] %vm180, %v172
    %184 = vst.msk [vmem:[#allocation2 + $0x21] sm:$0xff] %vm180, %v173
    %v185 = vld [vmem:[#allocation2] sm:$0xff]
    %v186 = vld [vmem:[#allocation2 + $0x8] sm:$0xff]
    %v187 = vld [vmem:[#allocation2 + $0x10] sm:$0xff]
    %v188 = vld [vmem:[#allocation2 + $0x18] sm:$0xff]
    %v189 = vld [vmem:[#allocation2 + $0x20] sm:$0xff]
    %v190 = vld [vmem:[#allocation2 + $0x28] sm:$0xff]
    %v191 = vpack.c.bf16 %v186, %v185
    %v192 = vpack.c.bf16 %v188, %v187
    %v193 = vpack.c.bf16 %v190, %v189
    %v194 = vld [vmem:[#allocation8] sm:$0xf]
    %v195 = vld [vmem:[#allocation8 + $0x4] sm:$0xf]
    %v196 = vld [vmem:[#allocation8 + $0x8] sm:$0x3]
    %v200 = vunpack.c.l.b16 %v194
    %v201 = vunpack.c.l.b16 %v195
    %v202 = vunpack.c.l.b16 %v196
    %v203 = vpack.c.b16 %v201, %v200
    %v204 = vpack.c.b16 %v202, %v202
    %v207 = vsel %vm180, %v191, 0
    %v210 = vsel %vm180, %v192, 0
    %v213 = vsel %vm180, %v193, 0
    %vm215 = vcmask 1041408
    %v217 = vsel %vm215, %v204, 0
    %219 = vmatpush.bf16.msra.mxu0 0
    %220 = vmatpush.bf16.msra.mxu0 0
    %221 = vmatpush.bf16.msra.mxu0 0
    %222 = vmatpush.bf16.msra.mxu0 0
    %223 = vmatpush.bf16.msra.mxu0 0
    %224 = vmatpush.bf16.msra.mxu0 0
    %225 = vmatpush.bf16.msra.mxu0 %v217
    %226 = vmatpush.bf16.msra.mxu0 %v203
    %227 = vmatmul.bf16.gmra.mxu0 %v207
    %v228 = vpop.f32.mrf.mxu0
    %v229 = vadd.f32 0.0, %v228
    %v230 = vpop.f32.mrf.mxu0
    %v231 = vadd.f32 0.0, %v230
    %232 = vmatmul.bf16.gmra.mxu0 %v210
    %v233 = vpop.f32.mrf.mxu0
    %v234 = vadd.f32 0.0, %v233
    %v235 = vpop.f32.mrf.mxu0
    %v236 = vadd.f32 0.0, %v235
    %237 = vmatmul.bf16.gmra.mxu0 %v213
    %v238 = vpop.f32.mrf.mxu0
    %v239 = vadd.f32 0.0, %v238
    %v240 = vpop.f32.mrf.mxu0
    %v241 = vadd.f32 0.0, %v240
    %242 = vdwg.mxu0
    %vm249 = vcmask 1046528
    %v250 = vrot.slane %v229, 1
    %v251 = vrot.slane %v231, 1
    %v252 = vsel %vm249, %v250, %v251
    %v253 = vrot.slane %v234, 1
    %v254 = vsel %vm249, %v251, %v253
    %v255 = vrot.slane %v236, 1
    %v256 = vrot.slane %v239, 1
    %v257 = vsel %vm249, %v255, %v256
    %v258 = vrot.slane %v241, 1
    %v259 = vsel %vm249, %v256, %v258
    %260 = vrot.lane.b32.xlu0 %v252, 96
    %v261 = vpop.permute.xlu0 %260
    %262 = vrot.lane.b32.xlu0 %v254, 96
    %v263 = vpop.permute.xlu0 %262
    %264 = vrot.lane.b32.xlu0 %v257, 96
    %v265 = vpop.permute.xlu0 %264
    %266 = vrot.lane.b32.xlu0 %v259, 96
    %v267 = vpop.permute.xlu0 %266
    %v272 = vadd.f32 %v229, %v261
    %v273 = vadd.f32 %v231, %v263
    %v274 = vadd.f32 %v236, %v265
    %v275 = vadd.f32 %v239, %v267
    %vm276 = vcmask 1045504
    %v277 = vrot.slane %v229, 2
    %v278 = vrot.slane %v231, 2
    %v279 = vsel %vm276, %v277, %v278
    %v280 = vrot.slane %v234, 2
    %v281 = vsel %vm276, %v278, %v280
    %v282 = vrot.slane %v236, 2
    %v283 = vrot.slane %v239, 2
    %v284 = vsel %vm276, %v282, %v283
    %v285 = vrot.slane %v241, 2
    %v286 = vsel %vm276, %v283, %v285
    %287 = vrot.lane.b32.xlu0 %v279, 64
    %v288 = vpop.permute.xlu0 %287
    %289 = vrot.lane.b32.xlu0 %v281, 64
    %v290 = vpop.permute.xlu0 %289
    %291 = vrot.lane.b32.xlu0 %v284, 64
    %v292 = vpop.permute.xlu0 %291
    %293 = vrot.lane.b32.xlu0 %v286, 64
    %v294 = vpop.permute.xlu0 %293
    %v299 = vadd.f32 %v272, %v288
    %v300 = vadd.f32 %v273, %v290
    %v301 = vadd.f32 %v274, %v292
    %v302 = vadd.f32 %v275, %v294
    %v303 = vld [vmem:[#allocation10] sm:$0x1]
    %v305 = vperm.slane %v303, 0
    %v307 = vmul.f32 %v299, %v305
    %v308 = vmul.f32 %v300, %v305
    %v309 = vmul.f32 %v301, %v305
    %v310 = vmul.f32 %v302, %v305
    %v311 = vld [vmem:[%s3] sm:$0x1]
    %v313 = vperm.slane %v311, 0
    %v315 = vadd.f32 %v307, %v313
    %v316 = vadd.f32 %v308, %v313
    %v317 = vadd.f32 %v309, %v313
    %v318 = vadd.f32 %v310, %v313
    %v319 = vmax.f32 %v315, 0.0
    %v320 = vmax.f32 %v316, 0.0
    %v321 = vmax.f32 %v317, 0.0
    %v322 = vmax.f32 %v318, 0.0
    %vm323 = vcmask 253952
    %324 = vst.msk [vmem:[#allocation3] sm:$0x1] %vm323, 0.0
    %325 = vst.msk [vmem:[#allocation3 + $0x18] sm:$0x1] %vm323, 0.0
    %vm326 = vcmask 260096
    %327 = vst.msk [vmem:[#allocation3 + $0x11] sm:$0x7f] %vm326, 0.0
    %328 = vst.msk [vmem:[#allocation3 + $0x29] sm:$0x7f] %vm326, 0.0
    %vm329 = vcmask 261120
    %330 = vst.msk [vmem:[#allocation3 + $0x1] sm:$0xff] %vm329, %v319
    %331 = vst.msk [vmem:[#allocation3 + $0x9] sm:$0xff] %vm329, %v320
    %332 = vst.msk [vmem:[#allocation3 + $0x19] sm:$0xff] %vm329, %v321
    %333 = vst.msk [vmem:[#allocation3 + $0x21] sm:$0xff] %vm329, %v322
    %v334 = vld [vmem:[#allocation3] sm:$0xff]
    %v335 = vld [vmem:[#allocation3 + $0x8] sm:$0xff]
    %v336 = vld [vmem:[#allocation3 + $0x10] sm:$0xff]
    %v337 = vld [vmem:[#allocation3 + $0x18] sm:$0xff]
    %v338 = vld [vmem:[#allocation3 + $0x20] sm:$0xff]
    %v339 = vld [vmem:[#allocation3 + $0x28] sm:$0xff]
    %v340 = vpack.c.bf16 %v335, %v334
    %v341 = vpack.c.bf16 %v337, %v336
    %v342 = vpack.c.bf16 %v339, %v338
    %v343 = vld [vmem:[#allocation11] sm:$0xff]
    %v344 = vld [vmem:[#allocation11 + $0x8] sm:$0xff]
    %v345 = vld [vmem:[#allocation11 + $0x10] sm:$0xff]
    %v346 = vld [vmem:[#allocation11 + $0x18] sm:$0xff]
    %v351 = vunpack.c.l.b16 %v343
    %v352 = vunpack.c.h.b16 %v343
    %v353 = vunpack.c.l.b16 %v344
    %v354 = vunpack.c.h.b16 %v344
    %v355 = vunpack.c.l.b16 %v345
    %v356 = vunpack.c.h.b16 %v345
    %v357 = vunpack.c.l.b16 %v346
    %v358 = vunpack.c.h.b16 %v346
    %v359 = vpack.c.b16 %v353, %v351
    %v360 = vpack.c.b16 %v354, %v352
    %v361 = vpack.c.b16 %v357, %v355
    %v362 = vpack.c.b16 %v358, %v356
    %v368 = vsel %vm329, %v340, 0
    %v371 = vsel %vm329, %v341, 0
    %v374 = vsel %vm329, %v342, 0
    %376 = vmatpush.bf16.msra.mxu0 0
    %377 = vmatpush.bf16.msra.mxu0 0
    %378 = vmatpush.bf16.msra.mxu0 0
    %379 = vmatpush.bf16.msra.mxu0 0
    %380 = vmatpush.bf16.msra.mxu0 0
    %381 = vmatpush.bf16.msra.mxu0 0
    %382 = vmatpush.bf16.msra.mxu0 %v361
    %383 = vmatpush.bf16.msra.mxu0 %v359
    %384 = vmatmul.bf16.gmra.mxu0 %v368
    %v385 = vpop.f32.mrf.mxu0
    %v386 = vadd.f32 0.0, %v385
    %v387 = vpop.f32.mrf.mxu0
    %v388 = vadd.f32 0.0, %v387
    %389 = vmatmul.bf16.gmra.mxu0 %v371
    %v390 = vpop.f32.mrf.mxu0
    %v391 = vadd.f32 0.0, %v390
    %v392 = vpop.f32.mrf.mxu0
    %v393 = vadd.f32 0.0, %v392
    %394 = vmatmul.bf16.gmra.mxu0 %v374
    %v395 = vpop.f32.mrf.mxu0
    %v396 = vadd.f32 0.0, %v395
    %v397 = vpop.f32.mrf.mxu0
    %v398 = vadd.f32 0.0, %v397
    %399 = vdwg.mxu0
    %400 = vmatpush.bf16.msra.mxu0 0
    %401 = vmatpush.bf16.msra.mxu0 0
    %402 = vmatpush.bf16.msra.mxu0 0
    %403 = vmatpush.bf16.msra.mxu0 0
    %404 = vmatpush.bf16.msra.mxu0 0
    %405 = vmatpush.bf16.msra.mxu0 0
    %406 = vmatpush.bf16.msra.mxu0 %v362
    %407 = vmatpush.bf16.msra.mxu0 %v360
    %408 = vmatmul.bf16.gmra.mxu0 %v368
    %v409 = vpop.f32.mrf.mxu0
    %v410 = vadd.f32 0.0, %v409
    %v411 = vpop.f32.mrf.mxu0
    %v412 = vadd.f32 0.0, %v411
    %413 = vmatmul.bf16.gmra.mxu0 %v371
    %v414 = vpop.f32.mrf.mxu0
    %v415 = vadd.f32 0.0, %v414
    %v416 = vpop.f32.mrf.mxu0
    %v417 = vadd.f32 0.0, %v416
    %418 = vmatmul.bf16.gmra.mxu0 %v374
    %v419 = vpop.f32.mrf.mxu0
    %v420 = vadd.f32 0.0, %v419
    %v421 = vpop.f32.mrf.mxu0
    %v422 = vadd.f32 0.0, %v421
    %423 = vdwg.mxu0
    %v430 = vrot.slane %v386, 1
    %v431 = vrot.slane %v388, 1
    %v432 = vsel %vm249, %v430, %v431
    %v433 = vrot.slane %v391, 1
    %v434 = vsel %vm249, %v431, %v433
    %v435 = vrot.slane %v393, 1
    %v436 = vrot.slane %v396, 1
    %v437 = vsel %vm249, %v435, %v436
    %v438 = vrot.slane %v398, 1
    %v439 = vsel %vm249, %v436, %v438
    %440 = vrot.lane.b32.xlu0 %v432, 64
    %v441 = vpop.permute.xlu0 %440
    %442 = vrot.lane.b32.xlu0 %v434, 64
    %v443 = vpop.permute.xlu0 %442
    %444 = vrot.lane.b32.xlu0 %v437, 64
    %v445 = vpop.permute.xlu0 %444
    %446 = vrot.lane.b32.xlu0 %v439, 64
    %v447 = vpop.permute.xlu0 %446
    %v452 = vadd.f32 %v386, %v441
    %v453 = vadd.f32 %v388, %v443
    %v454 = vadd.f32 %v393, %v445
    %v455 = vadd.f32 %v396, %v447
    %v462 = vrot.slane %v410, 2
    %v463 = vrot.slane %v412, 2
    %v464 = vsel %vm276, %v462, %v463
    %v465 = vrot.slane %v415, 2
    %v466 = vsel %vm276, %v463, %v465
    %v467 = vrot.slane %v417, 2
    %v468 = vrot.slane %v420, 2
    %v469 = vsel %vm276, %v467, %v468
    %v470 = vrot.slane %v422, 2
    %v471 = vsel %vm276, %v468, %v470
    %v476 = vadd.f32 %v452, %v464
    %v477 = vadd.f32 %v453, %v466
    %v478 = vadd.f32 %v454, %v469
    %v479 = vadd.f32 %v455, %v471
    %v480 = vld [vmem:[#allocation13] sm:$0x1]
    %v482 = vperm.slane %v480, 0
    %v484 = vmul.f32 %v476, %v482
    %v485 = vmul.f32 %v477, %v482
    %v486 = vmul.f32 %v478, %v482
    %v487 = vmul.f32 %v479, %v482
    %v488 = vld [vmem:[%s6] sm:$0x1]
    %v490 = vperm.slane %v488, 0
    %v492 = vadd.f32 %v484, %v490
    %v493 = vadd.f32 %v485, %v490
    %v494 = vadd.f32 %v486, %v490
    %v495 = vadd.f32 %v487, %v490
    %v496 = vmax.f32 %v492, 0.0
    %v497 = vmax.f32 %v493, 0.0
    %v498 = vmax.f32 %v494, 0.0
    %v499 = vmax.f32 %v495, 0.0
    %vm500 = vcmask 516096
    %501 = vst.msk [vmem:[#allocation4] sm:$0x1] %vm500, 0.0
    %502 = vst.msk [vmem:[#allocation4 + $0x18] sm:$0x1] %vm500, 0.0
    %vm503 = vcmask 522240
    %504 = vst.msk [vmem:[#allocation4 + $0x11] sm:$0x7f] %vm503, 0.0
    %505 = vst.msk [vmem:[#allocation4 + $0x29] sm:$0x7f] %vm503, 0.0
    %vm506 = vcmask 523264
    %507 = vst.msk [vmem:[#allocation4 + $0x1] sm:$0xff] %vm506, %v496
    %508 = vst.msk [vmem:[#allocation4 + $0x9] sm:$0xff] %vm506, %v497
    %509 = vst.msk [vmem:[#allocation4 + $0x19] sm:$0xff] %vm506, %v498
    %510 = vst.msk [vmem:[#allocation4 + $0x21] sm:$0xff] %vm506, %v499
    %v511 = vld [vmem:[#allocation4] sm:$0xff]
    %v512 = vld [vmem:[#allocation4 + $0x8] sm:$0xff]
    %v513 = vld [vmem:[#allocation4 + $0x10] sm:$0xff]
    %v514 = vld [vmem:[#allocation4 + $0x18] sm:$0xff]
    %v515 = vld [vmem:[#allocation4 + $0x20] sm:$0xff]
    %v516 = vld [vmem:[#allocation4 + $0x28] sm:$0xff]
    %v517 = vpack.c.bf16 %v512, %v511
    %v518 = vpack.c.bf16 %v514, %v513
    %v519 = vpack.c.bf16 %v516, %v515
    %v520 = vld [vmem:[#allocation14] sm:$0xff]
    %v521 = vld [vmem:[#allocation14 + $0x8] sm:$0xf]
    %v522 = vld [vmem:[#allocation14 + $0xc] sm:$0xff]
    %v523 = vld [vmem:[#allocation14 + $0x14] sm:$0xf]
    %v524 = vld [vmem:[#allocation14 + $0x18] sm:$0xff]
    %v525 = vld [vmem:[#allocation14 + $0x20] sm:$0xf]
    %v526 = vld [vmem:[#allocation14 + $0x24] sm:$0xff]
    %v527 = vld [vmem:[#allocation14 + $0x2c] sm:$0xf]
    %v528 = vld [vmem:[#allocation14 + $0x30] sm:$0xff]
    %v529 = vld [vmem:[#allocation14 + $0x38] sm:$0xf]
    %v530 = vld [vmem:[#allocation14 + $0x3c] sm:$0xff]
    %v531 = vld [vmem:[#allocation14 + $0x44] sm:$0xf]
    %v532 = vld [vmem:[#allocation14 + $0x48] sm:$0xff]
    %v533 = vld [vmem:[#allocation14 + $0x50] sm:$0xf]
    %v534 = vld [vmem:[#allocation14 + $0x54] sm:$0xff]
    %v535 = vld [vmem:[#allocation14 + $0x5c] sm:$0xf]
    %v552 = vunpack.c.l.b16 %v520
    %v553 = vunpack.c.h.b16 %v520
    %v554 = vunpack.c.l.b16 %v521
    %v555 = vunpack.c.l.b16 %v522
    %v556 = vunpack.c.h.b16 %v522
    %v557 = vunpack.c.l.b16 %v523
    %v558 = vunpack.c.l.b16 %v524
    %v559 = vunpack.c.h.b16 %v524
    %v560 = vunpack.c.l.b16 %v525
    %v561 = vunpack.c.l.b16 %v526
    %v562 = vunpack.c.h.b16 %v526
    %v563 = vunpack.c.l.b16 %v527
    %v564 = vunpack.c.l.b16 %v528
    %v565 = vunpack.c.h.b16 %v528
    %v566 = vunpack.c.l.b16 %v529
    %v567 = vunpack.c.l.b16 %v530
    %v568 = vunpack.c.h.b16 %v530
    %v569 = vunpack.c.l.b16 %v531
    %v570 = vunpack.c.l.b16 %v532
    %v571 = vunpack.c.h.b16 %v532
    %v572 = vunpack.c.l.b16 %v533
    %v573 = vunpack.c.l.b16 %v534
    %v574 = vunpack.c.h.b16 %v534
    %v575 = vunpack.c.l.b16 %v535
    %v576 = vpack.c.b16 %v555, %v552
    %v577 = vpack.c.b16 %v556, %v553
    %v578 = vpack.c.b16 %v557, %v554
    %v579 = vpack.c.b16 %v561, %v558
    %v580 = vpack.c.b16 %v562, %v559
    %v581 = vpack.c.b16 %v563, %v560
    %v582 = vpack.c.b16 %v567, %v564
    %v583 = vpack.c.b16 %v568, %v565
    %v584 = vpack.c.b16 %v569, %v566
    %v585 = vpack.c.b16 %v573, %v570
    %v586 = vpack.c.b16 %v574, %v571
    %v587 = vpack.c.b16 %v575, %v572
    %v601 = vsel %vm506, %v517, 0
    %v604 = vsel %vm506, %v518, 0
    %v607 = vsel %vm506, %v519, 0
    %609 = vmatpush.bf16.msra.mxu0 0
    %610 = vmatpush.bf16.msra.mxu0 0
    %611 = vmatpush.bf16.msra.mxu0 0
    %612 = vmatpush.bf16.msra.mxu0 0
    %613 = vmatpush.bf16.msra.mxu0 %v585
    %614 = vmatpush.bf16.msra.mxu0 %v582
    %615 = vmatpush.bf16.msra.mxu0 %v579
    %616 = vmatpush.bf16.msra.mxu0 %v576
    %617 = vmatmul.bf16.gmra.mxu0 %v601
    %v618 = vpop.f32.mrf.mxu0
    %v619 = vadd.f32 0.0, %v618
    %v620 = vpop.f32.mrf.mxu0
    %v621 = vadd.f32 0.0, %v620
    %622 = vmatmul.bf16.gmra.mxu0 %v604
    %v623 = vpop.f32.mrf.mxu0
    %v624 = vpop.f32.mrf.mxu0
    %v625 = vadd.f32 0.0, %v624
    %626 = vmatmul.bf16.gmra.mxu0 %v607
    %v627 = vpop.f32.mrf.mxu0
    %v628 = vadd.f32 0.0, %v627
    %v629 = vpop.f32.mrf.mxu0
    %630 = vdwg.mxu0
    %631 = vmatpush.bf16.msra.mxu0 0
    %632 = vmatpush.bf16.msra.mxu0 0
    %633 = vmatpush.bf16.msra.mxu0 0
    %634 = vmatpush.bf16.msra.mxu0 0
    %635 = vmatpush.bf16.msra.mxu0 %v586
    %636 = vmatpush.bf16.msra.mxu0 %v583
    %637 = vmatpush.bf16.msra.mxu0 %v580
    %638 = vmatpush.bf16.msra.mxu0 %v577
    %639 = vmatmul.bf16.gmra.mxu0 %v601
    %v640 = vpop.f32.mrf.mxu0
    %v641 = vadd.f32 0.0, %v640
    %v642 = vpop.f32.mrf.mxu0
    %v643 = vadd.f32 0.0, %v642
    %644 = vmatmul.bf16.gmra.mxu0 %v604
    %v645 = vpop.f32.mrf.mxu0
    %v646 = vadd.f32 0.0, %v645
    %v647 = vpop.f32.mrf.mxu0
    %v648 = vadd.f32 0.0, %v647
    %649 = vmatmul.bf16.gmra.mxu0 %v607
    %v650 = vpop.f32.mrf.mxu0
    %v651 = vadd.f32 0.0, %v650
    %v652 = vpop.f32.mrf.mxu0
    %v653 = vadd.f32 0.0, %v652
    %654 = vdwg.mxu0
    %655 = vmatpush.bf16.msra.mxu0 0
    %656 = vmatpush.bf16.msra.mxu0 0
    %657 = vmatpush.bf16.msra.mxu0 0
    %658 = vmatpush.bf16.msra.mxu0 0
    %659 = vmatpush.bf16.msra.mxu0 %v587
    %660 = vmatpush.bf16.msra.mxu0 %v584
    %661 = vmatpush.bf16.msra.mxu0 %v581
    %662 = vmatpush.bf16.msra.mxu0 %v578
    %663 = vmatmul.bf16.gmra.mxu0 %v601
    %v664 = vpop.f32.mrf.mxu0
    %v665 = vadd.f32 0.0, %v664
    %v666 = vpop.f32.mrf.mxu0
    %v667 = vadd.f32 0.0, %v666
    %668 = vmatmul.bf16.gmra.mxu0 %v604
    %v669 = vpop.f32.mrf.mxu0
    %v670 = vadd.f32 0.0, %v669
    %v671 = vpop.f32.mrf.mxu0
    %v672 = vadd.f32 0.0, %v671
    %673 = vmatmul.bf16.gmra.mxu0 %v607
    %v674 = vpop.f32.mrf.mxu0
    %v675 = vadd.f32 0.0, %v674
    %v676 = vpop.f32.mrf.mxu0
    %v677 = vadd.f32 0.0, %v676
    %678 = vdwg.mxu0
    %v685 = vrot.slane %v641, 1
    %v686 = vrot.slane %v643, 1
    %v687 = vsel %vm249, %v685, %v686
    %v688 = vrot.slane %v646, 1
    %v689 = vsel %vm249, %v686, %v688
    %v690 = vrot.slane %v648, 1
    %v691 = vrot.slane %v651, 1
    %v692 = vsel %vm249, %v690, %v691
    %v693 = vrot.slane %v653, 1
    %v694 = vsel %vm249, %v691, %v693
    %v699 = vadd.f32 %v619, %v687
    %v700 = vadd.f32 %v621, %v689
    %v701 = vadd.f32 %v625, %v692
    %v702 = vadd.f32 %v628, %v694
    %v709 = vrot.slane %v665, 2
    %v710 = vrot.slane %v667, 2
    %v711 = vsel %vm276, %v709, %v710
    %v712 = vrot.slane %v670, 2
    %v713 = vsel %vm276, %v710, %v712
    %v714 = vrot.slane %v672, 2
    %v715 = vrot.slane %v675, 2
    %v716 = vsel %vm276, %v714, %v715
    %v717 = vrot.slane %v677, 2
    %v718 = vsel %vm276, %v715, %v717
    %v723 = vadd.f32 %v699, %v711
    %v724 = vadd.f32 %v700, %v713
    %v725 = vadd.f32 %v701, %v716
    %v726 = vadd.f32 %v702, %v718
    %v727 = vld [vmem:[%s8] sm:$0x1]
    %v729 = vperm.slane %v727, 0
    %v731 = vmul.f32 %v723, %v729
    %v732 = vmul.f32 %v724, %v729
    %v733 = vmul.f32 %v725, %v729
    %v734 = vmul.f32 %v726, %v729
    %v735 = vld [vmem:[%s9] sm:$0x1]
    %v737 = vperm.slane %v735, 0
    %v739 = vadd.f32 %v731, %v737
    %v740 = vadd.f32 %v732, %v737
    %v741 = vadd.f32 %v733, %v737
    %v742 = vadd.f32 %v734, %v737
    %v743 = vmax.f32 %v739, 0.0
    %v744 = vmax.f32 %v740, 0.0
    %v745 = vmax.f32 %v741, 0.0
    %v746 = vmax.f32 %v742, 0.0
    %v747 = vpack.c.bf16 %v743, %v743
    %v748 = vpack.c.bf16 %v744, %v744
    %v749 = vpack.c.bf16 %v745, %v745
    %v750 = vpack.c.bf16 %v746, %v746
    %v751 = vld [vmem:[#allocation16] sm:$0xff]
    %v752 = vld [vmem:[#allocation16 + $0x8] sm:$0xff]
    %v753 = vld [vmem:[#allocation16 + $0x10] sm:$0xff]
    %v754 = vld [vmem:[#allocation16 + $0x18] sm:$0xff]
    %v755 = vld [vmem:[#allocation16 + $0x20] sm:$0xff]
    %v756 = vld [vmem:[#allocation16 + $0x28] sm:$0xff]
    %v757 = vld [vmem:[#allocation16 + $0x30] sm:$0xff]
    %v758 = vld [vmem:[#allocation16 + $0x38] sm:$0xff]
    %v759 = vld [vmem:[#allocation16 + $0x40] sm:$0xff]
    %v760 = vld [vmem:[#allocation16 + $0x48] sm:$0xff]
    %v761 = vld [vmem:[#allocation16 + $0x50] sm:$0xff]
    %v762 = vld [vmem:[#allocation16 + $0x58] sm:$0xff]
    %v763 = vld [vmem:[#allocation16 + $0x60] sm:$0xff]
    %v764 = vld [vmem:[#allocation16 + $0x68] sm:$0xff]
    %v765 = vld [vmem:[#allocation16 + $0x70] sm:$0xff]
    %v766 = vld [vmem:[#allocation16 + $0x78] sm:$0xff]
    %s767 = scalar_lea.vmem [#allocation16], 128
    %v768 = vld [vmem:[%s767] sm:$0xff]
    %v769 = vld [vmem:[%s767 + $0x8] sm:$0xff]
    %v770 = vld [vmem:[%s767 + $0x10] sm:$0xff]
    %v771 = vld [vmem:[%s767 + $0x18] sm:$0xff]
    %v772 = vld [vmem:[%s767 + $0x20] sm:$0xff]
    %v773 = vld [vmem:[%s767 + $0x28] sm:$0xff]
    %v774 = vld [vmem:[%s767 + $0x30] sm:$0xff]
    %v775 = vld [vmem:[%s767 + $0x38] sm:$0xff]
    %v776 = vld [vmem:[%s767 + $0x40] sm:$0xff]
    %v777 = vld [vmem:[%s767 + $0x48] sm:$0xff]
    %v778 = vld [vmem:[%s767 + $0x50] sm:$0xff]
    %v779 = vld [vmem:[%s767 + $0x58] sm:$0xff]
    %v780 = vld [vmem:[%s767 + $0x60] sm:$0xff]
    %v781 = vld [vmem:[%s767 + $0x68] sm:$0xff]
    %v782 = vld [vmem:[%s767 + $0x70] sm:$0xff]
    %v783 = vld [vmem:[%s767 + $0x78] sm:$0xff]
    %v786 = vunpack.c.l.b16 %v747
    %v787 = vunpack.c.l.b16 %v749
    %v788 = vpack.c.b16 %v786, %v786
    %v789 = vpack.c.b16 %v787, %v787
    %v790 = vunpack.c.l.b16 %v788
    %v791 = vunpack.c.l.b16 %v789
    %v792 = vrot.slane %v790, 1
    %vm793 = vcmask 1041409
    %v794 = vsel %vm793, %v791, %v792
    %v795 = vpack.c.b16 %v794, %v794
    %v813 = vunpack.c.l.b16 %v768
    %v814 = vunpack.c.h.b16 %v768
    %v815 = vunpack.c.l.b16 %v769
    %v816 = vunpack.c.h.b16 %v769
    %v817 = vunpack.c.l.b16 %v770
    %v818 = vunpack.c.h.b16 %v770
    %v819 = vunpack.c.l.b16 %v771
    %v820 = vunpack.c.h.b16 %v771
    %v821 = vunpack.c.l.b16 %v772
    %v822 = vunpack.c.h.b16 %v772
    %v823 = vunpack.c.l.b16 %v773
    %v824 = vunpack.c.h.b16 %v773
    %v825 = vunpack.c.l.b16 %v774
    %v826 = vunpack.c.h.b16 %v774
    %v827 = vunpack.c.l.b16 %v775
    %v828 = vunpack.c.h.b16 %v775
    %v829 = vunpack.c.l.b16 %v776
    %v830 = vunpack.c.h.b16 %v776
    %v831 = vunpack.c.l.b16 %v777
    %v832 = vunpack.c.h.b16 %v777
    %v833 = vunpack.c.l.b16 %v778
    %v834 = vunpack.c.h.b16 %v778
    %v835 = vunpack.c.l.b16 %v779
    %v836 = vunpack.c.h.b16 %v779
    %v837 = vunpack.c.l.b16 %v780
    %v838 = vunpack.c.h.b16 %v780
    %v839 = vunpack.c.l.b16 %v781
    %v840 = vunpack.c.h.b16 %v781
    %v841 = vunpack.c.l.b16 %v782
    %v842 = vunpack.c.h.b16 %v782
    %v843 = vunpack.c.l.b16 %v783
    %v844 = vunpack.c.h.b16 %v783
    %v845 = vpack.c.b16 %v815, %v813
    %v846 = vpack.c.b16 %v816, %v814
    %v847 = vpack.c.b16 %v819, %v817
    %v848 = vpack.c.b16 %v820, %v818
    %v849 = vpack.c.b16 %v823, %v821
    %v850 = vpack.c.b16 %v824, %v822
    %v851 = vpack.c.b16 %v827, %v825
    %v852 = vpack.c.b16 %v828, %v826
    %v853 = vpack.c.b16 %v831, %v829
    %v854 = vpack.c.b16 %v832, %v830
    %v855 = vpack.c.b16 %v835, %v833
    %v856 = vpack.c.b16 %v836, %v834
    %v857 = vpack.c.b16 %v839, %v837
    %v858 = vpack.c.b16 %v840, %v838
    %v859 = vpack.c.b16 %v843, %v841
    %v860 = vpack.c.b16 %v844, %v842
    %877 = vmatpush.bf16.msra.mxu0 %v859
    %878 = vmatpush.bf16.msra.mxu0 %v857
    %879 = vmatpush.bf16.msra.mxu0 %v855
    %880 = vmatpush.bf16.msra.mxu0 %v853
    %881 = vmatpush.bf16.msra.mxu0 %v851
    %882 = vmatpush.bf16.msra.mxu0 %v849
    %883 = vmatpush.bf16.msra.mxu0 %v847
    %884 = vmatpush.bf16.msra.mxu0 %v845
    %885 = vmatmul.bf16.gmra.mxu0 %v795
    %v886 = vpop.f32.mrf.mxu0
    %v887 = vadd.f32 0.0, %v886
    %v888 = vpop.f32.mrf.mxu0
    %889 = vdwg.mxu0
    %890 = vmatpush.bf16.msra.mxu0 %v860
    %891 = vmatpush.bf16.msra.mxu0 %v858
    %892 = vmatpush.bf16.msra.mxu0 %v856
    %893 = vmatpush.bf16.msra.mxu0 %v854
    %894 = vmatpush.bf16.msra.mxu0 %v852
    %895 = vmatpush.bf16.msra.mxu0 %v850
    %896 = vmatpush.bf16.msra.mxu0 %v848
    %897 = vmatpush.bf16.msra.mxu0 %v846
    %898 = vmatmul.bf16.gmra.mxu0 %v795
    %v899 = vpop.f32.mrf.mxu0
    %v900 = vadd.f32 0.0, %v899
    %v901 = vpop.f32.mrf.mxu0
    %902 = vdwg.mxu0
    %v903 = vrot.slane %v791, 7
    %v904 = vsel %vm793, %v903, %v790
    %v905 = vpack.c.b16 %v904, %v904
    %v923 = vunpack.c.l.b16 %v751
    %v924 = vunpack.c.h.b16 %v751
    %v925 = vunpack.c.l.b16 %v752
    %v926 = vunpack.c.h.b16 %v752
    %v927 = vunpack.c.l.b16 %v753
    %v928 = vunpack.c.h.b16 %v753
    %v929 = vunpack.c.l.b16 %v754
    %v930 = vunpack.c.h.b16 %v754
    %v931 = vunpack.c.l.b16 %v755
    %v932 = vunpack.c.h.b16 %v755
    %v933 = vunpack.c.l.b16 %v756
    %v934 = vunpack.c.h.b16 %v756
    %v935 = vunpack.c.l.b16 %v757
    %v936 = vunpack.c.h.b16 %v757
    %v937 = vunpack.c.l.b16 %v758
    %v938 = vunpack.c.h.b16 %v758
    %v939 = vunpack.c.l.b16 %v759
    %v940 = vunpack.c.h.b16 %v759
    %v941 = vunpack.c.l.b16 %v760
    %v942 = vunpack.c.h.b16 %v760
    %v943 = vunpack.c.l.b16 %v761
    %v944 = vunpack.c.h.b16 %v761
    %v945 = vunpack.c.l.b16 %v762
    %v946 = vunpack.c.h.b16 %v762
    %v947 = vunpack.c.l.b16 %v763
    %v948 = vunpack.c.h.b16 %v763
    %v949 = vunpack.c.l.b16 %v764
    %v950 = vunpack.c.h.b16 %v764
    %v951 = vunpack.c.l.b16 %v765
    %v952 = vunpack.c.h.b16 %v765
    %v953 = vunpack.c.l.b16 %v766
    %v954 = vunpack.c.h.b16 %v766
    %v955 = vpack.c.b16 %v925, %v923
    %v956 = vpack.c.b16 %v926, %v924
    %v957 = vpack.c.b16 %v929, %v927
    %v958 = vpack.c.b16 %v930, %v928
    %v959 = vpack.c.b16 %v933, %v931
    %v960 = vpack.c.b16 %v934, %v932
    %v961 = vpack.c.b16 %v937, %v935
    %v962 = vpack.c.b16 %v938, %v936
    %v963 = vpack.c.b16 %v941, %v939
    %v964 = vpack.c.b16 %v942, %v940
    %v965 = vpack.c.b16 %v945, %v943
    %v966 = vpack.c.b16 %v946, %v944
    %v967 = vpack.c.b16 %v949, %v947
    %v968 = vpack.c.b16 %v950, %v948
    %v969 = vpack.c.b16 %v953, %v951
    %v970 = vpack.c.b16 %v954, %v952
    %987 = vmatpush.bf16.msra.mxu0 %v969
    %988 = vmatpush.bf16.msra.mxu0 %v967
    %989 = vmatpush.bf16.msra.mxu0 %v965
    %990 = vmatpush.bf16.msra.mxu0 %v963
    %991 = vmatpush.bf16.msra.mxu0 %v961
    %992 = vmatpush.bf16.msra.mxu0 %v959
    %993 = vmatpush.bf16.msra.mxu0 %v957
    %994 = vmatpush.bf16.msra.mxu0 %v955
    %995 = vmatmul.bf16.gmra.mxu0 %v905
    %v996 = vpop.f32.mrf.mxu0
    %v997 = vadd.f32 %v887, %v996
    %v998 = vpop.f32.mrf.mxu0
    %999 = vdwg.mxu0
    %1000 = vmatpush.bf16.msra.mxu0 %v970
    %1001 = vmatpush.bf16.msra.mxu0 %v968
    %1002 = vmatpush.bf16.msra.mxu0 %v966
    %1003 = vmatpush.bf16.msra.mxu0 %v964
    %1004 = vmatpush.bf16.msra.mxu0 %v962
    %1005 = vmatpush.bf16.msra.mxu0 %v960
    %1006 = vmatpush.bf16.msra.mxu0 %v958
    %1007 = vmatpush.bf16.msra.mxu0 %v956
    %1008 = vmatmul.bf16.gmra.mxu0 %v905
    %v1009 = vpop.f32.mrf.mxu0
    %v1010 = vadd.f32 %v900, %v1009
    %v1011 = vpop.f32.mrf.mxu0
    %1012 = vdwg.mxu0
    %s1013 = scalar_lea.vmem [#allocation16], 256
    %v1014 = vld [vmem:[%s1013] sm:$0xff]
    %v1015 = vld [vmem:[%s1013 + $0x8] sm:$0xff]
    %v1016 = vld [vmem:[%s1013 + $0x10] sm:$0xff]
    %v1017 = vld [vmem:[%s1013 + $0x18] sm:$0xff]
    %v1018 = vld [vmem:[%s1013 + $0x20] sm:$0xff]
    %v1019 = vld [vmem:[%s1013 + $0x28] sm:$0xff]
    %v1020 = vld [vmem:[%s1013 + $0x30] sm:$0xff]
    %v1021 = vld [vmem:[%s1013 + $0x38] sm:$0xff]
    %v1022 = vld [vmem:[%s1013 + $0x40] sm:$0xff]
    %v1023 = vld [vmem:[%s1013 + $0x48] sm:$0xff]
    %v1024 = vld [vmem:[%s1013 + $0x50] sm:$0xff]
    %v1025 = vld [vmem:[%s1013 + $0x58] sm:$0xff]
    %v1026 = vld [vmem:[%s1013 + $0x60] sm:$0xff]
    %v1027 = vld [vmem:[%s1013 + $0x68] sm:$0xff]
    %v1028 = vld [vmem:[%s1013 + $0x70] sm:$0xff]
    %v1029 = vld [vmem:[%s1013 + $0x78] sm:$0xff]
    %v1030 = vrot.slane %v790, 2
    %v1031 = vrot.slane %v791, 1
    %v1032 = vsel %vm793, %v1031, %v1030
    %v1033 = vpack.c.b16 %v1032, %v1032
    %v1051 = vunpack.c.l.b16 %v1014
    %v1052 = vunpack.c.h.b16 %v1014
    %v1053 = vunpack.c.l.b16 %v1015
    %v1054 = vunpack.c.h.b16 %v1015
    %v1055 = vunpack.c.l.b16 %v1016
    %v1056 = vunpack.c.h.b16 %v1016
    %v1057 = vunpack.c.l.b16 %v1017
    %v1058 = vunpack.c.h.b16 %v1017
    %v1059 = vunpack.c.l.b16 %v1018
    %v1060 = vunpack.c.h.b16 %v1018
    %v1061 = vunpack.c.l.b16 %v1019
    %v1062 = vunpack.c.h.b16 %v1019
    %v1063 = vunpack.c.l.b16 %v1020
    %v1064 = vunpack.c.h.b16 %v1020
    %v1065 = vunpack.c.l.b16 %v1021
    %v1066 = vunpack.c.h.b16 %v1021
    %v1067 = vunpack.c.l.b16 %v1022
    %v1068 = vunpack.c.h.b16 %v1022
    %v1069 = vunpack.c.l.b16 %v1023
    %v1070 = vunpack.c.h.b16 %v1023
    %v1071 = vunpack.c.l.b16 %v1024
    %v1072 = vunpack.c.h.b16 %v1024
    %v1073 = vunpack.c.l.b16 %v1025
    %v1074 = vunpack.c.h.b16 %v1025
    %v1075 = vunpack.c.l.b16 %v1026
    %v1076 = vunpack.c.h.b16 %v1026
    %v1077 = vunpack.c.l.b16 %v1027
    %v1078 = vunpack.c.h.b16 %v1027
    %v1079 = vunpack.c.l.b16 %v1028
    %v1080 = vunpack.c.h.b16 %v1028
    %v1081 = vunpack.c.l.b16 %v1029
    %v1082 = vunpack.c.h.b16 %v1029
    %v1083 = vpack.c.b16 %v1053, %v1051
    %v1084 = vpack.c.b16 %v1054, %v1052
    %v1085 = vpack.c.b16 %v1057, %v1055
    %v1086 = vpack.c.b16 %v1058, %v1056
    %v1087 = vpack.c.b16 %v1061, %v1059
    %v1088 = vpack.c.b16 %v1062, %v1060
    %v1089 = vpack.c.b16 %v1065, %v1063
    %v1090 = vpack.c.b16 %v1066, %v1064
    %v1091 = vpack.c.b16 %v1069, %v1067
    %v1092 = vpack.c.b16 %v1070, %v1068
    %v1093 = vpack.c.b16 %v1073, %v1071
    %v1094 = vpack.c.b16 %v1074, %v1072
    %v1095 = vpack.c.b16 %v1077, %v1075
    %v1096 = vpack.c.b16 %v1078, %v1076
    %v1097 = vpack.c.b16 %v1081, %v1079
    %v1098 = vpack.c.b16 %v1082, %v1080
    %1115 = vmatpush.bf16.msra.mxu0 %v1097
    %1116 = vmatpush.bf16.msra.mxu0 %v1095
    %1117 = vmatpush.bf16.msra.mxu0 %v1093
    %1118 = vmatpush.bf16.msra.mxu0 %v1091
    %1119 = vmatpush.bf16.msra.mxu0 %v1089
    %1120 = vmatpush.bf16.msra.mxu0 %v1087
    %1121 = vmatpush.bf16.msra.mxu0 %v1085
    %1122 = vmatpush.bf16.msra.mxu0 %v1083
    %1123 = vmatmul.bf16.gmra.mxu0 %v1033
    %v1124 = vpop.f32.mrf.mxu0
    %v1125 = vadd.f32 0.0, %v1124
    %v1126 = vpop.f32.mrf.mxu0
    %1127 = vdwg.mxu0
    %1128 = vmatpush.bf16.msra.mxu0 %v1098
    %1129 = vmatpush.bf16.msra.mxu0 %v1096
    %1130 = vmatpush.bf16.msra.mxu0 %v1094
    %1131 = vmatpush.bf16.msra.mxu0 %v1092
    %1132 = vmatpush.bf16.msra.mxu0 %v1090
    %1133 = vmatpush.bf16.msra.mxu0 %v1088
    %1134 = vmatpush.bf16.msra.mxu0 %v1086
    %1135 = vmatpush.bf16.msra.mxu0 %v1084
    %1136 = vmatmul.bf16.gmra.mxu0 %v1033
    %v1137 = vpop.f32.mrf.mxu0
    %v1138 = vadd.f32 0.0, %v1137
    %v1139 = vpop.f32.mrf.mxu0
    %1140 = vdwg.mxu0
    %v1141 = vadd.f32 %v997, %v1125
    %v1142 = vadd.f32 %v1010, %v1138
    %s1143 = scalar_lea.vmem [#allocation16], 384
    %v1144 = vld [vmem:[%s1143] sm:$0xff]
    %v1145 = vld [vmem:[%s1143 + $0x8] sm:$0xff]
    %v1146 = vld [vmem:[%s1143 + $0x10] sm:$0xff]
    %v1147 = vld [vmem:[%s1143 + $0x18] sm:$0xff]
    %v1148 = vld [vmem:[%s1143 + $0x20] sm:$0xff]
    %v1149 = vld [vmem:[%s1143 + $0x28] sm:$0xff]
    %v1150 = vld [vmem:[%s1143 + $0x30] sm:$0xff]
    %v1151 = vld [vmem:[%s1143 + $0x38] sm:$0xff]
    %v1152 = vld [vmem:[%s1143 + $0x40] sm:$0xff]
    %v1153 = vld [vmem:[%s1143 + $0x48] sm:$0xff]
    %v1154 = vld [vmem:[%s1143 + $0x50] sm:$0xff]
    %v1155 = vld [vmem:[%s1143 + $0x58] sm:$0xff]
    %v1156 = vld [vmem:[%s1143 + $0x60] sm:$0xff]
    %v1157 = vld [vmem:[%s1143 + $0x68] sm:$0xff]
    %v1158 = vld [vmem:[%s1143 + $0x70] sm:$0xff]
    %v1159 = vld [vmem:[%s1143 + $0x78] sm:$0xff]
    %v1160 = vrot.slane %v790, 3
    %v1161 = vrot.slane %v791, 2
    %v1162 = vsel %vm793, %v1161, %v1160
    %v1163 = vpack.c.b16 %v1162, %v1162
    %v1181 = vunpack.c.l.b16 %v1144
    %v1182 = vunpack.c.h.b16 %v1144
    %v1183 = vunpack.c.l.b16 %v1145
    %v1184 = vunpack.c.h.b16 %v1145
    %v1185 = vunpack.c.l.b16 %v1146
    %v1186 = vunpack.c.h.b16 %v1146
    %v1187 = vunpack.c.l.b16 %v1147
    %v1188 = vunpack.c.h.b16 %v1147
    %v1189 = vunpack.c.l.b16 %v1148
    %v1190 = vunpack.c.h.b16 %v1148
    %v1191 = vunpack.c.l.b16 %v1149
    %v1192 = vunpack.c.h.b16 %v1149
    %v1193 = vunpack.c.l.b16 %v1150
    %v1194 = vunpack.c.h.b16 %v1150
    %v1195 = vunpack.c.l.b16 %v1151
    %v1196 = vunpack.c.h.b16 %v1151
    %v1197 = vunpack.c.l.b16 %v1152
    %v1198 = vunpack.c.h.b16 %v1152
    %v1199 = vunpack.c.l.b16 %v1153
    %v1200 = vunpack.c.h.b16 %v1153
    %v1201 = vunpack.c.l.b16 %v1154
    %v1202 = vunpack.c.h.b16 %v1154
    %v1203 = vunpack.c.l.b16 %v1155
    %v1204 = vunpack.c.h.b16 %v1155
    %v1205 = vunpack.c.l.b16 %v1156
    %v1206 = vunpack.c.h.b16 %v1156
    %v1207 = vunpack.c.l.b16 %v1157
    %v1208 = vunpack.c.h.b16 %v1157
    %v1209 = vunpack.c.l.b16 %v1158
    %v1210 = vunpack.c.h.b16 %v1158
    %v1211 = vunpack.c.l.b16 %v1159
    %v1212 = vunpack.c.h.b16 %v1159
    %v1213 = vpack.c.b16 %v1183, %v1181
    %v1214 = vpack.c.b16 %v1184, %v1182
    %v1215 = vpack.c.b16 %v1187, %v1185
    %v1216 = vpack.c.b16 %v1188, %v1186
    %v1217 = vpack.c.b16 %v1191, %v1189
    %v1218 = vpack.c.b16 %v1192, %v1190
    %v1219 = vpack.c.b16 %v1195, %v1193
    %v1220 = vpack.c.b16 %v1196, %v1194
    %v1221 = vpack.c.b16 %v1199, %v1197
    %v1222 = vpack.c.b16 %v1200, %v1198
    %v1223 = vpack.c.b16 %v1203, %v1201
    %v1224 = vpack.c.b16 %v1204, %v1202
    %v1225 = vpack.c.b16 %v1207, %v1205
    %v1226 = vpack.c.b16 %v1208, %v1206
    %v1227 = vpack.c.b16 %v1211, %v1209
    %v1228 = vpack.c.b16 %v1212, %v1210
    %1245 = vmatpush.bf16.msra.mxu0 %v1227
    %1246 = vmatpush.bf16.msra.mxu0 %v1225
    %1247 = vmatpush.bf16.msra.mxu0 %v1223
    %1248 = vmatpush.bf16.msra.mxu0 %v1221
    %1249 = vmatpush.bf16.msra.mxu0 %v1219
    %1250 = vmatpush.bf16.msra.mxu0 %v1217
    %1251 = vmatpush.bf16.msra.mxu0 %v1215
    %1252 = vmatpush.bf16.msra.mxu0 %v1213
    %1253 = vmatmul.bf16.gmra.mxu0 %v1163
    %v1254 = vpop.f32.mrf.mxu0
    %v1255 = vadd.f32 0.0, %v1254
    %v1256 = vpop.f32.mrf.mxu0
    %1257 = vdwg.mxu0
    %1258 = vmatpush.bf16.msra.mxu0 %v1228
    %1259 = vmatpush.bf16.msra.mxu0 %v1226
    %1260 = vmatpush.bf16.msra.mxu0 %v1224
    %1261 = vmatpush.bf16.msra.mxu0 %v1222
    %1262 = vmatpush.bf16.msra.mxu0 %v1220
    %1263 = vmatpush.bf16.msra.mxu0 %v1218
    %1264 = vmatpush.bf16.msra.mxu0 %v1216
    %1265 = vmatpush.bf16.msra.mxu0 %v1214
    %1266 = vmatmul.bf16.gmra.mxu0 %v1163
    %v1267 = vpop.f32.mrf.mxu0
    %v1268 = vadd.f32 0.0, %v1267
    %v1269 = vpop.f32.mrf.mxu0
    %1270 = vdwg.mxu0
    %v1271 = vadd.f32 %v1141, %v1255
    %v1272 = vadd.f32 %v1142, %v1268
    %s1273 = scalar_lea.vmem [#allocation16], 512
    %v1274 = vld [vmem:[%s1273] sm:$0xff]
    %v1275 = vld [vmem:[%s1273 + $0x8] sm:$0xff]
    %v1276 = vld [vmem:[%s1273 + $0x10] sm:$0xff]
    %v1277 = vld [vmem:[%s1273 + $0x18] sm:$0xff]
    %v1278 = vld [vmem:[%s1273 + $0x20] sm:$0xff]
    %v1279 = vld [vmem:[%s1273 + $0x28] sm:$0xff]
    %v1280 = vld [vmem:[%s1273 + $0x30] sm:$0xff]
    %v1281 = vld [vmem:[%s1273 + $0x38] sm:$0xff]
    %v1282 = vld [vmem:[%s1273 + $0x40] sm:$0xff]
    %v1283 = vld [vmem:[%s1273 + $0x48] sm:$0xff]
    %v1284 = vld [vmem:[%s1273 + $0x50] sm:$0xff]
    %v1285 = vld [vmem:[%s1273 + $0x58] sm:$0xff]
    %v1286 = vld [vmem:[%s1273 + $0x60] sm:$0xff]
    %v1287 = vld [vmem:[%s1273 + $0x68] sm:$0xff]
    %v1288 = vld [vmem:[%s1273 + $0x70] sm:$0xff]
    %v1289 = vld [vmem:[%s1273 + $0x78] sm:$0xff]
    %v1290 = vrot.slane %v790, 4
    %v1291 = vrot.slane %v791, 3
    %v1292 = vsel %vm793, %v1291, %v1290
    %v1293 = vpack.c.b16 %v1292, %v1292
    %v1311 = vunpack.c.l.b16 %v1274
    %v1312 = vunpack.c.h.b16 %v1274
    %v1313 = vunpack.c.l.b16 %v1275
    %v1314 = vunpack.c.h.b16 %v1275
    %v1315 = vunpack.c.l.b16 %v1276
    %v1316 = vunpack.c.h.b16 %v1276
    %v1317 = vunpack.c.l.b16 %v1277
    %v1318 = vunpack.c.h.b16 %v1277
    %v1319 = vunpack.c.l.b16 %v1278
    %v1320 = vunpack.c.h.b16 %v1278
    %v1321 = vunpack.c.l.b16 %v1279
    %v1322 = vunpack.c.h.b16 %v1279
    %v1323 = vunpack.c.l.b16 %v1280
    %v1324 = vunpack.c.h.b16 %v1280
    %v1325 = vunpack.c.l.b16 %v1281
    %v1326 = vunpack.c.h.b16 %v1281
    %v1327 = vunpack.c.l.b16 %v1282
    %v1328 = vunpack.c.h.b16 %v1282
    %v1329 = vunpack.c.l.b16 %v1283
    %v1330 = vunpack.c.h.b16 %v1283
    %v1331 = vunpack.c.l.b16 %v1284
    %v1332 = vunpack.c.h.b16 %v1284
    %v1333 = vunpack.c.l.b16 %v1285
    %v1334 = vunpack.c.h.b16 %v1285
    %v1335 = vunpack.c.l.b16 %v1286
    %v1336 = vunpack.c.h.b16 %v1286
    %v1337 = vunpack.c.l.b16 %v1287
    %v1338 = vunpack.c.h.b16 %v1287
    %v1339 = vunpack.c.l.b16 %v1288
    %v1340 = vunpack.c.h.b16 %v1288
    %v1341 = vunpack.c.l.b16 %v1289
    %v1342 = vunpack.c.h.b16 %v1289
    %v1343 = vpack.c.b16 %v1313, %v1311
    %v1344 = vpack.c.b16 %v1314, %v1312
    %v1345 = vpack.c.b16 %v1317, %v1315
    %v1346 = vpack.c.b16 %v1318, %v1316
    %v1347 = vpack.c.b16 %v1321, %v1319
    %v1348 = vpack.c.b16 %v1322, %v1320
    %v1349 = vpack.c.b16 %v1325, %v1323
    %v1350 = vpack.c.b16 %v1326, %v1324
    %v1351 = vpack.c.b16 %v1329, %v1327
    %v1352 = vpack.c.b16 %v1330, %v1328
    %v1353 = vpack.c.b16 %v1333, %v1331
    %v1354 = vpack.c.b16 %v1334, %v1332
    %v1355 = vpack.c.b16 %v1337, %v1335
    %v1356 = vpack.c.b16 %v1338, %v1336
    %v1357 = vpack.c.b16 %v1341, %v1339
    %v1358 = vpack.c.b16 %v1342, %v1340
    %1375 = vmatpush.bf16.msra.mxu0 %v1357
    %1376 = vmatpush.bf16.msra.mxu0 %v1355
    %1377 = vmatpush.bf16.msra.mxu0 %v1353
    %1378 = vmatpush.bf16.msra.mxu0 %v1351
    %1379 = vmatpush.bf16.msra.mxu0 %v1349
    %1380 = vmatpush.bf16.msra.mxu0 %v1347
    %1381 = vmatpush.bf16.msra.mxu0 %v1345
    %1382 = vmatpush.bf16.msra.mxu0 %v1343
    %1383 = vmatmul.bf16.gmra.mxu0 %v1293
    %v1384 = vpop.f32.mrf.mxu0
    %v1385 = vadd.f32 0.0, %v1384
    %v1386 = vpop.f32.mrf.mxu0
    %1387 = vdwg.mxu0
    %1388 = vmatpush.bf16.msra.mxu0 %v1358
    %1389 = vmatpush.bf16.msra.mxu0 %v1356
    %1390 = vmatpush.bf16.msra.mxu0 %v1354
    %1391 = vmatpush.bf16.msra.mxu0 %v1352
    %1392 = vmatpush.bf16.msra.mxu0 %v1350
    %1393 = vmatpush.bf16.msra.mxu0 %v1348
    %1394 = vmatpush.bf16.msra.mxu0 %v1346
    %1395 = vmatpush.bf16.msra.mxu0 %v1344
    %1396 = vmatmul.bf16.gmra.mxu0 %v1293
    %v1397 = vpop.f32.mrf.mxu0
    %v1398 = vadd.f32 0.0, %v1397
    %v1399 = vpop.f32.mrf.mxu0
    %1400 = vdwg.mxu0
    %v1401 = vadd.f32 %v1271, %v1385
    %v1402 = vadd.f32 %v1272, %v1398
    %s1403 = scalar_lea.vmem [#allocation16], 640
    %v1404 = vld [vmem:[%s1403] sm:$0xff]
    %v1405 = vld [vmem:[%s1403 + $0x8] sm:$0xff]
    %v1406 = vld [vmem:[%s1403 + $0x10] sm:$0xff]
    %v1407 = vld [vmem:[%s1403 + $0x18] sm:$0xff]
    %v1408 = vld [vmem:[%s1403 + $0x20] sm:$0xff]
    %v1409 = vld [vmem:[%s1403 + $0x28] sm:$0xff]
    %v1410 = vld [vmem:[%s1403 + $0x30] sm:$0xff]
    %v1411 = vld [vmem:[%s1403 + $0x38] sm:$0xff]
    %v1412 = vld [vmem:[%s1403 + $0x40] sm:$0xff]
    %v1413 = vld [vmem:[%s1403 + $0x48] sm:$0xff]
    %v1414 = vld [vmem:[%s1403 + $0x50] sm:$0xff]
    %v1415 = vld [vmem:[%s1403 + $0x58] sm:$0xff]
    %v1416 = vld [vmem:[%s1403 + $0x60] sm:$0xff]
    %v1417 = vld [vmem:[%s1403 + $0x68] sm:$0xff]
    %v1418 = vld [vmem:[%s1403 + $0x70] sm:$0xff]
    %v1419 = vld [vmem:[%s1403 + $0x78] sm:$0xff]
    %v1420 = vrot.slane %v790, 5
    %v1421 = vrot.slane %v791, 4
    %v1422 = vsel %vm793, %v1421, %v1420
    %v1423 = vpack.c.b16 %v1422, %v1422
    %v1441 = vunpack.c.l.b16 %v1404
    %v1442 = vunpack.c.h.b16 %v1404
    %v1443 = vunpack.c.l.b16 %v1405
    %v1444 = vunpack.c.h.b16 %v1405
    %v1445 = vunpack.c.l.b16 %v1406
    %v1446 = vunpack.c.h.b16 %v1406
    %v1447 = vunpack.c.l.b16 %v1407
    %v1448 = vunpack.c.h.b16 %v1407
    %v1449 = vunpack.c.l.b16 %v1408
    %v1450 = vunpack.c.h.b16 %v1408
    %v1451 = vunpack.c.l.b16 %v1409
    %v1452 = vunpack.c.h.b16 %v1409
    %v1453 = vunpack.c.l.b16 %v1410
    %v1454 = vunpack.c.h.b16 %v1410
    %v1455 = vunpack.c.l.b16 %v1411
    %v1456 = vunpack.c.h.b16 %v1411
    %v1457 = vunpack.c.l.b16 %v1412
    %v1458 = vunpack.c.h.b16 %v1412
    %v1459 = vunpack.c.l.b16 %v1413
    %v1460 = vunpack.c.h.b16 %v1413
    %v1461 = vunpack.c.l.b16 %v1414
    %v1462 = vunpack.c.h.b16 %v1414
    %v1463 = vunpack.c.l.b16 %v1415
    %v1464 = vunpack.c.h.b16 %v1415
    %v1465 = vunpack.c.l.b16 %v1416
    %v1466 = vunpack.c.h.b16 %v1416
    %v1467 = vunpack.c.l.b16 %v1417
    %v1468 = vunpack.c.h.b16 %v1417
    %v1469 = vunpack.c.l.b16 %v1418
    %v1470 = vunpack.c.h.b16 %v1418
    %v1471 = vunpack.c.l.b16 %v1419
    %v1472 = vunpack.c.h.b16 %v1419
    %v1473 = vpack.c.b16 %v1443, %v1441
    %v1474 = vpack.c.b16 %v1444, %v1442
    %v1475 = vpack.c.b16 %v1447, %v1445
    %v1476 = vpack.c.b16 %v1448, %v1446
    %v1477 = vpack.c.b16 %v1451, %v1449
    %v1478 = vpack.c.b16 %v1452, %v1450
    %v1479 = vpack.c.b16 %v1455, %v1453
    %v1480 = vpack.c.b16 %v1456, %v1454
    %v1481 = vpack.c.b16 %v1459, %v1457
    %v1482 = vpack.c.b16 %v1460, %v1458
    %v1483 = vpack.c.b16 %v1463, %v1461
    %v1484 = vpack.c.b16 %v1464, %v1462
    %v1485 = vpack.c.b16 %v1467, %v1465
    %v1486 = vpack.c.b16 %v1468, %v1466
    %v1487 = vpack.c.b16 %v1471, %v1469
    %v1488 = vpack.c.b16 %v1472, %v1470
    %1505 = vmatpush.bf16.msra.mxu0 %v1487
    %1506 = vmatpush.bf16.msra.mxu0 %v1485
    %1507 = vmatpush.bf16.msra.mxu0 %v1483
    %1508 = vmatpush.bf16.msra.mxu0 %v1481
    %1509 = vmatpush.bf16.msra.mxu0 %v1479
    %1510 = vmatpush.bf16.msra.mxu0 %v1477
    %1511 = vmatpush.bf16.msra.mxu0 %v1475
    %1512 = vmatpush.bf16.msra.mxu0 %v1473
    %1513 = vmatmul.bf16.gmra.mxu0 %v1423
    %v1514 = vpop.f32.mrf.mxu0
    %v1515 = vadd.f32 0.0, %v1514
    %v1516 = vpop.f32.mrf.mxu0
    %1517 = vdwg.mxu0
    %1518 = vmatpush.bf16.msra.mxu0 %v1488
    %1519 = vmatpush.bf16.msra.mxu0 %v1486
    %1520 = vmatpush.bf16.msra.mxu0 %v1484
    %1521 = vmatpush.bf16.msra.mxu0 %v1482
    %1522 = vmatpush.bf16.msra.mxu0 %v1480
    %1523 = vmatpush.bf16.msra.mxu0 %v1478
    %1524 = vmatpush.bf16.msra.mxu0 %v1476
    %1525 = vmatpush.bf16.msra.mxu0 %v1474
    %1526 = vmatmul.bf16.gmra.mxu0 %v1423
    %v1527 = vpop.f32.mrf.mxu0
    %v1528 = vadd.f32 0.0, %v1527
    %v1529 = vpop.f32.mrf.mxu0
    %1530 = vdwg.mxu0
    %v1531 = vadd.f32 %v1401, %v1515
    %v1532 = vadd.f32 %v1402, %v1528
    %s1533 = scalar_lea.vmem [#allocation16], 768
    %v1534 = vld [vmem:[%s1533] sm:$0xff]
    %v1535 = vld [vmem:[%s1533 + $0x8] sm:$0xff]
    %v1536 = vld [vmem:[%s1533 + $0x10] sm:$0xff]
    %v1537 = vld [vmem:[%s1533 + $0x18] sm:$0xff]
    %v1538 = vld [vmem:[%s1533 + $0x20] sm:$0xff]
    %v1539 = vld [vmem:[%s1533 + $0x28] sm:$0xff]
    %v1540 = vld [vmem:[%s1533 + $0x30] sm:$0xff]
    %v1541 = vld [vmem:[%s1533 + $0x38] sm:$0xff]
    %v1542 = vld [vmem:[%s1533 + $0x40] sm:$0xff]
    %v1543 = vld [vmem:[%s1533 + $0x48] sm:$0xff]
    %v1544 = vld [vmem:[%s1533 + $0x50] sm:$0xff]
    %v1545 = vld [vmem:[%s1533 + $0x58] sm:$0xff]
    %v1546 = vld [vmem:[%s1533 + $0x60] sm:$0xff]
    %v1547 = vld [vmem:[%s1533 + $0x68] sm:$0xff]
    %v1548 = vld [vmem:[%s1533 + $0x70] sm:$0xff]
    %v1549 = vld [vmem:[%s1533 + $0x78] sm:$0xff]
    %v1550 = vrot.slane %v790, 6
    %v1551 = vrot.slane %v791, 5
    %v1552 = vsel %vm793, %v1551, %v1550
    %v1553 = vpack.c.b16 %v1552, %v1552
    %v1571 = vunpack.c.l.b16 %v1534
    %v1572 = vunpack.c.h.b16 %v1534
    %v1573 = vunpack.c.l.b16 %v1535
    %v1574 = vunpack.c.h.b16 %v1535
    %v1575 = vunpack.c.l.b16 %v1536
    %v1576 = vunpack.c.h.b16 %v1536
    %v1577 = vunpack.c.l.b16 %v1537
    %v1578 = vunpack.c.h.b16 %v1537
    %v1579 = vunpack.c.l.b16 %v1538
    %v1580 = vunpack.c.h.b16 %v1538
    %v1581 = vunpack.c.l.b16 %v1539
    %v1582 = vunpack.c.h.b16 %v1539
    %v1583 = vunpack.c.l.b16 %v1540
    %v1584 = vunpack.c.h.b16 %v1540
    %v1585 = vunpack.c.l.b16 %v1541
    %v1586 = vunpack.c.h.b16 %v1541
    %v1587 = vunpack.c.l.b16 %v1542
    %v1588 = vunpack.c.h.b16 %v1542
    %v1589 = vunpack.c.l.b16 %v1543
    %v1590 = vunpack.c.h.b16 %v1543
    %v1591 = vunpack.c.l.b16 %v1544
    %v1592 = vunpack.c.h.b16 %v1544
    %v1593 = vunpack.c.l.b16 %v1545
    %v1594 = vunpack.c.h.b16 %v1545
    %v1595 = vunpack.c.l.b16 %v1546
    %v1596 = vunpack.c.h.b16 %v1546
    %v1597 = vunpack.c.l.b16 %v1547
    %v1598 = vunpack.c.h.b16 %v1547
    %v1599 = vunpack.c.l.b16 %v1548
    %v1600 = vunpack.c.h.b16 %v1548
    %v1601 = vunpack.c.l.b16 %v1549
    %v1602 = vunpack.c.h.b16 %v1549
    %v1603 = vpack.c.b16 %v1573, %v1571
    %v1604 = vpack.c.b16 %v1574, %v1572
    %v1605 = vpack.c.b16 %v1577, %v1575
    %v1606 = vpack.c.b16 %v1578, %v1576
    %v1607 = vpack.c.b16 %v1581, %v1579
    %v1608 = vpack.c.b16 %v1582, %v1580
    %v1609 = vpack.c.b16 %v1585, %v1583
    %v1610 = vpack.c.b16 %v1586, %v1584
    %v1611 = vpack.c.b16 %v1589, %v1587
    %v1612 = vpack.c.b16 %v1590, %v1588
    %v1613 = vpack.c.b16 %v1593, %v1591
    %v1614 = vpack.c.b16 %v1594, %v1592
    %v1615 = vpack.c.b16 %v1597, %v1595
    %v1616 = vpack.c.b16 %v1598, %v1596
    %v1617 = vpack.c.b16 %v1601, %v1599
    %v1618 = vpack.c.b16 %v1602, %v1600
    %1635 = vmatpush.bf16.msra.mxu0 %v1617
    %1636 = vmatpush.bf16.msra.mxu0 %v1615
    %1637 = vmatpush.bf16.msra.mxu0 %v1613
    %1638 = vmatpush.bf16.msra.mxu0 %v1611
    %1639 = vmatpush.bf16.msra.mxu0 %v1609
    %1640 = vmatpush.bf16.msra.mxu0 %v1607
    %1641 = vmatpush.bf16.msra.mxu0 %v1605
    %1642 = vmatpush.bf16.msra.mxu0 %v1603
    %1643 = vmatmul.bf16.gmra.mxu0 %v1553
    %v1644 = vpop.f32.mrf.mxu0
    %v1645 = vadd.f32 0.0, %v1644
    %v1646 = vpop.f32.mrf.mxu0
    %1647 = vdwg.mxu0
    %1648 = vmatpush.bf16.msra.mxu0 %v1618
    %1649 = vmatpush.bf16.msra.mxu0 %v1616
    %1650 = vmatpush.bf16.msra.mxu0 %v1614
    %1651 = vmatpush.bf16.msra.mxu0 %v1612
    %1652 = vmatpush.bf16.msra.mxu0 %v1610
    %1653 = vmatpush.bf16.msra.mxu0 %v1608
    %1654 = vmatpush.bf16.msra.mxu0 %v1606
    %1655 = vmatpush.bf16.msra.mxu0 %v1604
    %1656 = vmatmul.bf16.gmra.mxu0 %v1553
    %v1657 = vpop.f32.mrf.mxu0
    %v1658 = vadd.f32 0.0, %v1657
    %v1659 = vpop.f32.mrf.mxu0
    %1660 = vdwg.mxu0
    %v1661 = vadd.f32 %v1531, %v1645
    %v1662 = vadd.f32 %v1532, %v1658
    %s1663 = scalar_lea.vmem [#allocation16], 896
    %v1664 = vld [vmem:[%s1663] sm:$0xff]
    %v1665 = vld [vmem:[%s1663 + $0x8] sm:$0xff]
    %v1666 = vld [vmem:[%s1663 + $0x10] sm:$0xff]
    %v1667 = vld [vmem:[%s1663 + $0x18] sm:$0xff]
    %v1668 = vld [vmem:[%s1663 + $0x20] sm:$0xff]
    %v1669 = vld [vmem:[%s1663 + $0x28] sm:$0xff]
    %v1670 = vld [vmem:[%s1663 + $0x30] sm:$0xff]
    %v1671 = vld [vmem:[%s1663 + $0x38] sm:$0xff]
    %v1672 = vld [vmem:[%s1663 + $0x40] sm:$0xff]
    %v1673 = vld [vmem:[%s1663 + $0x48] sm:$0xff]
    %v1674 = vld [vmem:[%s1663 + $0x50] sm:$0xff]
    %v1675 = vld [vmem:[%s1663 + $0x58] sm:$0xff]
    %v1676 = vld [vmem:[%s1663 + $0x60] sm:$0xff]
    %v1677 = vld [vmem:[%s1663 + $0x68] sm:$0xff]
    %v1678 = vld [vmem:[%s1663 + $0x70] sm:$0xff]
    %v1679 = vld [vmem:[%s1663 + $0x78] sm:$0xff]
    %v1680 = vrot.slane %v790, 7
    %v1681 = vrot.slane %v791, 6
    %v1682 = vsel %vm793, %v1681, %v1680
    %v1683 = vpack.c.b16 %v1682, %v1682
    %v1701 = vunpack.c.l.b16 %v1664
    %v1702 = vunpack.c.h.b16 %v1664
    %v1703 = vunpack.c.l.b16 %v1665
    %v1704 = vunpack.c.h.b16 %v1665
    %v1705 = vunpack.c.l.b16 %v1666
    %v1706 = vunpack.c.h.b16 %v1666
    %v1707 = vunpack.c.l.b16 %v1667
    %v1708 = vunpack.c.h.b16 %v1667
    %v1709 = vunpack.c.l.b16 %v1668
    %v1710 = vunpack.c.h.b16 %v1668
    %v1711 = vunpack.c.l.b16 %v1669
    %v1712 = vunpack.c.h.b16 %v1669
    %v1713 = vunpack.c.l.b16 %v1670
    %v1714 = vunpack.c.h.b16 %v1670
    %v1715 = vunpack.c.l.b16 %v1671
    %v1716 = vunpack.c.h.b16 %v1671
    %v1717 = vunpack.c.l.b16 %v1672
    %v1718 = vunpack.c.h.b16 %v1672
    %v1719 = vunpack.c.l.b16 %v1673
    %v1720 = vunpack.c.h.b16 %v1673
    %v1721 = vunpack.c.l.b16 %v1674
    %v1722 = vunpack.c.h.b16 %v1674
    %v1723 = vunpack.c.l.b16 %v1675
    %v1724 = vunpack.c.h.b16 %v1675
    %v1725 = vunpack.c.l.b16 %v1676
    %v1726 = vunpack.c.h.b16 %v1676
    %v1727 = vunpack.c.l.b16 %v1677
    %v1728 = vunpack.c.h.b16 %v1677
    %v1729 = vunpack.c.l.b16 %v1678
    %v1730 = vunpack.c.h.b16 %v1678
    %v1731 = vunpack.c.l.b16 %v1679
    %v1732 = vunpack.c.h.b16 %v1679
    %v1733 = vpack.c.b16 %v1703, %v1701
    %v1734 = vpack.c.b16 %v1704, %v1702
    %v1735 = vpack.c.b16 %v1707, %v1705
    %v1736 = vpack.c.b16 %v1708, %v1706
    %v1737 = vpack.c.b16 %v1711, %v1709
    %v1738 = vpack.c.b16 %v1712, %v1710
    %v1739 = vpack.c.b16 %v1715, %v1713
    %v1740 = vpack.c.b16 %v1716, %v1714
    %v1741 = vpack.c.b16 %v1719, %v1717
    %v1742 = vpack.c.b16 %v1720, %v1718
    %v1743 = vpack.c.b16 %v1723, %v1721
    %v1744 = vpack.c.b16 %v1724, %v1722
    %v1745 = vpack.c.b16 %v1727, %v1725
    %v1746 = vpack.c.b16 %v1728, %v1726
    %v1747 = vpack.c.b16 %v1731, %v1729
    %v1748 = vpack.c.b16 %v1732, %v1730
    %1765 = vmatpush.bf16.msra.mxu0 %v1747
    %1766 = vmatpush.bf16.msra.mxu0 %v1745
    %1767 = vmatpush.bf16.msra.mxu0 %v1743
    %1768 = vmatpush.bf16.msra.mxu0 %v1741
    %1769 = vmatpush.bf16.msra.mxu0 %v1739
    %1770 = vmatpush.bf16.msra.mxu0 %v1737
    %1771 = vmatpush.bf16.msra.mxu0 %v1735
    %1772 = vmatpush.bf16.msra.mxu0 %v1733
    %1773 = vmatmul.bf16.gmra.mxu0 %v1683
    %v1774 = vpop.f32.mrf.mxu0
    %v1775 = vadd.f32 0.0, %v1774
    %v1776 = vpop.f32.mrf.mxu0
    %1777 = vdwg.mxu0
    %1778 = vmatpush.bf16.msra.mxu0 %v1748
    %1779 = vmatpush.bf16.msra.mxu0 %v1746
    %1780 = vmatpush.bf16.msra.mxu0 %v1744
    %1781 = vmatpush.bf16.msra.mxu0 %v1742
    %1782 = vmatpush.bf16.msra.mxu0 %v1740
    %1783 = vmatpush.bf16.msra.mxu0 %v1738
    %1784 = vmatpush.bf16.msra.mxu0 %v1736
    %1785 = vmatpush.bf16.msra.mxu0 %v1734
    %1786 = vmatmul.bf16.gmra.mxu0 %v1683
    %v1787 = vpop.f32.mrf.mxu0
    %v1788 = vadd.f32 0.0, %v1787
    %v1789 = vpop.f32.mrf.mxu0
    %1790 = vdwg.mxu0
    %v1791 = vadd.f32 %v1661, %v1775
    %v1792 = vadd.f32 %v1662, %v1788
    %s1793 = scalar_lea.vmem [#allocation16], 1024
    %v1794 = vld [vmem:[%s1793] sm:$0xff]
    %v1795 = vld [vmem:[%s1793 + $0x8] sm:$0xff]
    %v1796 = vld [vmem:[%s1793 + $0x10] sm:$0xff]
    %v1797 = vld [vmem:[%s1793 + $0x18] sm:$0xff]
    %v1798 = vld [vmem:[%s1793 + $0x20] sm:$0xff]
    %v1799 = vld [vmem:[%s1793 + $0x28] sm:$0xff]
    %v1800 = vld [vmem:[%s1793 + $0x30] sm:$0xff]
    %v1801 = vld [vmem:[%s1793 + $0x38] sm:$0xff]
    %v1802 = vld [vmem:[%s1793 + $0x40] sm:$0xff]
    %v1803 = vld [vmem:[%s1793 + $0x48] sm:$0xff]
    %v1804 = vld [vmem:[%s1793 + $0x50] sm:$0xff]
    %v1805 = vld [vmem:[%s1793 + $0x58] sm:$0xff]
    %v1806 = vld [vmem:[%s1793 + $0x60] sm:$0xff]
    %v1807 = vld [vmem:[%s1793 + $0x68] sm:$0xff]
    %v1808 = vld [vmem:[%s1793 + $0x70] sm:$0xff]
    %v1809 = vld [vmem:[%s1793 + $0x78] sm:$0xff]
    %v1812 = vunpack.c.l.b16 %v748
    %v1813 = vunpack.c.l.b16 %v750
    %v1814 = vpack.c.b16 %v1812, %v1812
    %v1815 = vpack.c.b16 %v1813, %v1813
    %v1816 = vunpack.c.l.b16 %v1814
    %v1817 = vunpack.c.l.b16 %v1815
    %v1818 = vrot.slane %v1817, 7
    %v1819 = vsel %vm793, %v1818, %v1816
    %v1820 = vpack.c.b16 %v1819, %v1819
    %v1838 = vunpack.c.l.b16 %v1794
    %v1839 = vunpack.c.h.b16 %v1794
    %v1840 = vunpack.c.l.b16 %v1795
    %v1841 = vunpack.c.h.b16 %v1795
    %v1842 = vunpack.c.l.b16 %v1796
    %v1843 = vunpack.c.h.b16 %v1796
    %v1844 = vunpack.c.l.b16 %v1797
    %v1845 = vunpack.c.h.b16 %v1797
    %v1846 = vunpack.c.l.b16 %v1798
    %v1847 = vunpack.c.h.b16 %v1798
    %v1848 = vunpack.c.l.b16 %v1799
    %v1849 = vunpack.c.h.b16 %v1799
    %v1850 = vunpack.c.l.b16 %v1800
    %v1851 = vunpack.c.h.b16 %v1800
    %v1852 = vunpack.c.l.b16 %v1801
    %v1853 = vunpack.c.h.b16 %v1801
    %v1854 = vunpack.c.l.b16 %v1802
    %v1855 = vunpack.c.h.b16 %v1802
    %v1856 = vunpack.c.l.b16 %v1803
    %v1857 = vunpack.c.h.b16 %v1803
    %v1858 = vunpack.c.l.b16 %v1804
    %v1859 = vunpack.c.h.b16 %v1804
    %v1860 = vunpack.c.l.b16 %v1805
    %v1861 = vunpack.c.h.b16 %v1805
    %v1862 = vunpack.c.l.b16 %v1806
    %v1863 = vunpack.c.h.b16 %v1806
    %v1864 = vunpack.c.l.b16 %v1807
    %v1865 = vunpack.c.h.b16 %v1807
    %v1866 = vunpack.c.l.b16 %v1808
    %v1867 = vunpack.c.h.b16 %v1808
    %v1868 = vunpack.c.l.b16 %v1809
    %v1869 = vunpack.c.h.b16 %v1809
    %v1870 = vpack.c.b16 %v1840, %v1838
    %v1871 = vpack.c.b16 %v1841, %v1839
    %v1872 = vpack.c.b16 %v1844, %v1842
    %v1873 = vpack.c.b16 %v1845, %v1843
    %v1874 = vpack.c.b16 %v1848, %v1846
    %v1875 = vpack.c.b16 %v1849, %v1847
    %v1876 = vpack.c.b16 %v1852, %v1850
    %v1877 = vpack.c.b16 %v1853, %v1851
    %v1878 = vpack.c.b16 %v1856, %v1854
    %v1879 = vpack.c.b16 %v1857, %v1855
    %v1880 = vpack.c.b16 %v1860, %v1858
    %v1881 = vpack.c.b16 %v1861, %v1859
    %v1882 = vpack.c.b16 %v1864, %v1862
    %v1883 = vpack.c.b16 %v1865, %v1863
    %v1884 = vpack.c.b16 %v1868, %v1866
    %v1885 = vpack.c.b16 %v1869, %v1867
    %1902 = vmatpush.bf16.msra.mxu0 %v1884
    %1903 = vmatpush.bf16.msra.mxu0 %v1882
    %1904 = vmatpush.bf16.msra.mxu0 %v1880
    %1905 = vmatpush.bf16.msra.mxu0 %v1878
    %1906 = vmatpush.bf16.msra.mxu0 %v1876
    %1907 = vmatpush.bf16.msra.mxu0 %v1874
    %1908 = vmatpush.bf16.msra.mxu0 %v1872
    %1909 = vmatpush.bf16.msra.mxu0 %v1870
    %1910 = vmatmul.bf16.gmra.mxu0 %v1820
    %v1911 = vpop.f32.mrf.mxu0
    %v1912 = vadd.f32 0.0, %v1911
    %v1913 = vpop.f32.mrf.mxu0
    %1914 = vdwg.mxu0
    %1915 = vmatpush.bf16.msra.mxu0 %v1885
    %1916 = vmatpush.bf16.msra.mxu0 %v1883
    %1917 = vmatpush.bf16.msra.mxu0 %v1881
    %1918 = vmatpush.bf16.msra.mxu0 %v1879
    %1919 = vmatpush.bf16.msra.mxu0 %v1877
    %1920 = vmatpush.bf16.msra.mxu0 %v1875
    %1921 = vmatpush.bf16.msra.mxu0 %v1873
    %1922 = vmatpush.bf16.msra.mxu0 %v1871
    %1923 = vmatmul.bf16.gmra.mxu0 %v1820
    %v1924 = vpop.f32.mrf.mxu0
    %v1925 = vadd.f32 0.0, %v1924
    %v1926 = vpop.f32.mrf.mxu0
    %1927 = vdwg.mxu0
    %v1928 = vadd.f32 %v1791, %v1912
    %v1929 = vadd.f32 %v1792, %v1925
    %s1930 = scalar_lea.vmem [#allocation16], 1152
    %v1931 = vld [vmem:[%s1930] sm:$0xff]
    %v1932 = vld [vmem:[%s1930 + $0x8] sm:$0xff]
    %v1933 = vld [vmem:[%s1930 + $0x10] sm:$0xff]
    %v1934 = vld [vmem:[%s1930 + $0x18] sm:$0xff]
    %v1935 = vld [vmem:[%s1930 + $0x20] sm:$0xff]
    %v1936 = vld [vmem:[%s1930 + $0x28] sm:$0xff]
    %v1937 = vld [vmem:[%s1930 + $0x30] sm:$0xff]
    %v1938 = vld [vmem:[%s1930 + $0x38] sm:$0xff]
    %v1939 = vld [vmem:[%s1930 + $0x40] sm:$0xff]
    %v1940 = vld [vmem:[%s1930 + $0x48] sm:$0xff]
    %v1941 = vld [vmem:[%s1930 + $0x50] sm:$0xff]
    %v1942 = vld [vmem:[%s1930 + $0x58] sm:$0xff]
    %v1943 = vld [vmem:[%s1930 + $0x60] sm:$0xff]
    %v1944 = vld [vmem:[%s1930 + $0x68] sm:$0xff]
    %v1945 = vld [vmem:[%s1930 + $0x70] sm:$0xff]
    %v1946 = vld [vmem:[%s1930 + $0x78] sm:$0xff]
    %v1947 = vrot.slane %v1816, 1
    %v1948 = vsel %vm793, %v1817, %v1947
    %v1949 = vpack.c.b16 %v1948, %v1948
    %v1967 = vunpack.c.l.b16 %v1931
    %v1968 = vunpack.c.h.b16 %v1931
    %v1969 = vunpack.c.l.b16 %v1932
    %v1970 = vunpack.c.h.b16 %v1932
    %v1971 = vunpack.c.l.b16 %v1933
    %v1972 = vunpack.c.h.b16 %v1933
    %v1973 = vunpack.c.l.b16 %v1934
    %v1974 = vunpack.c.h.b16 %v1934
    %v1975 = vunpack.c.l.b16 %v1935
    %v1976 = vunpack.c.h.b16 %v1935
    %v1977 = vunpack.c.l.b16 %v1936
    %v1978 = vunpack.c.h.b16 %v1936
    %v1979 = vunpack.c.l.b16 %v1937
    %v1980 = vunpack.c.h.b16 %v1937
    %v1981 = vunpack.c.l.b16 %v1938
    %v1982 = vunpack.c.h.b16 %v1938
    %v1983 = vunpack.c.l.b16 %v1939
    %v1984 = vunpack.c.h.b16 %v1939
    %v1985 = vunpack.c.l.b16 %v1940
    %v1986 = vunpack.c.h.b16 %v1940
    %v1987 = vunpack.c.l.b16 %v1941
    %v1988 = vunpack.c.h.b16 %v1941
    %v1989 = vunpack.c.l.b16 %v1942
    %v1990 = vunpack.c.h.b16 %v1942
    %v1991 = vunpack.c.l.b16 %v1943
    %v1992 = vunpack.c.h.b16 %v1943
    %v1993 = vunpack.c.l.b16 %v1944
    %v1994 = vunpack.c.h.b16 %v1944
    %v1995 = vunpack.c.l.b16 %v1945
    %v1996 = vunpack.c.h.b16 %v1945
    %v1997 = vunpack.c.l.b16 %v1946
    %v1998 = vunpack.c.h.b16 %v1946
    %v1999 = vpack.c.b16 %v1969, %v1967
    %v2000 = vpack.c.b16 %v1970, %v1968
    %v2001 = vpack.c.b16 %v1973, %v1971
    %v2002 = vpack.c.b16 %v1974, %v1972
    %v2003 = vpack.c.b16 %v1977, %v1975
    %v2004 = vpack.c.b16 %v1978, %v1976
    %v2005 = vpack.c.b16 %v1981, %v1979
    %v2006 = vpack.c.b16 %v1982, %v1980
    %v2007 = vpack.c.b16 %v1985, %v1983
    %v2008 = vpack.c.b16 %v1986, %v1984
    %v2009 = vpack.c.b16 %v1989, %v1987
    %v2010 = vpack.c.b16 %v1990, %v1988
    %v2011 = vpack.c.b16 %v1993, %v1991
    %v2012 = vpack.c.b16 %v1994, %v1992
    %v2013 = vpack.c.b16 %v1997, %v1995
    %v2014 = vpack.c.b16 %v1998, %v1996
    %2031 = vmatpush.bf16.msra.mxu0 %v2013
    %2032 = vmatpush.bf16.msra.mxu0 %v2011
    %2033 = vmatpush.bf16.msra.mxu0 %v2009
    %2034 = vmatpush.bf16.msra.mxu0 %v2007
    %2035 = vmatpush.bf16.msra.mxu0 %v2005
    %2036 = vmatpush.bf16.msra.mxu0 %v2003
    %2037 = vmatpush.bf16.msra.mxu0 %v2001
    %2038 = vmatpush.bf16.msra.mxu0 %v1999
    %2039 = vmatmul.bf16.gmra.mxu0 %v1949
    %v2040 = vpop.f32.mrf.mxu0
    %v2041 = vadd.f32 0.0, %v2040
    %v2042 = vpop.f32.mrf.mxu0
    %2043 = vdwg.mxu0
    %2044 = vmatpush.bf16.msra.mxu0 %v2014
    %2045 = vmatpush.bf16.msra.mxu0 %v2012
    %2046 = vmatpush.bf16.msra.mxu0 %v2010
    %2047 = vmatpush.bf16.msra.mxu0 %v2008
    %2048 = vmatpush.bf16.msra.mxu0 %v2006
    %2049 = vmatpush.bf16.msra.mxu0 %v2004
    %2050 = vmatpush.bf16.msra.mxu0 %v2002
    %2051 = vmatpush.bf16.msra.mxu0 %v2000
    %2052 = vmatmul.bf16.gmra.mxu0 %v1949
    %v2053 = vpop.f32.mrf.mxu0
    %v2054 = vadd.f32 0.0, %v2053
    %v2055 = vpop.f32.mrf.mxu0
    %2056 = vdwg.mxu0
    %v2057 = vadd.f32 %v1928, %v2041
    %v2058 = vadd.f32 %v1929, %v2054
    %s2059 = scalar_lea.vmem [#allocation16], 1280
    %v2060 = vld [vmem:[%s2059] sm:$0xff]
    %v2061 = vld [vmem:[%s2059 + $0x8] sm:$0xff]
    %v2062 = vld [vmem:[%s2059 + $0x10] sm:$0xff]
    %v2063 = vld [vmem:[%s2059 + $0x18] sm:$0xff]
    %v2064 = vld [vmem:[%s2059 + $0x20] sm:$0xff]
    %v2065 = vld [vmem:[%s2059 + $0x28] sm:$0xff]
    %v2066 = vld [vmem:[%s2059 + $0x30] sm:$0xff]
    %v2067 = vld [vmem:[%s2059 + $0x38] sm:$0xff]
    %v2068 = vld [vmem:[%s2059 + $0x40] sm:$0xff]
    %v2069 = vld [vmem:[%s2059 + $0x48] sm:$0xff]
    %v2070 = vld [vmem:[%s2059 + $0x50] sm:$0xff]
    %v2071 = vld [vmem:[%s2059 + $0x58] sm:$0xff]
    %v2072 = vld [vmem:[%s2059 + $0x60] sm:$0xff]
    %v2073 = vld [vmem:[%s2059 + $0x68] sm:$0xff]
    %v2074 = vld [vmem:[%s2059 + $0x70] sm:$0xff]
    %v2075 = vld [vmem:[%s2059 + $0x78] sm:$0xff]
    %v2076 = vrot.slane %v1816, 2
    %v2077 = vrot.slane %v1817, 1
    %v2078 = vsel %vm793, %v2077, %v2076
    %v2079 = vpack.c.b16 %v2078, %v2078
    %v2097 = vunpack.c.l.b16 %v2060
    %v2098 = vunpack.c.h.b16 %v2060
    %v2099 = vunpack.c.l.b16 %v2061
    %v2100 = vunpack.c.h.b16 %v2061
    %v2101 = vunpack.c.l.b16 %v2062
    %v2102 = vunpack.c.h.b16 %v2062
    %v2103 = vunpack.c.l.b16 %v2063
    %v2104 = vunpack.c.h.b16 %v2063
    %v2105 = vunpack.c.l.b16 %v2064
    %v2106 = vunpack.c.h.b16 %v2064
    %v2107 = vunpack.c.l.b16 %v2065
    %v2108 = vunpack.c.h.b16 %v2065
    %v2109 = vunpack.c.l.b16 %v2066
    %v2110 = vunpack.c.h.b16 %v2066
    %v2111 = vunpack.c.l.b16 %v2067
    %v2112 = vunpack.c.h.b16 %v2067
    %v2113 = vunpack.c.l.b16 %v2068
    %v2114 = vunpack.c.h.b16 %v2068
    %v2115 = vunpack.c.l.b16 %v2069
    %v2116 = vunpack.c.h.b16 %v2069
    %v2117 = vunpack.c.l.b16 %v2070
    %v2118 = vunpack.c.h.b16 %v2070
    %v2119 = vunpack.c.l.b16 %v2071
    %v2120 = vunpack.c.h.b16 %v2071
    %v2121 = vunpack.c.l.b16 %v2072
    %v2122 = vunpack.c.h.b16 %v2072
    %v2123 = vunpack.c.l.b16 %v2073
    %v2124 = vunpack.c.h.b16 %v2073
    %v2125 = vunpack.c.l.b16 %v2074
    %v2126 = vunpack.c.h.b16 %v2074
    %v2127 = vunpack.c.l.b16 %v2075
    %v2128 = vunpack.c.h.b16 %v2075
    %v2129 = vpack.c.b16 %v2099, %v2097
    %v2130 = vpack.c.b16 %v2100, %v2098
    %v2131 = vpack.c.b16 %v2103, %v2101
    %v2132 = vpack.c.b16 %v2104, %v2102
    %v2133 = vpack.c.b16 %v2107, %v2105
    %v2134 = vpack.c.b16 %v2108, %v2106
    %v2135 = vpack.c.b16 %v2111, %v2109
    %v2136 = vpack.c.b16 %v2112, %v2110
    %v2137 = vpack.c.b16 %v2115, %v2113
    %v2138 = vpack.c.b16 %v2116, %v2114
    %v2139 = vpack.c.b16 %v2119, %v2117
    %v2140 = vpack.c.b16 %v2120, %v2118
    %v2141 = vpack.c.b16 %v2123, %v2121
    %v2142 = vpack.c.b16 %v2124, %v2122
    %v2143 = vpack.c.b16 %v2127, %v2125
    %v2144 = vpack.c.b16 %v2128, %v2126
    %2161 = vmatpush.bf16.msra.mxu0 %v2143
    %2162 = vmatpush.bf16.msra.mxu0 %v2141
    %2163 = vmatpush.bf16.msra.mxu0 %v2139
    %2164 = vmatpush.bf16.msra.mxu0 %v2137
    %2165 = vmatpush.bf16.msra.mxu0 %v2135
    %2166 = vmatpush.bf16.msra.mxu0 %v2133
    %2167 = vmatpush.bf16.msra.mxu0 %v2131
    %2168 = vmatpush.bf16.msra.mxu0 %v2129
    %2169 = vmatmul.bf16.gmra.mxu0 %v2079
    %v2170 = vpop.f32.mrf.mxu0
    %v2171 = vadd.f32 0.0, %v2170
    %v2172 = vpop.f32.mrf.mxu0
    %2173 = vdwg.mxu0
    %2174 = vmatpush.bf16.msra.mxu0 %v2144
    %2175 = vmatpush.bf16.msra.mxu0 %v2142
    %2176 = vmatpush.bf16.msra.mxu0 %v2140
    %2177 = vmatpush.bf16.msra.mxu0 %v2138
    %2178 = vmatpush.bf16.msra.mxu0 %v2136
    %2179 = vmatpush.bf16.msra.mxu0 %v2134
    %2180 = vmatpush.bf16.msra.mxu0 %v2132
    %2181 = vmatpush.bf16.msra.mxu0 %v2130
    %2182 = vmatmul.bf16.gmra.mxu0 %v2079
    %v2183 = vpop.f32.mrf.mxu0
    %v2184 = vadd.f32 0.0, %v2183
    %v2185 = vpop.f32.mrf.mxu0
    %2186 = vdwg.mxu0
    %v2187 = vadd.f32 %v2057, %v2171
    %v2188 = vadd.f32 %v2058, %v2184
    %s2189 = scalar_lea.vmem [#allocation16], 1408
    %v2190 = vld [vmem:[%s2189] sm:$0xff]
    %v2191 = vld [vmem:[%s2189 + $0x8] sm:$0xff]
    %v2192 = vld [vmem:[%s2189 + $0x10] sm:$0xff]
    %v2193 = vld [vmem:[%s2189 + $0x18] sm:$0xff]
    %v2194 = vld [vmem:[%s2189 + $0x20] sm:$0xff]
    %v2195 = vld [vmem:[%s2189 + $0x28] sm:$0xff]
    %v2196 = vld [vmem:[%s2189 + $0x30] sm:$0xff]
    %v2197 = vld [vmem:[%s2189 + $0x38] sm:$0xff]
    %v2198 = vld [vmem:[%s2189 + $0x40] sm:$0xff]
    %v2199 = vld [vmem:[%s2189 + $0x48] sm:$0xff]
    %v2200 = vld [vmem:[%s2189 + $0x50] sm:$0xff]
    %v2201 = vld [vmem:[%s2189 + $0x58] sm:$0xff]
    %v2202 = vld [vmem:[%s2189 + $0x60] sm:$0xff]
    %v2203 = vld [vmem:[%s2189 + $0x68] sm:$0xff]
    %v2204 = vld [vmem:[%s2189 + $0x70] sm:$0xff]
    %v2205 = vld [vmem:[%s2189 + $0x78] sm:$0xff]
    %v2206 = vrot.slane %v1816, 3
    %v2207 = vrot.slane %v1817, 2
    %v2208 = vsel %vm793, %v2207, %v2206
    %v2209 = vpack.c.b16 %v2208, %v2208
    %v2227 = vunpack.c.l.b16 %v2190
    %v2228 = vunpack.c.h.b16 %v2190
    %v2229 = vunpack.c.l.b16 %v2191
    %v2230 = vunpack.c.h.b16 %v2191
    %v2231 = vunpack.c.l.b16 %v2192
    %v2232 = vunpack.c.h.b16 %v2192
    %v2233 = vunpack.c.l.b16 %v2193
    %v2234 = vunpack.c.h.b16 %v2193
    %v2235 = vunpack.c.l.b16 %v2194
    %v2236 = vunpack.c.h.b16 %v2194
    %v2237 = vunpack.c.l.b16 %v2195
    %v2238 = vunpack.c.h.b16 %v2195
    %v2239 = vunpack.c.l.b16 %v2196
    %v2240 = vunpack.c.h.b16 %v2196
    %v2241 = vunpack.c.l.b16 %v2197
    %v2242 = vunpack.c.h.b16 %v2197
    %v2243 = vunpack.c.l.b16 %v2198
    %v2244 = vunpack.c.h.b16 %v2198
    %v2245 = vunpack.c.l.b16 %v2199
    %v2246 = vunpack.c.h.b16 %v2199
    %v2247 = vunpack.c.l.b16 %v2200
    %v2248 = vunpack.c.h.b16 %v2200
    %v2249 = vunpack.c.l.b16 %v2201
    %v2250 = vunpack.c.h.b16 %v2201
    %v2251 = vunpack.c.l.b16 %v2202
    %v2252 = vunpack.c.h.b16 %v2202
    %v2253 = vunpack.c.l.b16 %v2203
    %v2254 = vunpack.c.h.b16 %v2203
    %v2255 = vunpack.c.l.b16 %v2204
    %v2256 = vunpack.c.h.b16 %v2204
    %v2257 = vunpack.c.l.b16 %v2205
    %v2258 = vunpack.c.h.b16 %v2205
    %v2259 = vpack.c.b16 %v2229, %v2227
    %v2260 = vpack.c.b16 %v2230, %v2228
    %v2261 = vpack.c.b16 %v2233, %v2231
    %v2262 = vpack.c.b16 %v2234, %v2232
    %v2263 = vpack.c.b16 %v2237, %v2235
    %v2264 = vpack.c.b16 %v2238, %v2236
    %v2265 = vpack.c.b16 %v2241, %v2239
    %v2266 = vpack.c.b16 %v2242, %v2240
    %v2267 = vpack.c.b16 %v2245, %v2243
    %v2268 = vpack.c.b16 %v2246, %v2244
    %v2269 = vpack.c.b16 %v2249, %v2247
    %v2270 = vpack.c.b16 %v2250, %v2248
    %v2271 = vpack.c.b16 %v2253, %v2251
    %v2272 = vpack.c.b16 %v2254, %v2252
    %v2273 = vpack.c.b16 %v2257, %v2255
    %v2274 = vpack.c.b16 %v2258, %v2256
    %2291 = vmatpush.bf16.msra.mxu0 %v2273
    %2292 = vmatpush.bf16.msra.mxu0 %v2271
    %2293 = vmatpush.bf16.msra.mxu0 %v2269
    %2294 = vmatpush.bf16.msra.mxu0 %v2267
    %2295 = vmatpush.bf16.msra.mxu0 %v2265
    %2296 = vmatpush.bf16.msra.mxu0 %v2263
    %2297 = vmatpush.bf16.msra.mxu0 %v2261
    %2298 = vmatpush.bf16.msra.mxu0 %v2259
    %2299 = vmatmul.bf16.gmra.mxu0 %v2209
    %v2300 = vpop.f32.mrf.mxu0
    %v2301 = vadd.f32 0.0, %v2300
    %v2302 = vpop.f32.mrf.mxu0
    %2303 = vdwg.mxu0
    %2304 = vmatpush.bf16.msra.mxu0 %v2274
    %2305 = vmatpush.bf16.msra.mxu0 %v2272
    %2306 = vmatpush.bf16.msra.mxu0 %v2270
    %2307 = vmatpush.bf16.msra.mxu0 %v2268
    %2308 = vmatpush.bf16.msra.mxu0 %v2266
    %2309 = vmatpush.bf16.msra.mxu0 %v2264
    %2310 = vmatpush.bf16.msra.mxu0 %v2262
    %2311 = vmatpush.bf16.msra.mxu0 %v2260
    %2312 = vmatmul.bf16.gmra.mxu0 %v2209
    %v2313 = vpop.f32.mrf.mxu0
    %v2314 = vadd.f32 0.0, %v2313
    %v2315 = vpop.f32.mrf.mxu0
    %2316 = vdwg.mxu0
    %v2317 = vadd.f32 %v2187, %v2301
    %v2318 = vadd.f32 %v2188, %v2314
    %s2319 = scalar_lea.vmem [#allocation16], 1536
    %v2320 = vld [vmem:[%s2319] sm:$0xff]
    %v2321 = vld [vmem:[%s2319 + $0x8] sm:$0xff]
    %v2322 = vld [vmem:[%s2319 + $0x10] sm:$0xff]
    %v2323 = vld [vmem:[%s2319 + $0x18] sm:$0xff]
    %v2324 = vld [vmem:[%s2319 + $0x20] sm:$0xff]
    %v2325 = vld [vmem:[%s2319 + $0x28] sm:$0xff]
    %v2326 = vld [vmem:[%s2319 + $0x30] sm:$0xff]
    %v2327 = vld [vmem:[%s2319 + $0x38] sm:$0xff]
    %v2328 = vld [vmem:[%s2319 + $0x40] sm:$0xff]
    %v2329 = vld [vmem:[%s2319 + $0x48] sm:$0xff]
    %v2330 = vld [vmem:[%s2319 + $0x50] sm:$0xff]
    %v2331 = vld [vmem:[%s2319 + $0x58] sm:$0xff]
    %v2332 = vld [vmem:[%s2319 + $0x60] sm:$0xff]
    %v2333 = vld [vmem:[%s2319 + $0x68] sm:$0xff]
    %v2334 = vld [vmem:[%s2319 + $0x70] sm:$0xff]
    %v2335 = vld [vmem:[%s2319 + $0x78] sm:$0xff]
    %v2336 = vrot.slane %v1816, 4
    %v2337 = vrot.slane %v1817, 3
    %v2338 = vsel %vm793, %v2337, %v2336
    %v2339 = vpack.c.b16 %v2338, %v2338
    %v2357 = vunpack.c.l.b16 %v2320
    %v2358 = vunpack.c.h.b16 %v2320
    %v2359 = vunpack.c.l.b16 %v2321
    %v2360 = vunpack.c.h.b16 %v2321
    %v2361 = vunpack.c.l.b16 %v2322
    %v2362 = vunpack.c.h.b16 %v2322
    %v2363 = vunpack.c.l.b16 %v2323
    %v2364 = vunpack.c.h.b16 %v2323
    %v2365 = vunpack.c.l.b16 %v2324
    %v2366 = vunpack.c.h.b16 %v2324
    %v2367 = vunpack.c.l.b16 %v2325
    %v2368 = vunpack.c.h.b16 %v2325
    %v2369 = vunpack.c.l.b16 %v2326
    %v2370 = vunpack.c.h.b16 %v2326
    %v2371 = vunpack.c.l.b16 %v2327
    %v2372 = vunpack.c.h.b16 %v2327
    %v2373 = vunpack.c.l.b16 %v2328
    %v2374 = vunpack.c.h.b16 %v2328
    %v2375 = vunpack.c.l.b16 %v2329
    %v2376 = vunpack.c.h.b16 %v2329
    %v2377 = vunpack.c.l.b16 %v2330
    %v2378 = vunpack.c.h.b16 %v2330
    %v2379 = vunpack.c.l.b16 %v2331
    %v2380 = vunpack.c.h.b16 %v2331
    %v2381 = vunpack.c.l.b16 %v2332
    %v2382 = vunpack.c.h.b16 %v2332
    %v2383 = vunpack.c.l.b16 %v2333
    %v2384 = vunpack.c.h.b16 %v2333
    %v2385 = vunpack.c.l.b16 %v2334
    %v2386 = vunpack.c.h.b16 %v2334
    %v2387 = vunpack.c.l.b16 %v2335
    %v2388 = vunpack.c.h.b16 %v2335
    %v2389 = vpack.c.b16 %v2359, %v2357
    %v2390 = vpack.c.b16 %v2360, %v2358
    %v2391 = vpack.c.b16 %v2363, %v2361
    %v2392 = vpack.c.b16 %v2364, %v2362
    %v2393 = vpack.c.b16 %v2367, %v2365
    %v2394 = vpack.c.b16 %v2368, %v2366
    %v2395 = vpack.c.b16 %v2371, %v2369
    %v2396 = vpack.c.b16 %v2372, %v2370
    %v2397 = vpack.c.b16 %v2375, %v2373
    %v2398 = vpack.c.b16 %v2376, %v2374
    %v2399 = vpack.c.b16 %v2379, %v2377
    %v2400 = vpack.c.b16 %v2380, %v2378
    %v2401 = vpack.c.b16 %v2383, %v2381
    %v2402 = vpack.c.b16 %v2384, %v2382
    %v2403 = vpack.c.b16 %v2387, %v2385
    %v2404 = vpack.c.b16 %v2388, %v2386
    %2421 = vmatpush.bf16.msra.mxu0 %v2403
    %2422 = vmatpush.bf16.msra.mxu0 %v2401
    %2423 = vmatpush.bf16.msra.mxu0 %v2399
    %2424 = vmatpush.bf16.msra.mxu0 %v2397
    %2425 = vmatpush.bf16.msra.mxu0 %v2395
    %2426 = vmatpush.bf16.msra.mxu0 %v2393
    %2427 = vmatpush.bf16.msra.mxu0 %v2391
    %2428 = vmatpush.bf16.msra.mxu0 %v2389
    %2429 = vmatmul.bf16.gmra.mxu0 %v2339
    %v2430 = vpop.f32.mrf.mxu0
    %v2431 = vadd.f32 0.0, %v2430
    %v2432 = vpop.f32.mrf.mxu0
    %2433 = vdwg.mxu0
    %2434 = vmatpush.bf16.msra.mxu0 %v2404
    %2435 = vmatpush.bf16.msra.mxu0 %v2402
    %2436 = vmatpush.bf16.msra.mxu0 %v2400
    %2437 = vmatpush.bf16.msra.mxu0 %v2398
    %2438 = vmatpush.bf16.msra.mxu0 %v2396
    %2439 = vmatpush.bf16.msra.mxu0 %v2394
    %2440 = vmatpush.bf16.msra.mxu0 %v2392
    %2441 = vmatpush.bf16.msra.mxu0 %v2390
    %2442 = vmatmul.bf16.gmra.mxu0 %v2339
    %v2443 = vpop.f32.mrf.mxu0
    %v2444 = vadd.f32 0.0, %v2443
    %v2445 = vpop.f32.mrf.mxu0
    %2446 = vdwg.mxu0
    %v2447 = vadd.f32 %v2317, %v2431
    %v2448 = vadd.f32 %v2318, %v2444
    %s2449 = scalar_lea.vmem [#allocation16], 1664
    %v2450 = vld [vmem:[%s2449] sm:$0xff]
    %v2451 = vld [vmem:[%s2449 + $0x8] sm:$0xff]
    %v2452 = vld [vmem:[%s2449 + $0x10] sm:$0xff]
    %v2453 = vld [vmem:[%s2449 + $0x18] sm:$0xff]
    %v2454 = vld [vmem:[%s2449 + $0x20] sm:$0xff]
    %v2455 = vld [vmem:[%s2449 + $0x28] sm:$0xff]
    %v2456 = vld [vmem:[%s2449 + $0x30] sm:$0xff]
    %v2457 = vld [vmem:[%s2449 + $0x38] sm:$0xff]
    %v2458 = vld [vmem:[%s2449 + $0x40] sm:$0xff]
    %v2459 = vld [vmem:[%s2449 + $0x48] sm:$0xff]
    %v2460 = vld [vmem:[%s2449 + $0x50] sm:$0xff]
    %v2461 = vld [vmem:[%s2449 + $0x58] sm:$0xff]
    %v2462 = vld [vmem:[%s2449 + $0x60] sm:$0xff]
    %v2463 = vld [vmem:[%s2449 + $0x68] sm:$0xff]
    %v2464 = vld [vmem:[%s2449 + $0x70] sm:$0xff]
    %v2465 = vld [vmem:[%s2449 + $0x78] sm:$0xff]
    %v2466 = vrot.slane %v1816, 5
    %v2467 = vrot.slane %v1817, 4
    %v2468 = vsel %vm793, %v2467, %v2466
    %v2469 = vpack.c.b16 %v2468, %v2468
    %v2487 = vunpack.c.l.b16 %v2450
    %v2488 = vunpack.c.h.b16 %v2450
    %v2489 = vunpack.c.l.b16 %v2451
    %v2490 = vunpack.c.h.b16 %v2451
    %v2491 = vunpack.c.l.b16 %v2452
    %v2492 = vunpack.c.h.b16 %v2452
    %v2493 = vunpack.c.l.b16 %v2453
    %v2494 = vunpack.c.h.b16 %v2453
    %v2495 = vunpack.c.l.b16 %v2454
    %v2496 = vunpack.c.h.b16 %v2454
    %v2497 = vunpack.c.l.b16 %v2455
    %v2498 = vunpack.c.h.b16 %v2455
    %v2499 = vunpack.c.l.b16 %v2456
    %v2500 = vunpack.c.h.b16 %v2456
    %v2501 = vunpack.c.l.b16 %v2457
    %v2502 = vunpack.c.h.b16 %v2457
    %v2503 = vunpack.c.l.b16 %v2458
    %v2504 = vunpack.c.h.b16 %v2458
    %v2505 = vunpack.c.l.b16 %v2459
    %v2506 = vunpack.c.h.b16 %v2459
    %v2507 = vunpack.c.l.b16 %v2460
    %v2508 = vunpack.c.h.b16 %v2460
    %v2509 = vunpack.c.l.b16 %v2461
    %v2510 = vunpack.c.h.b16 %v2461
    %v2511 = vunpack.c.l.b16 %v2462
    %v2512 = vunpack.c.h.b16 %v2462
    %v2513 = vunpack.c.l.b16 %v2463
    %v2514 = vunpack.c.h.b16 %v2463
    %v2515 = vunpack.c.l.b16 %v2464
    %v2516 = vunpack.c.h.b16 %v2464
    %v2517 = vunpack.c.l.b16 %v2465
    %v2518 = vunpack.c.h.b16 %v2465
    %v2519 = vpack.c.b16 %v2489, %v2487
    %v2520 = vpack.c.b16 %v2490, %v2488
    %v2521 = vpack.c.b16 %v2493, %v2491
    %v2522 = vpack.c.b16 %v2494, %v2492
    %v2523 = vpack.c.b16 %v2497, %v2495
    %v2524 = vpack.c.b16 %v2498, %v2496
    %v2525 = vpack.c.b16 %v2501, %v2499
    %v2526 = vpack.c.b16 %v2502, %v2500
    %v2527 = vpack.c.b16 %v2505, %v2503
    %v2528 = vpack.c.b16 %v2506, %v2504
    %v2529 = vpack.c.b16 %v2509, %v2507
    %v2530 = vpack.c.b16 %v2510, %v2508
    %v2531 = vpack.c.b16 %v2513, %v2511
    %v2532 = vpack.c.b16 %v2514, %v2512
    %v2533 = vpack.c.b16 %v2517, %v2515
    %v2534 = vpack.c.b16 %v2518, %v2516
    %2551 = vmatpush.bf16.msra.mxu0 %v2533
    %2552 = vmatpush.bf16.msra.mxu0 %v2531
    %2553 = vmatpush.bf16.msra.mxu0 %v2529
    %2554 = vmatpush.bf16.msra.mxu0 %v2527
    %2555 = vmatpush.bf16.msra.mxu0 %v2525
    %2556 = vmatpush.bf16.msra.mxu0 %v2523
    %2557 = vmatpush.bf16.msra.mxu0 %v2521
    %2558 = vmatpush.bf16.msra.mxu0 %v2519
    %2559 = vmatmul.bf16.gmra.mxu0 %v2469
    %v2560 = vpop.f32.mrf.mxu0
    %v2561 = vadd.f32 0.0, %v2560
    %v2562 = vpop.f32.mrf.mxu0
    %2563 = vdwg.mxu0
    %2564 = vmatpush.bf16.msra.mxu0 %v2534
    %2565 = vmatpush.bf16.msra.mxu0 %v2532
    %2566 = vmatpush.bf16.msra.mxu0 %v2530
    %2567 = vmatpush.bf16.msra.mxu0 %v2528
    %2568 = vmatpush.bf16.msra.mxu0 %v2526
    %2569 = vmatpush.bf16.msra.mxu0 %v2524
    %2570 = vmatpush.bf16.msra.mxu0 %v2522
    %2571 = vmatpush.bf16.msra.mxu0 %v2520
    %2572 = vmatmul.bf16.gmra.mxu0 %v2469
    %v2573 = vpop.f32.mrf.mxu0
    %v2574 = vadd.f32 0.0, %v2573
    %v2575 = vpop.f32.mrf.mxu0
    %2576 = vdwg.mxu0
    %v2577 = vadd.f32 %v2447, %v2561
    %v2578 = vadd.f32 %v2448, %v2574
    %s2579 = scalar_lea.vmem [#allocation16], 1792
    %v2580 = vld [vmem:[%s2579] sm:$0xff]
    %v2581 = vld [vmem:[%s2579 + $0x8] sm:$0xff]
    %v2582 = vld [vmem:[%s2579 + $0x10] sm:$0xff]
    %v2583 = vld [vmem:[%s2579 + $0x18] sm:$0xff]
    %v2584 = vld [vmem:[%s2579 + $0x20] sm:$0xff]
    %v2585 = vld [vmem:[%s2579 + $0x28] sm:$0xff]
    %v2586 = vld [vmem:[%s2579 + $0x30] sm:$0xff]
    %v2587 = vld [vmem:[%s2579 + $0x38] sm:$0xff]
    %v2588 = vld [vmem:[%s2579 + $0x40] sm:$0xff]
    %v2589 = vld [vmem:[%s2579 + $0x48] sm:$0xff]
    %v2590 = vld [vmem:[%s2579 + $0x50] sm:$0xff]
    %v2591 = vld [vmem:[%s2579 + $0x58] sm:$0xff]
    %v2592 = vld [vmem:[%s2579 + $0x60] sm:$0xff]
    %v2593 = vld [vmem:[%s2579 + $0x68] sm:$0xff]
    %v2594 = vld [vmem:[%s2579 + $0x70] sm:$0xff]
    %v2595 = vld [vmem:[%s2579 + $0x78] sm:$0xff]
    %v2596 = vrot.slane %v1816, 6
    %v2597 = vrot.slane %v1817, 5
    %v2598 = vsel %vm793, %v2597, %v2596
    %v2599 = vpack.c.b16 %v2598, %v2598
    %v2617 = vunpack.c.l.b16 %v2580
    %v2618 = vunpack.c.h.b16 %v2580
    %v2619 = vunpack.c.l.b16 %v2581
    %v2620 = vunpack.c.h.b16 %v2581
    %v2621 = vunpack.c.l.b16 %v2582
    %v2622 = vunpack.c.h.b16 %v2582
    %v2623 = vunpack.c.l.b16 %v2583
    %v2624 = vunpack.c.h.b16 %v2583
    %v2625 = vunpack.c.l.b16 %v2584
    %v2626 = vunpack.c.h.b16 %v2584
    %v2627 = vunpack.c.l.b16 %v2585
    %v2628 = vunpack.c.h.b16 %v2585
    %v2629 = vunpack.c.l.b16 %v2586
    %v2630 = vunpack.c.h.b16 %v2586
    %v2631 = vunpack.c.l.b16 %v2587
    %v2632 = vunpack.c.h.b16 %v2587
    %v2633 = vunpack.c.l.b16 %v2588
    %v2634 = vunpack.c.h.b16 %v2588
    %v2635 = vunpack.c.l.b16 %v2589
    %v2636 = vunpack.c.h.b16 %v2589
    %v2637 = vunpack.c.l.b16 %v2590
    %v2638 = vunpack.c.h.b16 %v2590
    %v2639 = vunpack.c.l.b16 %v2591
    %v2640 = vunpack.c.h.b16 %v2591
    %v2641 = vunpack.c.l.b16 %v2592
    %v2642 = vunpack.c.h.b16 %v2592
    %v2643 = vunpack.c.l.b16 %v2593
    %v2644 = vunpack.c.h.b16 %v2593
    %v2645 = vunpack.c.l.b16 %v2594
    %v2646 = vunpack.c.h.b16 %v2594
    %v2647 = vunpack.c.l.b16 %v2595
    %v2648 = vunpack.c.h.b16 %v2595
    %v2649 = vpack.c.b16 %v2619, %v2617
    %v2650 = vpack.c.b16 %v2620, %v2618
    %v2651 = vpack.c.b16 %v2623, %v2621
    %v2652 = vpack.c.b16 %v2624, %v2622
    %v2653 = vpack.c.b16 %v2627, %v2625
    %v2654 = vpack.c.b16 %v2628, %v2626
    %v2655 = vpack.c.b16 %v2631, %v2629
    %v2656 = vpack.c.b16 %v2632, %v2630
    %v2657 = vpack.c.b16 %v2635, %v2633
    %v2658 = vpack.c.b16 %v2636, %v2634
    %v2659 = vpack.c.b16 %v2639, %v2637
    %v2660 = vpack.c.b16 %v2640, %v2638
    %v2661 = vpack.c.b16 %v2643, %v2641
    %v2662 = vpack.c.b16 %v2644, %v2642
    %v2663 = vpack.c.b16 %v2647, %v2645
    %v2664 = vpack.c.b16 %v2648, %v2646
    %2681 = vmatpush.bf16.msra.mxu0 %v2663
    %2682 = vmatpush.bf16.msra.mxu0 %v2661
    %2683 = vmatpush.bf16.msra.mxu0 %v2659
    %2684 = vmatpush.bf16.msra.mxu0 %v2657
    %2685 = vmatpush.bf16.msra.mxu0 %v2655
    %2686 = vmatpush.bf16.msra.mxu0 %v2653
    %2687 = vmatpush.bf16.msra.mxu0 %v2651
    %2688 = vmatpush.bf16.msra.mxu0 %v2649
    %2689 = vmatmul.bf16.gmra.mxu0 %v2599
    %v2690 = vpop.f32.mrf.mxu0
    %v2691 = vadd.f32 0.0, %v2690
    %v2692 = vpop.f32.mrf.mxu0
    %2693 = vdwg.mxu0
    %2694 = vmatpush.bf16.msra.mxu0 %v2664
    %2695 = vmatpush.bf16.msra.mxu0 %v2662
    %2696 = vmatpush.bf16.msra.mxu0 %v2660
    %2697 = vmatpush.bf16.msra.mxu0 %v2658
    %2698 = vmatpush.bf16.msra.mxu0 %v2656
    %2699 = vmatpush.bf16.msra.mxu0 %v2654
    %2700 = vmatpush.bf16.msra.mxu0 %v2652
    %2701 = vmatpush.bf16.msra.mxu0 %v2650
    %2702 = vmatmul.bf16.gmra.mxu0 %v2599
    %v2703 = vpop.f32.mrf.mxu0
    %v2704 = vadd.f32 0.0, %v2703
    %v2705 = vpop.f32.mrf.mxu0
    %2706 = vdwg.mxu0
    %v2707 = vadd.f32 %v2577, %v2691
    %v2708 = vadd.f32 %v2578, %v2704
    %s2709 = scalar_lea.vmem [#allocation16], 1920
    %v2710 = vld [vmem:[%s2709] sm:$0xff]
    %v2711 = vld [vmem:[%s2709 + $0x8] sm:$0xff]
    %v2712 = vld [vmem:[%s2709 + $0x10] sm:$0xff]
    %v2713 = vld [vmem:[%s2709 + $0x18] sm:$0xff]
    %v2714 = vld [vmem:[%s2709 + $0x20] sm:$0xff]
    %v2715 = vld [vmem:[%s2709 + $0x28] sm:$0xff]
    %v2716 = vld [vmem:[%s2709 + $0x30] sm:$0xff]
    %v2717 = vld [vmem:[%s2709 + $0x38] sm:$0xff]
    %v2718 = vld [vmem:[%s2709 + $0x40] sm:$0xff]
    %v2719 = vld [vmem:[%s2709 + $0x48] sm:$0xff]
    %v2720 = vld [vmem:[%s2709 + $0x50] sm:$0xff]
    %v2721 = vld [vmem:[%s2709 + $0x58] sm:$0xff]
    %v2722 = vld [vmem:[%s2709 + $0x60] sm:$0xff]
    %v2723 = vld [vmem:[%s2709 + $0x68] sm:$0xff]
    %v2724 = vld [vmem:[%s2709 + $0x70] sm:$0xff]
    %v2725 = vld [vmem:[%s2709 + $0x78] sm:$0xff]
    %v2726 = vrot.slane %v1816, 7
    %v2727 = vrot.slane %v1817, 6
    %v2728 = vsel %vm793, %v2727, %v2726
    %v2729 = vpack.c.b16 %v2728, %v2728
    %v2747 = vunpack.c.l.b16 %v2710
    %v2748 = vunpack.c.h.b16 %v2710
    %v2749 = vunpack.c.l.b16 %v2711
    %v2750 = vunpack.c.h.b16 %v2711
    %v2751 = vunpack.c.l.b16 %v2712
    %v2752 = vunpack.c.h.b16 %v2712
    %v2753 = vunpack.c.l.b16 %v2713
    %v2754 = vunpack.c.h.b16 %v2713
    %v2755 = vunpack.c.l.b16 %v2714
    %v2756 = vunpack.c.h.b16 %v2714
    %v2757 = vunpack.c.l.b16 %v2715
    %v2758 = vunpack.c.h.b16 %v2715
    %v2759 = vunpack.c.l.b16 %v2716
    %v2760 = vunpack.c.h.b16 %v2716
    %v2761 = vunpack.c.l.b16 %v2717
    %v2762 = vunpack.c.h.b16 %v2717
    %v2763 = vunpack.c.l.b16 %v2718
    %v2764 = vunpack.c.h.b16 %v2718
    %v2765 = vunpack.c.l.b16 %v2719
    %v2766 = vunpack.c.h.b16 %v2719
    %v2767 = vunpack.c.l.b16 %v2720
    %v2768 = vunpack.c.h.b16 %v2720
    %v2769 = vunpack.c.l.b16 %v2721
    %v2770 = vunpack.c.h.b16 %v2721
    %v2771 = vunpack.c.l.b16 %v2722
    %v2772 = vunpack.c.h.b16 %v2722
    %v2773 = vunpack.c.l.b16 %v2723
    %v2774 = vunpack.c.h.b16 %v2723
    %v2775 = vunpack.c.l.b16 %v2724
    %v2776 = vunpack.c.h.b16 %v2724
    %v2777 = vunpack.c.l.b16 %v2725
    %v2778 = vunpack.c.h.b16 %v2725
    %v2779 = vpack.c.b16 %v2749, %v2747
    %v2780 = vpack.c.b16 %v2750, %v2748
    %v2781 = vpack.c.b16 %v2753, %v2751
    %v2782 = vpack.c.b16 %v2754, %v2752
    %v2783 = vpack.c.b16 %v2757, %v2755
    %v2784 = vpack.c.b16 %v2758, %v2756
    %v2785 = vpack.c.b16 %v2761, %v2759
    %v2786 = vpack.c.b16 %v2762, %v2760
    %v2787 = vpack.c.b16 %v2765, %v2763
    %v2788 = vpack.c.b16 %v2766, %v2764
    %v2789 = vpack.c.b16 %v2769, %v2767
    %v2790 = vpack.c.b16 %v2770, %v2768
    %v2791 = vpack.c.b16 %v2773, %v2771
    %v2792 = vpack.c.b16 %v2774, %v2772
    %v2793 = vpack.c.b16 %v2777, %v2775
    %v2794 = vpack.c.b16 %v2778, %v2776
    %2811 = vmatpush.bf16.msra.mxu0 %v2793
    %2812 = vmatpush.bf16.msra.mxu0 %v2791
    %2813 = vmatpush.bf16.msra.mxu0 %v2789
    %2814 = vmatpush.bf16.msra.mxu0 %v2787
    %2815 = vmatpush.bf16.msra.mxu0 %v2785
    %2816 = vmatpush.bf16.msra.mxu0 %v2783
    %2817 = vmatpush.bf16.msra.mxu0 %v2781
    %2818 = vmatpush.bf16.msra.mxu0 %v2779
    %2819 = vmatmul.bf16.gmra.mxu0 %v2729
    %v2820 = vpop.f32.mrf.mxu0
    %v2821 = vadd.f32 0.0, %v2820
    %v2822 = vpop.f32.mrf.mxu0
    %2823 = vdwg.mxu0
    %2824 = vmatpush.bf16.msra.mxu0 %v2794
    %2825 = vmatpush.bf16.msra.mxu0 %v2792
    %2826 = vmatpush.bf16.msra.mxu0 %v2790
    %2827 = vmatpush.bf16.msra.mxu0 %v2788
    %2828 = vmatpush.bf16.msra.mxu0 %v2786
    %2829 = vmatpush.bf16.msra.mxu0 %v2784
    %2830 = vmatpush.bf16.msra.mxu0 %v2782
    %2831 = vmatpush.bf16.msra.mxu0 %v2780
    %2832 = vmatmul.bf16.gmra.mxu0 %v2729
    %v2833 = vpop.f32.mrf.mxu0
    %v2834 = vadd.f32 0.0, %v2833
    %v2835 = vpop.f32.mrf.mxu0
    %2836 = vdwg.mxu0
    %v2837 = vadd.f32 %v2707, %v2821
    %v2838 = vadd.f32 %v2708, %v2834
    %v2839 = vld [vmem:[%s11] sm:$0x3]
    %v2841 = vperm.slane %v2839, 0
    %v2842 = vperm.slane %v2839, 1
    %v2845 = vadd.f32 %v2837, %v2841
    %v2846 = vadd.f32 %v2838, %v2842
    %v2847 = vmax.f32 %v2845, 0.0
    %v2848 = vmax.f32 %v2846, 0.0
    %v2849 = vpack.c.bf16 %v2847, %v2847
    %v2850 = vpack.c.bf16 %v2848, %v2848
    %v2851 = vld [vmem:[#allocation17] sm:$0xf]
    %v2852 = vld [vmem:[#allocation17 + $0x4] sm:$0xf]
    %v2853 = vld [vmem:[#allocation17 + $0x8] sm:$0xf]
    %v2854 = vld [vmem:[#allocation17 + $0xc] sm:$0xf]
    %v2855 = vld [vmem:[#allocation17 + $0x10] sm:$0xf]
    %v2856 = vld [vmem:[#allocation17 + $0x14] sm:$0xf]
    %v2857 = vld [vmem:[#allocation17 + $0x18] sm:$0xf]
    %v2858 = vld [vmem:[#allocation17 + $0x1c] sm:$0xf]
    %v2859 = vld [vmem:[#allocation17 + $0x20] sm:$0xf]
    %v2860 = vld [vmem:[#allocation17 + $0x24] sm:$0xf]
    %v2861 = vld [vmem:[#allocation17 + $0x28] sm:$0xf]
    %v2862 = vld [vmem:[#allocation17 + $0x2c] sm:$0xf]
    %v2863 = vld [vmem:[#allocation17 + $0x30] sm:$0xf]
    %v2864 = vld [vmem:[#allocation17 + $0x34] sm:$0xf]
    %v2865 = vld [vmem:[#allocation17 + $0x38] sm:$0xf]
    %v2866 = vld [vmem:[#allocation17 + $0x3c] sm:$0xf]
    %v2867 = vld [vmem:[#allocation17 + $0x40] sm:$0xf]
    %v2868 = vld [vmem:[#allocation17 + $0x44] sm:$0xf]
    %v2869 = vld [vmem:[#allocation17 + $0x48] sm:$0xf]
    %v2870 = vld [vmem:[#allocation17 + $0x4c] sm:$0xf]
    %v2871 = vld [vmem:[#allocation17 + $0x50] sm:$0xf]
    %v2872 = vld [vmem:[#allocation17 + $0x54] sm:$0xf]
    %v2873 = vld [vmem:[#allocation17 + $0x58] sm:$0xf]
    %v2874 = vld [vmem:[#allocation17 + $0x5c] sm:$0xf]
    %v2875 = vld [vmem:[#allocation17 + $0x60] sm:$0xf]
    %v2876 = vld [vmem:[#allocation17 + $0x64] sm:$0xf]
    %v2877 = vld [vmem:[#allocation17 + $0x68] sm:$0xf]
    %v2878 = vld [vmem:[#allocation17 + $0x6c] sm:$0xf]
    %v2879 = vld [vmem:[#allocation17 + $0x70] sm:$0xf]
    %v2880 = vld [vmem:[#allocation17 + $0x74] sm:$0xf]
    %v2881 = vld [vmem:[#allocation17 + $0x78] sm:$0xf]
    %v2882 = vld [vmem:[#allocation17 + $0x7c] sm:$0xf]
    %v2883 = vld [vmem:[%s13] sm:$0x1]
    %v2885 = vperm.slane %v2883, 0
    %v2919 = vunpack.c.l.b16 %v2851
    %v2920 = vunpack.c.l.b16 %v2852
    %v2921 = vunpack.c.l.b16 %v2853
    %v2922 = vunpack.c.l.b16 %v2854
    %v2923 = vunpack.c.l.b16 %v2855
    %v2924 = vunpack.c.l.b16 %v2856
    %v2925 = vunpack.c.l.b16 %v2857
    %v2926 = vunpack.c.l.b16 %v2858
    %v2927 = vunpack.c.l.b16 %v2859
    %v2928 = vunpack.c.l.b16 %v2860
    %v2929 = vunpack.c.l.b16 %v2861
    %v2930 = vunpack.c.l.b16 %v2862
    %v2931 = vunpack.c.l.b16 %v2863
    %v2932 = vunpack.c.l.b16 %v2864
    %v2933 = vunpack.c.l.b16 %v2865
    %v2934 = vunpack.c.l.b16 %v2866
    %v2935 = vunpack.c.l.b16 %v2867
    %v2936 = vunpack.c.l.b16 %v2868
    %v2937 = vunpack.c.l.b16 %v2869
    %v2938 = vunpack.c.l.b16 %v2870
    %v2939 = vunpack.c.l.b16 %v2871
    %v2940 = vunpack.c.l.b16 %v2872
    %v2941 = vunpack.c.l.b16 %v2873
    %v2942 = vunpack.c.l.b16 %v2874
    %v2943 = vunpack.c.l.b16 %v2875
    %v2944 = vunpack.c.l.b16 %v2876
    %v2945 = vunpack.c.l.b16 %v2877
    %v2946 = vunpack.c.l.b16 %v2878
    %v2947 = vunpack.c.l.b16 %v2879
    %v2948 = vunpack.c.l.b16 %v2880
    %v2949 = vunpack.c.l.b16 %v2881
    %v2950 = vunpack.c.l.b16 %v2882
    %v2951 = vpack.c.b16 %v2920, %v2919
    %v2952 = vpack.c.b16 %v2922, %v2921
    %v2953 = vpack.c.b16 %v2924, %v2923
    %v2954 = vpack.c.b16 %v2926, %v2925
    %v2955 = vpack.c.b16 %v2928, %v2927
    %v2956 = vpack.c.b16 %v2930, %v2929
    %v2957 = vpack.c.b16 %v2932, %v2931
    %v2958 = vpack.c.b16 %v2934, %v2933
    %v2959 = vpack.c.b16 %v2936, %v2935
    %v2960 = vpack.c.b16 %v2938, %v2937
    %v2961 = vpack.c.b16 %v2940, %v2939
    %v2962 = vpack.c.b16 %v2942, %v2941
    %v2963 = vpack.c.b16 %v2944, %v2943
    %v2964 = vpack.c.b16 %v2946, %v2945
    %v2965 = vpack.c.b16 %v2948, %v2947
    %v2966 = vpack.c.b16 %v2950, %v2949
    %2983 = vmatpush.bf16.msra.mxu0 %v2958
    %2984 = vmatpush.bf16.msra.mxu0 %v2957
    %2985 = vmatpush.bf16.msra.mxu0 %v2956
    %2986 = vmatpush.bf16.msra.mxu0 %v2955
    %2987 = vmatpush.bf16.msra.mxu0 %v2954
    %2988 = vmatpush.bf16.msra.mxu0 %v2953
    %2989 = vmatpush.bf16.msra.mxu0 %v2952
    %2990 = vmatpush.bf16.msra.mxu0 %v2951
    %2991 = vmatmul.bf16.gmra.mxu0 %v2849
    %v2992 = vpop.f32.mrf.mxu0
    %v2993 = vadd.f32 %v2885, %v2992
    %v2994 = vpop.f32.mrf.mxu0
    %2995 = vdwg.mxu0
    %2996 = vmatpush.bf16.msra.mxu0 %v2966
    %2997 = vmatpush.bf16.msra.mxu0 %v2965
    %2998 = vmatpush.bf16.msra.mxu0 %v2964
    %2999 = vmatpush.bf16.msra.mxu0 %v2963
    %3000 = vmatpush.bf16.msra.mxu0 %v2962
    %3001 = vmatpush.bf16.msra.mxu0 %v2961
    %3002 = vmatpush.bf16.msra.mxu0 %v2960
    %3003 = vmatpush.bf16.msra.mxu0 %v2959
    %3004 = vmatmul.bf16.gmra.mxu0 %v2850
    %v3005 = vpop.f32.mrf.mxu0
    %v3006 = vadd.f32 %v2993, %v3005
    %v3007 = vpop.f32.mrf.mxu0
    %3008 = vdwg.mxu0
    %3009 = vst [vmem:[#allocation19] sm:$0x3] %v3006
    // Predicated region
    $region90: #{time_domain_cnn_forward.1} parent=1 // pred_check
      _
    $region91: #{time_domain_cnn_forward.1} parent=1 // pred_check_branch
      %3011 = sbr.rel (0) target = $region93
    $region92: #{time_domain_cnn_forward.1} parent=1 // pred_region
      %3013 = vsyncadd [#allocation7], 0
      %s3015 = sshll.u32 [#allocation19], 4
      %s3016 = int_to_ptr.vmem [resolvable:$true] %s3015
      %s3017 = sshll.u32 %s14, 4
      %s3018 = int_to_ptr.hbm [resolvable:$true] %s3017
      %3020 = dma.vmem_to_hbm [thread:$0]  %s3016, 32, %s3018, [#allocation7]
    $region93: #{time_domain_cnn_forward.1} parent=1 // pred_fallthru
      _
    // Predicated region
    $region94: #{time_domain_cnn_forward.1} parent=1 // pred_check
      _
    $region95: #{time_domain_cnn_forward.1} parent=1 // pred_check_branch
      %3022 = sbr.rel (0) target = $region97
    $region96: #{time_domain_cnn_forward.1} parent=1 // pred_region
      %3024 = dma.done [#allocation7], 32
    $region97: #{time_domain_cnn_forward.1} parent=1 // pred_fallthru
      _
    %3025 = vsyncpa [#allocation6], 1
    %3026 = vsyncpa [#allocation9], 1
    %3027 = vsyncpa [#allocation12], 1
    %3028 = vsyncpa [#allocation15], 1
    %3029 = vsyncpa [#allocation18], 1
    %3030 = vsyncpa [#allocation7], 1

</llo_original>
